<compile_context>
chip_gen: v7x
topology: tpu7x:2x2x1
jax: 0.10.0
libtpu: 0.0.40
codegen_flags: <defaults>
</compile_context>

<pallas_src>
import functools
import math

import jax
import jax.numpy as jnp
from jax import lax
from jax.experimental import pallas as pl
from jax.experimental.pallas import tpu as pltpu


# --------------------------- small math helpers ---------------------------
def _layer_norm(y, w, b, eps=1e-5):
    mu = jnp.mean(y, axis=-1, keepdims=True)
    var = jnp.mean((y - mu) ** 2, axis=-1, keepdims=True)  # biased, like torch LN
    return (y - mu) * lax.rsqrt(var + eps) * w + b


def _erf_approx(x):
    # Abramowitz & Stegun 7.1.26 polynomial (|err| <= 1.5e-7).  Uses only
    # mul/add/div/exp so it lowers cleanly in Mosaic (no erf primitive needed).
    a1, a2, a3, a4, a5 = (0.254829592, -0.284496736, 1.421413741,
                          -1.453152027, 1.061405429)
    p = 0.3275911
    ax = jnp.abs(x)
    t = 1.0 / (1.0 + p * ax)
    poly = ((((a5 * t + a4) * t + a3) * t + a2) * t + a1) * t
    y = 1.0 - poly * jnp.exp(-(ax * ax))
    return jnp.where(x >= 0.0, y, -y)


def _gelu_exact(x):
    # nn.GELU() default = exact erf-based GELU (erf via polynomial in-kernel).
    # TODO(synk): optional tanh-approx GELU (EUP) behind a fidelity flag.
    return 0.5 * x * (1.0 + _erf_approx(x * (1.0 / math.sqrt(2.0))))


def _gelu_ref(x):
    return 0.5 * x * (1.0 + lax.erf(x / math.sqrt(2.0)))


# ------------------------------- the kernel -------------------------------
def encoder_block_kernel(
    x_ref,
    wq_ref, bq_ref, wkv_ref, bkv_ref, wout_ref, bout_ref,
    ln1w_ref, ln1b_ref, w1_ref, b1_ref, w2_ref, b2_ref, ln2w_ref, ln2b_ref,
    o_ref,
    k_cache, v_cache,
    *, num_heads, precise,
):
    cdt = jnp.float32 if precise else jnp.bfloat16
    _, S, D = x_ref.shape
    ts = o_ref.shape[1]
    H = num_heads
    hd = D // H
    n_kt, _, kt, _ = k_cache.shape
    scale = 1.0 / math.sqrt(hd)
    s_idx = pl.program_id(1)

    # ---- K/V projection cache: computed once per batch row (s == 0) and
    # reused across all query tiles (the s grid axis is "arbitrary" so the
    # scratch legally persists). Head split done here, once per row. ----
    @pl.when(s_idx == 0)
    def _():
        x_full = x_ref[0]                                           # (S, D) f32
        kv = jnp.dot(x_full.astype(cdt), wkv_ref[...],
                     preferred_element_type=jnp.float32) + bkv_ref[...]
        for t in range(n_kt):
            rows = slice(t * kt, (t + 1) * kt)
            for h in range(H):
                k_cache[t, h] = kv[rows, h * hd:(h + 1) * hd].astype(cdt)
                v_cache[t, h] = kv[rows, D + h * hd:D + (h + 1) * hd].astype(cdt)

    # ---- query tile: sliced out of the already-resident full-S block ----
    q_start = pl.multiple_of(s_idx * ts, ts)
    xq = x_ref[0, pl.ds(q_start, ts), :]                            # (ts, D) f32
    q = jnp.dot(xq.astype(cdt), wq_ref[...],
                preferred_element_type=jnp.float32) + bq_ref[...]
    q = (q * scale).astype(cdt)                                     # fold 1/sqrt(hd) into Q
    qh = jnp.stack([q[:, h * hd:(h + 1) * hd] for h in range(H)], axis=0)  # (H, ts, hd)

    # ---- flash-style online softmax over K/V tiles (bounded working set) ----
    def kv_step(t, carry):
        m_i, l_i, acc = carry
        kh = k_cache[t]                                             # (H, kt, hd)
        vh = v_cache[t]
        sb = jnp.einsum("hqd,hkd->hqk", qh, kh,
                        preferred_element_type=jnp.float32)         # (H, ts, kt) f32
        m_new = jnp.maximum(m_i, jnp.max(sb, axis=-1, keepdims=True))
        alpha = jnp.exp(m_i - m_new)
        p = jnp.exp(sb - m_new)
        l_new = alpha * l_i + jnp.sum(p, axis=-1, keepdims=True)
        acc_new = alpha * acc + jnp.einsum("hqk,hkd->hqd", p.astype(cdt), vh,
                                           preferred_element_type=jnp.float32)
        return m_new, l_new, acc_new

    carry0 = (jnp.full((H, ts, 1), -jnp.inf, jnp.float32),
              jnp.zeros((H, ts, 1), jnp.float32),
              jnp.zeros((H, ts, hd), jnp.float32))
    if n_kt == 1:
        _, l_f, acc = kv_step(0, carry0)
    else:
        _, l_f, acc = lax.fori_loop(0, n_kt, kv_step, carry0)

    if precise:
        ctx = acc / l_f
    else:
        ctx = acc * pl.reciprocal(l_f, approx=True)
    ctx = ctx.astype(cdt)                                           # (H, ts, hd)
    ctx2d = jnp.concatenate([ctx[h] for h in range(H)], axis=-1)    # (ts, D)

    attn_out = jnp.dot(ctx2d, wout_ref[...],
                       preferred_element_type=jnp.float32) + bout_ref[...]

    # ---- residual + LayerNorm 1 (f32; dropout = identity, eval mode) ----
    y = _layer_norm(xq + attn_out, ln1w_ref[...], ln1b_ref[...])

    # ---- FFN: Linear -> exact GELU (f32) -> Linear ----
    h1 = jnp.dot(y.astype(cdt), w1_ref[...],
                 preferred_element_type=jnp.float32) + b1_ref[...]
    h1 = _gelu_exact(h1)
    ffn = jnp.dot(h1.astype(cdt), w2_ref[...],
                  preferred_element_type=jnp.float32) + b2_ref[...]

    # ---- residual + LayerNorm 2 ----
    out = _layer_norm(y + ffn, ln2w_ref[...], ln2b_ref[...])
    o_ref[0] = out.astype(o_ref.dtype)


# ------------------------------- wrappers ----------------------------------
def _vmem_limit_bytes():
    cap = 128 * 1024 * 1024
    try:
        cap = int(pltpu.get_tpu_info().vmem_capacity_bytes)
    except Exception:
        pass
    # Leave headroom for Mosaic internal scratch: ~48 MiB on v7x (64 MiB VMEM),
    # 64 MiB on v5e / v6e (128 MiB VMEM).
    return int(min(64 * 1024 * 1024, cap * 3 // 4))


def encoder_block(x, params, num_heads, mask=None, *, seq_tile=128,
                  precise=False, single_buffer_weights=True):
    """One EncoderBlock forward. x: (B, S, D) f32. Eval mode only (no mask,
    dropout = identity).  seq_tile: 128 is a good default on v5e/v7x; 256 on
    v6e once S is large and divisible."""
    assert mask is None, "attention mask not supported by this kernel"
    B, S, D = x.shape
    assert D % num_heads == 0
    hd = D // num_heads
    dff = params["w1"].shape[1]

    ts = seq_tile if (S % seq_tile == 0) else S     # query-row tile
    nqt = S // ts
    kt = next((t for t in (512, 256, 128) if S % t == 0 and t < S), S)  # K/V tile
    n_kt = S // kt

    cdt = jnp.float32 if precise else jnp.bfloat16

    # split the fused QKV weight: Q projected per query tile, K/V once per row
    wq = params["wqkv"][:, :D].astype(cdt)
    wkv = params["wqkv"][:, D:].astype(cdt)
    bq = params["bqkv"][:, :D]
    bkv = params["bqkv"][:, D:]
    wout = params["wout"].astype(cdt)
    w1 = params["w1"].astype(cdt)
    w2 = params["w2"].astype(cdt)

    kernel = functools.partial(encoder_block_kernel,
                               num_heads=num_heads, precise=precise)
    vmem_limit = _vmem_limit_bytes()

    def build_and_call(single_buffer):
        def w_spec(shape):
            if single_buffer:
                return pl.BlockSpec(shape, lambda b, s: (0, 0),
                                    pipeline_mode=pl.Buffered(1))
            return pl.BlockSpec(shape, lambda b, s: (0, 0))

        in_specs = [
            pl.BlockSpec((1, S, D), lambda b, s: (b, 0, 0)),   # x: one DMA per b
            w_spec((D, D)), w_spec((1, D)),                    # Wq, bq
            w_spec((D, 2 * D)), w_spec((1, 2 * D)),            # Wkv, bkv
            w_spec((D, D)), w_spec((1, D)),                    # Wout, bout
            w_spec((1, D)), w_spec((1, D)),                    # ln1 w/b
            w_spec((D, dff)), w_spec((1, dff)),                # FFN W1, b1
            w_spec((dff, D)), w_spec((1, D)),                  # FFN W2, b2
            w_spec((1, D)), w_spec((1, D)),                    # ln2 w/b
        ]
        return pl.pallas_call(
            kernel,
            out_shape=jax.ShapeDtypeStruct((B, S, D), jnp.float32),
            grid=(B, nqt),
            in_specs=in_specs,
            out_specs=pl.BlockSpec((1, ts, D), lambda b, s: (b, s, 0)),
            scratch_shapes=[
                pltpu.VMEM((n_kt, num_heads, kt, hd), cdt),    # K cache (per b)
                pltpu.VMEM((n_kt, num_heads, kt, hd), cdt),    # V cache (per b)
            ],
            compiler_params=pltpu.CompilerParams(
                # s axis must be "arbitrary": the K/V scratch persists across it.
                dimension_semantics=("parallel", "arbitrary"),
                vmem_limit_bytes=vmem_limit,
            ),
        )(x, wq, bq, wkv, bkv, wout, params["bout"],
          params["ln1w"], params["ln1b"], w1, params["b1"], w2, params["b2"],
          params["ln2w"], params["ln2b"])

    if single_buffer_weights:
        try:
            return build_and_call(True)
        except Exception:
            # TODO(synk): remove fallback once pl.Buffered(1) single-buffering of
            # constant-index weights is verified on all target chip generations.
            pass
    return build_and_call(False)


def transformer_encoder(x, layer_params, num_heads, **kw):
    # TODO(synk): fuse layers / bf16 inter-layer activations with cross-call
    # weight prefetch; kept as separate f32 calls for layer-by-layer fidelity.
    for p in layer_params:
        x = encoder_block(x, p, num_heads, **kw)
    return x


# --------------------- pure-JAX reference (spec-faithful) ---------------------
def ref_block(x, p, num_heads):
    B, S, D = x.shape
    hd = D // num_heads
    qkv = x @ p["wqkv"] + p["bqkv"][0]
    q, k, v = jnp.split(qkv, 3, axis=-1)

    def heads(t):
        return t.reshape(B, S, num_heads, hd).transpose(0, 2, 1, 3)

    q, k, v = heads(q), heads(k), heads(v)
    scores = jnp.einsum("bhqd,bhkd->bhqk", q, k) / math.sqrt(hd)
    attn = jax.nn.softmax(scores, axis=-1)
    ctx = jnp.einsum("bhqk,bhkd->bhqd", attn, v).transpose(0, 2, 1, 3).reshape(B, S, D)
    attn_out = ctx @ p["wout"] + p["bout"][0]
    y = _layer_norm(x + attn_out, p["ln1w"][0], p["ln1b"][0])
    h1 = _gelu_ref(y @ p["w1"] + p["b1"][0])
    ffn_out = h1 @ p["w2"] + p["b2"][0]
    return _layer_norm(y + ffn_out, p["ln2w"][0], p["ln2b"][0])


def ref_encoder(x, layer_params, num_heads):
    for p in layer_params:
        x = ref_block(x, p, num_heads)
    return x


# --------------------- parameter init (deterministic) ---------------------
def init_layer_params(key, d_model):
    dff = 4 * d_model
    ks = jax.random.split(key, 8)
    s = 0.05
    return {
        # weights stored pre-transposed as (in, out) so the kernel does x @ W
        "wqkv": s * jax.random.normal(ks[0], (d_model, 3 * d_model), jnp.float32),
        "bqkv": s * jax.random.normal(ks[1], (1, 3 * d_model), jnp.float32),
        "wout": s * jax.random.normal(ks[2], (d_model, d_model), jnp.float32),
        "bout": s * jax.random.normal(ks[3], (1, d_model), jnp.float32),
        "ln1w": jnp.ones((1, d_model), jnp.float32),
        "ln1b": jnp.zeros((1, d_model), jnp.float32),
        "w1":   s * jax.random.normal(ks[4], (d_model, dff), jnp.float32),
        "b1":   s * jax.random.normal(ks[5], (1, dff), jnp.float32),
        "w2":   s * jax.random.normal(ks[6], (dff, d_model), jnp.float32),
        "b2":   s * jax.random.normal(ks[7], (1, d_model), jnp.float32),
        "ln2w": jnp.ones((1, d_model), jnp.float32),
        "ln2b": jnp.zeros((1, d_model), jnp.float32),
    }


if __name__ == "__main__":
    # --- test 1: module-spec small shapes (stack of 2 EncoderBlocks) ---
    num_layers, d_model, num_heads, batch, seq = 2, 32, 4, 2, 8
    key = jax.random.PRNGKey(0)
    kx, *kls = jax.random.split(key, num_layers + 1)
    x = jax.random.normal(kx, (batch, seq, d_model), jnp.float32)
    layer_params = [init_layer_params(k, d_model) for k in kls]

    out = jax.block_until_ready(transformer_encoder(x, layer_params, num_heads))
    ref = ref_encoder(x, layer_params, num_heads)
    assert out.shape == (batch, seq, d_model)
    assert bool(jnp.all(jnp.isfinite(out)))
    # bf16 MXU operands + approx softmax reciprocal => loose tolerance; the
    # strict structural check is the f32 `precise=True` run below.
    assert jnp.allclose(out, ref, rtol=3e-2, atol=3e-2), "fast path mismatch (small)"

    # --- test 2: (8,128)-aligned shapes; exercises query tiling, the flash
    # K/V loop (n_kt > 1) and KV-cache reuse across query tiles ---
    d_model2, num_heads2, batch2, seq2 = 128, 8, 2, 256
    k2x, k2p = jax.random.split(jax.random.PRNGKey(1))
    x2 = jax.random.normal(k2x, (batch2, seq2, d_model2), jnp.float32)
    p2 = [init_layer_params(k2p, d_model2)]
    ref2 = ref_encoder(x2, p2, num_heads2)

    out2_precise = jax.block_until_ready(
        transformer_encoder(x2, p2, num_heads2, precise=True))
    assert jnp.allclose(out2_precise, ref2, rtol=1e-3, atol=1e-3), \
        "precise path mismatch (aligned)"

    out2_fast = jax.block_until_ready(transformer_encoder(x2, p2, num_heads2))
    assert bool(jnp.all(jnp.isfinite(out2_fast)))
    assert float(jnp.max(jnp.abs(out2_fast - ref2))) < 1e-1, \
        "fast path mismatch (aligned)"

    print("KERNEL_OK")
</pallas_src>

<mosaic_0001>
module attributes {stable_mosaic.version = 11 : i64} {
  func.func @encoder_block_kernel(%arg0: i32, %arg1: i32, %arg2: memref<1x8x32xf32, #tpu.memory_space<vmem>>, %arg3: memref<32x32xbf16, #tpu.memory_space<vmem>>, %arg4: memref<1x32xf32, #tpu.memory_space<vmem>>, %arg5: memref<32x64xbf16, #tpu.memory_space<vmem>>, %arg6: memref<1x64xf32, #tpu.memory_space<vmem>>, %arg7: memref<32x32xbf16, #tpu.memory_space<vmem>>, %arg8: memref<1x32xf32, #tpu.memory_space<vmem>>, %arg9: memref<1x32xf32, #tpu.memory_space<vmem>>, %arg10: memref<1x32xf32, #tpu.memory_space<vmem>>, %arg11: memref<32x128xbf16, #tpu.memory_space<vmem>>, %arg12: memref<1x128xf32, #tpu.memory_space<vmem>>, %arg13: memref<128x32xbf16, #tpu.memory_space<vmem>>, %arg14: memref<1x32xf32, #tpu.memory_space<vmem>>, %arg15: memref<1x32xf32, #tpu.memory_space<vmem>>, %arg16: memref<1x32xf32, #tpu.memory_space<vmem>>, %arg17: memref<1x8x32xf32, #tpu.memory_space<vmem>>, %arg18: memref<1x4x8x8xbf16, #tpu.memory_space<vmem>>, %arg19: memref<1x4x8x8xbf16, #tpu.memory_space<vmem>>) attributes {dimension_semantics = [#tpu.dimension_semantics<parallel>, #tpu.dimension_semantics<arbitrary>], iteration_bounds = array<i64: 2, 1>, scalar_prefetch = 0 : i64, scratch_operands = 2 : i64, tpu.core_type = #tpu.core_type<tc>, window_params = [{transform_indices = @transform_0, window_bounds = array<i64: 1, 8, 32>}, {pipeline_mode = #tpu.pipeline_mode<synchronous>, transform_indices = @transform_1, window_bounds = array<i64: 32, 32>}, {pipeline_mode = #tpu.pipeline_mode<synchronous>, transform_indices = @transform_2, window_bounds = array<i64: 1, 32>}, {pipeline_mode = #tpu.pipeline_mode<synchronous>, transform_indices = @transform_3, window_bounds = array<i64: 32, 64>}, {pipeline_mode = #tpu.pipeline_mode<synchronous>, transform_indices = @transform_4, window_bounds = array<i64: 1, 64>}, {pipeline_mode = #tpu.pipeline_mode<synchronous>, transform_indices = @transform_5, window_bounds = array<i64: 32, 32>}, {pipeline_mode = #tpu.pipeline_mode<synchronous>, transform_indices = @transform_6, window_bounds = array<i64: 1, 32>}, {pipeline_mode = #tpu.pipeline_mode<synchronous>, transform_indices = @transform_7, window_bounds = array<i64: 1, 32>}, {pipeline_mode = #tpu.pipeline_mode<synchronous>, transform_indices = @transform_8, window_bounds = array<i64: 1, 32>}, {pipeline_mode = #tpu.pipeline_mode<synchronous>, transform_indices = @transform_9, window_bounds = array<i64: 32, 128>}, {pipeline_mode = #tpu.pipeline_mode<synchronous>, transform_indices = @transform_10, window_bounds = array<i64: 1, 128>}, {pipeline_mode = #tpu.pipeline_mode<synchronous>, transform_indices = @transform_11, window_bounds = array<i64: 128, 32>}, {pipeline_mode = #tpu.pipeline_mode<synchronous>, transform_indices = @transform_12, window_bounds = array<i64: 1, 32>}, {pipeline_mode = #tpu.pipeline_mode<synchronous>, transform_indices = @transform_13, window_bounds = array<i64: 1, 32>}, {pipeline_mode = #tpu.pipeline_mode<synchronous>, transform_indices = @transform_14, window_bounds = array<i64: 1, 32>}, {transform_indices = @transform_15, window_bounds = array<i64: 1, 8, 32>}]} {
    %c0_i32 = arith.constant 0 : i32
    %0 = arith.cmpi eq, %arg1, %c0_i32 : i32
    %1 = arith.extui %0 : i1 to i32
    %c0_i32_0 = arith.constant 0 : i32
    %2 = arith.cmpi ne, %1, %c0_i32_0 : i32
    scf.if %2 {
      %c0_73 = arith.constant 0 : index
      %c0_74 = arith.constant 0 : index
      %c0_75 = arith.constant 0 : index
      %174 = vector.load %arg2[%c0_73, %c0_74, %c0_75] : memref<1x8x32xf32, #tpu.memory_space<vmem>>, vector<1x8x32xf32>
      %175 = vector.shape_cast %174 : vector<1x8x32xf32> to vector<8x32xf32>
      %176 = arith.truncf %175 : vector<8x32xf32> to vector<8x32xbf16>
      %c0_76 = arith.constant 0 : index
      %c0_77 = arith.constant 0 : index
      %177 = vector.load %arg5[%c0_76, %c0_77] : memref<32x64xbf16, #tpu.memory_space<vmem>>, vector<32x64xbf16>
      %cst_78 = arith.constant dense<0.000000e+00> : vector<8x64xf32>
      %178 = tpu.matmul %176, %177, %cst_78 {dimension_numbers = #tpu.dot_dimension_numbers<[1], [0], [0], [1], [0, 0, 1, 1], [], []>} : vector<8x32xbf16>, vector<32x64xbf16>, vector<8x64xf32> -> vector<8x64xf32>
      %c0_79 = arith.constant 0 : index
      %c0_80 = arith.constant 0 : index
      %179 = vector.load %arg6[%c0_79, %c0_80] : memref<1x64xf32, #tpu.memory_space<vmem>>, vector<1x64xf32>
      %180 = vector.broadcast %179 : vector<1x64xf32> to vector<8x64xf32>
      %181 = arith.addf %178, %180 : vector<8x64xf32>
      %182 = vector.extract_strided_slice %181 {offsets = [0, 0], sizes = [8, 8], strides = [1, 1]} : vector<8x64xf32> to vector<8x8xf32>
      %183 = arith.truncf %182 : vector<8x8xf32> to vector<8x8xbf16>
      %c0_81 = arith.constant 0 : index
      %c0_82 = arith.constant 0 : index
      %c0_83 = arith.constant 0 : index
      %c0_84 = arith.constant 0 : index
      %184 = vector.load %arg18[%c0_81, %c0_82, %c0_83, %c0_84] : memref<1x4x8x8xbf16, #tpu.memory_space<vmem>>, vector<1x1x8x8xbf16>
      %185 = vector.shape_cast %184 : vector<1x1x8x8xbf16> to vector<8x8xbf16>
      %186 = vector.shape_cast %183 : vector<8x8xbf16> to vector<1x1x8x8xbf16>
      tpu.vector_store %arg18[%c0_81, %c0_82, %c0_83, %c0_84], %186 {strides = array<i32>} : memref<1x4x8x8xbf16, #tpu.memory_space<vmem>>, vector<1x1x8x8xbf16>,
      %187 = vector.extract_strided_slice %181 {offsets = [0, 32], sizes = [8, 8], strides = [1, 1]} : vector<8x64xf32> to vector<8x8xf32>
      %188 = arith.truncf %187 : vector<8x8xf32> to vector<8x8xbf16>
      %c0_85 = arith.constant 0 : index
      %c0_86 = arith.constant 0 : index
      %c0_87 = arith.constant 0 : index
      %c0_88 = arith.constant 0 : index
      %189 = vector.load %arg19[%c0_85, %c0_86, %c0_87, %c0_88] : memref<1x4x8x8xbf16, #tpu.memory_space<vmem>>, vector<1x1x8x8xbf16>
      %190 = vector.shape_cast %189 : vector<1x1x8x8xbf16> to vector<8x8xbf16>
      %191 = vector.shape_cast %188 : vector<8x8xbf16> to vector<1x1x8x8xbf16>
      tpu.vector_store %arg19[%c0_85, %c0_86, %c0_87, %c0_88], %191 {strides = array<i32>} : memref<1x4x8x8xbf16, #tpu.memory_space<vmem>>, vector<1x1x8x8xbf16>,
      %192 = vector.extract_strided_slice %181 {offsets = [0, 8], sizes = [8, 8], strides = [1, 1]} : vector<8x64xf32> to vector<8x8xf32>
      %193 = arith.truncf %192 : vector<8x8xf32> to vector<8x8xbf16>
      %c0_89 = arith.constant 0 : index
      %c1 = arith.constant 1 : index
      %c0_90 = arith.constant 0 : index
      %c0_91 = arith.constant 0 : index
      %194 = vector.load %arg18[%c0_89, %c1, %c0_90, %c0_91] : memref<1x4x8x8xbf16, #tpu.memory_space<vmem>>, vector<1x1x8x8xbf16>
      %195 = vector.shape_cast %194 : vector<1x1x8x8xbf16> to vector<8x8xbf16>
      %196 = vector.shape_cast %193 : vector<8x8xbf16> to vector<1x1x8x8xbf16>
      tpu.vector_store %arg18[%c0_89, %c1, %c0_90, %c0_91], %196 {strides = array<i32>} : memref<1x4x8x8xbf16, #tpu.memory_space<vmem>>, vector<1x1x8x8xbf16>,
      %197 = vector.extract_strided_slice %181 {offsets = [0, 40], sizes = [8, 8], strides = [1, 1]} : vector<8x64xf32> to vector<8x8xf32>
      %198 = arith.truncf %197 : vector<8x8xf32> to vector<8x8xbf16>
      %c0_92 = arith.constant 0 : index
      %c1_93 = arith.constant 1 : index
      %c0_94 = arith.constant 0 : index
      %c0_95 = arith.constant 0 : index
      %199 = vector.load %arg19[%c0_92, %c1_93, %c0_94, %c0_95] : memref<1x4x8x8xbf16, #tpu.memory_space<vmem>>, vector<1x1x8x8xbf16>
      %200 = vector.shape_cast %199 : vector<1x1x8x8xbf16> to vector<8x8xbf16>
      %201 = vector.shape_cast %198 : vector<8x8xbf16> to vector<1x1x8x8xbf16>
      tpu.vector_store %arg19[%c0_92, %c1_93, %c0_94, %c0_95], %201 {strides = array<i32>} : memref<1x4x8x8xbf16, #tpu.memory_space<vmem>>, vector<1x1x8x8xbf16>,
      %202 = vector.extract_strided_slice %181 {offsets = [0, 16], sizes = [8, 8], strides = [1, 1]} : vector<8x64xf32> to vector<8x8xf32>
      %203 = arith.truncf %202 : vector<8x8xf32> to vector<8x8xbf16>
      %c0_96 = arith.constant 0 : index
      %c2 = arith.constant 2 : index
      %c0_97 = arith.constant 0 : index
      %c0_98 = arith.constant 0 : index
      %204 = vector.load %arg18[%c0_96, %c2, %c0_97, %c0_98] : memref<1x4x8x8xbf16, #tpu.memory_space<vmem>>, vector<1x1x8x8xbf16>
      %205 = vector.shape_cast %204 : vector<1x1x8x8xbf16> to vector<8x8xbf16>
      %206 = vector.shape_cast %203 : vector<8x8xbf16> to vector<1x1x8x8xbf16>
      tpu.vector_store %arg18[%c0_96, %c2, %c0_97, %c0_98], %206 {strides = array<i32>} : memref<1x4x8x8xbf16, #tpu.memory_space<vmem>>, vector<1x1x8x8xbf16>,
      %207 = vector.extract_strided_slice %181 {offsets = [0, 48], sizes = [8, 8], strides = [1, 1]} : vector<8x64xf32> to vector<8x8xf32>
      %208 = arith.truncf %207 : vector<8x8xf32> to vector<8x8xbf16>
      %c0_99 = arith.constant 0 : index
      %c2_100 = arith.constant 2 : index
      %c0_101 = arith.constant 0 : index
      %c0_102 = arith.constant 0 : index
      %209 = vector.load %arg19[%c0_99, %c2_100, %c0_101, %c0_102] : memref<1x4x8x8xbf16, #tpu.memory_space<vmem>>, vector<1x1x8x8xbf16>
      %210 = vector.shape_cast %209 : vector<1x1x8x8xbf16> to vector<8x8xbf16>
      %211 = vector.shape_cast %208 : vector<8x8xbf16> to vector<1x1x8x8xbf16>
      tpu.vector_store %arg19[%c0_99, %c2_100, %c0_101, %c0_102], %211 {strides = array<i32>} : memref<1x4x8x8xbf16, #tpu.memory_space<vmem>>, vector<1x1x8x8xbf16>,
      %212 = vector.extract_strided_slice %181 {offsets = [0, 24], sizes = [8, 8], strides = [1, 1]} : vector<8x64xf32> to vector<8x8xf32>
      %213 = arith.truncf %212 : vector<8x8xf32> to vector<8x8xbf16>
      %c0_103 = arith.constant 0 : index
      %c3 = arith.constant 3 : index
      %c0_104 = arith.constant 0 : index
      %c0_105 = arith.constant 0 : index
      %214 = vector.load %arg18[%c0_103, %c3, %c0_104, %c0_105] : memref<1x4x8x8xbf16, #tpu.memory_space<vmem>>, vector<1x1x8x8xbf16>
      %215 = vector.shape_cast %214 : vector<1x1x8x8xbf16> to vector<8x8xbf16>
      %216 = vector.shape_cast %213 : vector<8x8xbf16> to vector<1x1x8x8xbf16>
      tpu.vector_store %arg18[%c0_103, %c3, %c0_104, %c0_105], %216 {strides = array<i32>} : memref<1x4x8x8xbf16, #tpu.memory_space<vmem>>, vector<1x1x8x8xbf16>,
      %217 = vector.extract_strided_slice %181 {offsets = [0, 56], sizes = [8, 8], strides = [1, 1]} : vector<8x64xf32> to vector<8x8xf32>
      %218 = arith.truncf %217 : vector<8x8xf32> to vector<8x8xbf16>
      %c0_106 = arith.constant 0 : index
      %c3_107 = arith.constant 3 : index
      %c0_108 = arith.constant 0 : index
      %c0_109 = arith.constant 0 : index
      %219 = vector.load %arg19[%c0_106, %c3_107, %c0_108, %c0_109] : memref<1x4x8x8xbf16, #tpu.memory_space<vmem>>, vector<1x1x8x8xbf16>
      %220 = vector.shape_cast %219 : vector<1x1x8x8xbf16> to vector<8x8xbf16>
      %221 = vector.shape_cast %218 : vector<8x8xbf16> to vector<1x1x8x8xbf16>
      tpu.vector_store %arg19[%c0_106, %c3_107, %c0_108, %c0_109], %221 {strides = array<i32>} : memref<1x4x8x8xbf16, #tpu.memory_space<vmem>>, vector<1x1x8x8xbf16>,
    } else {
    }
    %c8_i32 = arith.constant 8 : i32
    %3 = arith.muli %arg1, %c8_i32 : i32
    %4 = tpu.assume_multiple %3, 8 : i32
    %c0 = arith.constant 0 : index
    %5 = arith.index_cast %4 : i32 to index
    %c0_1 = arith.constant 0 : index
    %6 = vector.load %arg2[%c0, %5, %c0_1] : memref<1x8x32xf32, #tpu.memory_space<vmem>>, vector<1x8x32xf32>
    %7 = vector.shape_cast %6 : vector<1x8x32xf32> to vector<8x32xf32>
    %8 = arith.truncf %7 : vector<8x32xf32> to vector<8x32xbf16>
    %c0_2 = arith.constant 0 : index
    %c0_3 = arith.constant 0 : index
    %9 = vector.load %arg3[%c0_2, %c0_3] : memref<32x32xbf16, #tpu.memory_space<vmem>>, vector<32x32xbf16>
    %cst = arith.constant dense<0.000000e+00> : vector<8x32xf32>
    %10 = tpu.matmul %8, %9, %cst {dimension_numbers = #tpu.dot_dimension_numbers<[1], [0], [0], [1], [0, 0, 1, 1], [], []>} : vector<8x32xbf16>, vector<32x32xbf16>, vector<8x32xf32> -> vector<8x32xf32>
    %c0_4 = arith.constant 0 : index
    %c0_5 = arith.constant 0 : index
    %11 = vector.load %arg4[%c0_4, %c0_5] : memref<1x32xf32, #tpu.memory_space<vmem>>, vector<1x32xf32>
    %12 = vector.broadcast %11 : vector<1x32xf32> to vector<8x32xf32>
    %13 = arith.addf %10, %12 : vector<8x32xf32>
    %cst_6 = arith.constant 0.353553385 : f32
    %14 = vector.broadcast %cst_6 : f32 to vector<8x32xf32>
    %15 = arith.mulf %13, %14 : vector<8x32xf32>
    %16 = arith.truncf %15 : vector<8x32xf32> to vector<8x32xbf16>
    %17 = vector.extract_strided_slice %16 {offsets = [0, 0], sizes = [8, 8], strides = [1, 1]} : vector<8x32xbf16> to vector<8x8xbf16>
    %18 = vector.extract_strided_slice %16 {offsets = [0, 8], sizes = [8, 8], strides = [1, 1]} : vector<8x32xbf16> to vector<8x8xbf16>
    %19 = vector.extract_strided_slice %16 {offsets = [0, 16], sizes = [8, 8], strides = [1, 1]} : vector<8x32xbf16> to vector<8x8xbf16>
    %20 = vector.extract_strided_slice %16 {offsets = [0, 24], sizes = [8, 8], strides = [1, 1]} : vector<8x32xbf16> to vector<8x8xbf16>
    %21 = vector.shape_cast %17 : vector<8x8xbf16> to vector<1x8x8xbf16>
    %22 = vector.shape_cast %18 : vector<8x8xbf16> to vector<1x8x8xbf16>
    %23 = vector.shape_cast %19 : vector<8x8xbf16> to vector<1x8x8xbf16>
    %24 = vector.shape_cast %20 : vector<8x8xbf16> to vector<1x8x8xbf16>
    %25 = tpu.concatenate %21, %22, %23, %24 in 0 : vector<1x8x8xbf16>, vector<1x8x8xbf16>, vector<1x8x8xbf16>, vector<1x8x8xbf16> -> vector<4x8x8xbf16>
    %cst_7 = arith.constant 0xFF800000 : f32
    %26 = vector.broadcast %cst_7 : f32 to vector<4x8x1xf32>
    %cst_8 = arith.constant 0.000000e+00 : f32
    %27 = vector.broadcast %cst_8 : f32 to vector<4x8x1xf32>
    %cst_9 = arith.constant 0.000000e+00 : f32
    %28 = vector.broadcast %cst_9 : f32 to vector<4x8x8xf32>
    %c0_10 = arith.constant 0 : index
    %c0_11 = arith.constant 0 : index
    %c0_12 = arith.constant 0 : index
    %c0_13 = arith.constant 0 : index
    %29 = vector.load %arg18[%c0_10, %c0_11, %c0_12, %c0_13] : memref<1x4x8x8xbf16, #tpu.memory_space<vmem>>, vector<1x4x8x8xbf16>
    %30 = vector.shape_cast %29 : vector<1x4x8x8xbf16> to vector<4x8x8xbf16>
    %c0_14 = arith.constant 0 : index
    %c0_15 = arith.constant 0 : index
    %c0_16 = arith.constant 0 : index
    %c0_17 = arith.constant 0 : index
    %31 = vector.load %arg19[%c0_14, %c0_15, %c0_16, %c0_17] : memref<1x4x8x8xbf16, #tpu.memory_space<vmem>>, vector<1x4x8x8xbf16>
    %32 = vector.shape_cast %31 : vector<1x4x8x8xbf16> to vector<4x8x8xbf16>
    "tpu.trace_start"() <{level = 10 : i32, message = "hqd,hkd->hqk"}> : () -> ()
    %cst_18 = arith.constant dense<0.000000e+00> : vector<4x8x8xf32>
    %33 = tpu.matmul %25, %30, %cst_18 {dimension_numbers = #tpu.dot_dimension_numbers<[2], [2], [1], [1], [0, 0, 0, 1, 1, 1], [0], [0]>} : vector<4x8x8xbf16>, vector<4x8x8xbf16>, vector<4x8x8xf32> -> vector<4x8x8xf32>
    "tpu.trace_stop"() : () -> ()
    %cst_19 = arith.constant dense<0xFF800000> : vector<4x8xf32>
    %34 = vector.multi_reduction <maximumf>, %33, %cst_19 [2] : vector<4x8x8xf32> to vector<4x8xf32>
    %35 = vector.shape_cast %34 : vector<4x8xf32> to vector<4x8x1xf32>
    %36 = arith.maximumf %26, %35 : vector<4x8x1xf32>
    %37 = arith.subf %26, %36 : vector<4x8x1xf32>
    %38 = math.exp %37 : vector<4x8x1xf32>
    %39 = vector.broadcast %36 : vector<4x8x1xf32> to vector<4x8x8xf32>
    %40 = arith.subf %33, %39 : vector<4x8x8xf32>
    %41 = math.exp %40 : vector<4x8x8xf32>
    %42 = arith.mulf %38, %27 : vector<4x8x1xf32>
    %cst_20 = arith.constant dense<0.000000e+00> : vector<4x8xf32>
    %43 = vector.multi_reduction <add>, %41, %cst_20 [2] : vector<4x8x8xf32> to vector<4x8xf32>
    %44 = vector.shape_cast %43 : vector<4x8xf32> to vector<4x8x1xf32>
    %45 = arith.addf %42, %44 : vector<4x8x1xf32>
    %46 = vector.broadcast %38 : vector<4x8x1xf32> to vector<4x8x8xf32>
    %47 = arith.mulf %46, %28 : vector<4x8x8xf32>
    %48 = arith.truncf %41 : vector<4x8x8xf32> to vector<4x8x8xbf16>
    "tpu.trace_start"() <{level = 10 : i32, message = "hqk,hkd->hqd"}> : () -> ()
    %cst_21 = arith.constant dense<0.000000e+00> : vector<4x8x8xf32>
    %49 = tpu.matmul %48, %32, %cst_21 {dimension_numbers = #tpu.dot_dimension_numbers<[2], [1], [1], [2], [0, 0, 0, 1, 1, 2], [0], [0]>} : vector<4x8x8xbf16>, vector<4x8x8xbf16>, vector<4x8x8xf32> -> vector<4x8x8xf32>
    "tpu.trace_stop"() : () -> ()
    %50 = arith.addf %47, %49 : vector<4x8x8xf32>
    %51 = tpu.reciprocal %45 {approx = true} : vector<4x8x1xf32> -> vector<4x8x1xf32>
    %52 = vector.broadcast %51 : vector<4x8x1xf32> to vector<4x8x8xf32>
    %53 = arith.mulf %50, %52 : vector<4x8x8xf32>
    %54 = arith.truncf %53 : vector<4x8x8xf32> to vector<4x8x8xbf16>
    %55 = vector.extract_strided_slice %54 {offsets = [0, 0, 0], sizes = [1, 8, 8], strides = [1, 1, 1]} : vector<4x8x8xbf16> to vector<1x8x8xbf16>
    %56 = vector.shape_cast %55 : vector<1x8x8xbf16> to vector<8x8xbf16>
    %57 = vector.extract_strided_slice %54 {offsets = [1, 0, 0], sizes = [1, 8, 8], strides = [1, 1, 1]} : vector<4x8x8xbf16> to vector<1x8x8xbf16>
    %58 = vector.shape_cast %57 : vector<1x8x8xbf16> to vector<8x8xbf16>
    %59 = vector.extract_strided_slice %54 {offsets = [2, 0, 0], sizes = [1, 8, 8], strides = [1, 1, 1]} : vector<4x8x8xbf16> to vector<1x8x8xbf16>
    %60 = vector.shape_cast %59 : vector<1x8x8xbf16> to vector<8x8xbf16>
    %61 = vector.extract_strided_slice %54 {offsets = [3, 0, 0], sizes = [1, 8, 8], strides = [1, 1, 1]} : vector<4x8x8xbf16> to vector<1x8x8xbf16>
    %62 = vector.shape_cast %61 : vector<1x8x8xbf16> to vector<8x8xbf16>
    %63 = tpu.concatenate %56, %58, %60, %62 in 1 : vector<8x8xbf16>, vector<8x8xbf16>, vector<8x8xbf16>, vector<8x8xbf16> -> vector<8x32xbf16>
    %c0_22 = arith.constant 0 : index
    %c0_23 = arith.constant 0 : index
    %64 = vector.load %arg7[%c0_22, %c0_23] : memref<32x32xbf16, #tpu.memory_space<vmem>>, vector<32x32xbf16>
    %cst_24 = arith.constant dense<0.000000e+00> : vector<8x32xf32>
    %65 = tpu.matmul %63, %64, %cst_24 {dimension_numbers = #tpu.dot_dimension_numbers<[1], [0], [0], [1], [0, 0, 1, 1], [], []>} : vector<8x32xbf16>, vector<32x32xbf16>, vector<8x32xf32> -> vector<8x32xf32>
    %c0_25 = arith.constant 0 : index
    %c0_26 = arith.constant 0 : index
    %66 = vector.load %arg8[%c0_25, %c0_26] : memref<1x32xf32, #tpu.memory_space<vmem>>, vector<1x32xf32>
    %67 = vector.broadcast %66 : vector<1x32xf32> to vector<8x32xf32>
    %68 = arith.addf %65, %67 : vector<8x32xf32>
    %69 = arith.addf %7, %68 : vector<8x32xf32>
    %c0_27 = arith.constant 0 : index
    %c0_28 = arith.constant 0 : index
    %70 = vector.load %arg9[%c0_27, %c0_28] : memref<1x32xf32, #tpu.memory_space<vmem>>, vector<1x32xf32>
    %c0_29 = arith.constant 0 : index
    %c0_30 = arith.constant 0 : index
    %71 = vector.load %arg10[%c0_29, %c0_30] : memref<1x32xf32, #tpu.memory_space<vmem>>, vector<1x32xf32>
    %cst_31 = arith.constant dense<0.000000e+00> : vector<8xf32>
    %72 = vector.multi_reduction <add>, %69, %cst_31 [1] : vector<8x32xf32> to vector<8xf32>
    %73 = vector.shape_cast %72 : vector<8xf32> to vector<8x1xf32>
    %cst_32 = arith.constant 3.200000e+01 : f32
    %74 = vector.broadcast %cst_32 : f32 to vector<8x1xf32>
    %75 = arith.divf %73, %74 : vector<8x1xf32>
    %76 = vector.broadcast %75 : vector<8x1xf32> to vector<8x32xf32>
    %77 = arith.subf %69, %76 : vector<8x32xf32>
    %78 = arith.mulf %77, %77 : vector<8x32xf32>
    %cst_33 = arith.constant dense<0.000000e+00> : vector<8xf32>
    %79 = vector.multi_reduction <add>, %78, %cst_33 [1] : vector<8x32xf32> to vector<8xf32>
    %80 = vector.shape_cast %79 : vector<8xf32> to vector<8x1xf32>
    %cst_34 = arith.constant 3.200000e+01 : f32
    %81 = vector.broadcast %cst_34 : f32 to vector<8x1xf32>
    %82 = arith.divf %80, %81 : vector<8x1xf32>
    %83 = vector.broadcast %75 : vector<8x1xf32> to vector<8x32xf32>
    %84 = arith.subf %69, %83 : vector<8x32xf32>
    %cst_35 = arith.constant 9.99999974E-6 : f32
    %85 = vector.broadcast %cst_35 : f32 to vector<8x1xf32>
    %86 = arith.addf %82, %85 : vector<8x1xf32>
    %87 = math.rsqrt %86 : vector<8x1xf32>
    %88 = vector.broadcast %87 : vector<8x1xf32> to vector<8x32xf32>
    %89 = arith.mulf %84, %88 : vector<8x32xf32>
    %90 = vector.broadcast %70 : vector<1x32xf32> to vector<8x32xf32>
    %91 = arith.mulf %89, %90 : vector<8x32xf32>
    %92 = vector.broadcast %71 : vector<1x32xf32> to vector<8x32xf32>
    %93 = arith.addf %91, %92 : vector<8x32xf32>
    %94 = arith.truncf %93 : vector<8x32xf32> to vector<8x32xbf16>
    %c0_36 = arith.constant 0 : index
    %c0_37 = arith.constant 0 : index
    %95 = vector.load %arg11[%c0_36, %c0_37] : memref<32x128xbf16, #tpu.memory_space<vmem>>, vector<32x128xbf16>
    %cst_38 = arith.constant dense<0.000000e+00> : vector<8x128xf32>
    %96 = tpu.matmul %94, %95, %cst_38 {dimension_numbers = #tpu.dot_dimension_numbers<[1], [0], [0], [1], [0, 0, 1, 1], [], []>} : vector<8x32xbf16>, vector<32x128xbf16>, vector<8x128xf32> -> vector<8x128xf32>
    %c0_39 = arith.constant 0 : index
    %c0_40 = arith.constant 0 : index
    %97 = vector.load %arg12[%c0_39, %c0_40] : memref<1x128xf32, #tpu.memory_space<vmem>>, vector<1x128xf32>
    %98 = vector.broadcast %97 : vector<1x128xf32> to vector<8x128xf32>
    %99 = arith.addf %96, %98 : vector<8x128xf32>
    %cst_41 = arith.constant 5.000000e-01 : f32
    %100 = vector.broadcast %cst_41 : f32 to vector<8x128xf32>
    %101 = arith.mulf %100, %99 : vector<8x128xf32>
    %cst_42 = arith.constant 0.707106769 : f32
    %102 = vector.broadcast %cst_42 : f32 to vector<8x128xf32>
    %103 = arith.mulf %99, %102 : vector<8x128xf32>
    %104 = math.absf %103 : vector<8x128xf32>
    %cst_43 = arith.constant 0.327591091 : f32
    %105 = vector.broadcast %cst_43 : f32 to vector<8x128xf32>
    %106 = arith.mulf %105, %104 : vector<8x128xf32>
    %cst_44 = arith.constant 1.000000e+00 : f32
    %107 = vector.broadcast %cst_44 : f32 to vector<8x128xf32>
    %108 = arith.addf %107, %106 : vector<8x128xf32>
    %cst_45 = arith.constant 1.000000e+00 : f32
    %109 = vector.broadcast %cst_45 : f32 to vector<8x128xf32>
    %110 = arith.divf %109, %108 : vector<8x128xf32>
    %cst_46 = arith.constant 1.06140542 : f32
    %111 = vector.broadcast %cst_46 : f32 to vector<8x128xf32>
    %112 = arith.mulf %111, %110 : vector<8x128xf32>
    %cst_47 = arith.constant -1.45315206 : f32
    %113 = vector.broadcast %cst_47 : f32 to vector<8x128xf32>
    %114 = arith.addf %112, %113 : vector<8x128xf32>
    %115 = arith.mulf %114, %110 : vector<8x128xf32>
    %cst_48 = arith.constant 1.42141378 : f32
    %116 = vector.broadcast %cst_48 : f32 to vector<8x128xf32>
    %117 = arith.addf %115, %116 : vector<8x128xf32>
    %118 = arith.mulf %117, %110 : vector<8x128xf32>
    %cst_49 = arith.constant -0.284496725 : f32
    %119 = vector.broadcast %cst_49 : f32 to vector<8x128xf32>
    %120 = arith.addf %118, %119 : vector<8x128xf32>
    %121 = arith.mulf %120, %110 : vector<8x128xf32>
    %cst_50 = arith.constant 0.254829586 : f32
    %122 = vector.broadcast %cst_50 : f32 to vector<8x128xf32>
    %123 = arith.addf %121, %122 : vector<8x128xf32>
    %124 = arith.mulf %123, %110 : vector<8x128xf32>
    %125 = arith.mulf %104, %104 : vector<8x128xf32>
    %cst_51 = arith.constant 0.000000e+00 : f32
    %126 = vector.broadcast %cst_51 : f32 to vector<8x128xf32>
    %127 = arith.subf %126, %125 : vector<8x128xf32>
    %128 = math.exp %127 : vector<8x128xf32>
    %129 = arith.mulf %124, %128 : vector<8x128xf32>
    %cst_52 = arith.constant 1.000000e+00 : f32
    %130 = vector.broadcast %cst_52 : f32 to vector<8x128xf32>
    %131 = arith.subf %130, %129 : vector<8x128xf32>
    %cst_53 = arith.constant 0.000000e+00 : f32
    %132 = vector.broadcast %cst_53 : f32 to vector<8x128xf32>
    %133 = arith.cmpf oge, %103, %132 : vector<8x128xf32>
    %cst_54 = arith.constant 0.000000e+00 : f32
    %134 = vector.broadcast %cst_54 : f32 to vector<8x128xf32>
    %135 = arith.subf %134, %131 : vector<8x128xf32>
    %136 = arith.select %133, %131, %135 : vector<8x128xi1>, vector<8x128xf32>
    %cst_55 = arith.constant 1.000000e+00 : f32
    %137 = vector.broadcast %cst_55 : f32 to vector<8x128xf32>
    %138 = arith.addf %137, %136 : vector<8x128xf32>
    %139 = arith.mulf %101, %138 : vector<8x128xf32>
    %140 = arith.truncf %139 : vector<8x128xf32> to vector<8x128xbf16>
    %c0_56 = arith.constant 0 : index
    %c0_57 = arith.constant 0 : index
    %141 = vector.load %arg13[%c0_56, %c0_57] : memref<128x32xbf16, #tpu.memory_space<vmem>>, vector<128x32xbf16>
    %cst_58 = arith.constant dense<0.000000e+00> : vector<8x32xf32>
    %142 = tpu.matmul %140, %141, %cst_58 {dimension_numbers = #tpu.dot_dimension_numbers<[1], [0], [0], [1], [0, 0, 1, 1], [], []>} : vector<8x128xbf16>, vector<128x32xbf16>, vector<8x32xf32> -> vector<8x32xf32>
    %c0_59 = arith.constant 0 : index
    %c0_60 = arith.constant 0 : index
    %143 = vector.load %arg14[%c0_59, %c0_60] : memref<1x32xf32, #tpu.memory_space<vmem>>, vector<1x32xf32>
    %144 = vector.broadcast %143 : vector<1x32xf32> to vector<8x32xf32>
    %145 = arith.addf %142, %144 : vector<8x32xf32>
    %146 = arith.addf %93, %145 : vector<8x32xf32>
    %c0_61 = arith.constant 0 : index
    %c0_62 = arith.constant 0 : index
    %147 = vector.load %arg15[%c0_61, %c0_62] : memref<1x32xf32, #tpu.memory_space<vmem>>, vector<1x32xf32>
    %c0_63 = arith.constant 0 : index
    %c0_64 = arith.constant 0 : index
    %148 = vector.load %arg16[%c0_63, %c0_64] : memref<1x32xf32, #tpu.memory_space<vmem>>, vector<1x32xf32>
    %cst_65 = arith.constant dense<0.000000e+00> : vector<8xf32>
    %149 = vector.multi_reduction <add>, %146, %cst_65 [1] : vector<8x32xf32> to vector<8xf32>
    %150 = vector.shape_cast %149 : vector<8xf32> to vector<8x1xf32>
    %cst_66 = arith.constant 3.200000e+01 : f32
    %151 = vector.broadcast %cst_66 : f32 to vector<8x1xf32>
    %152 = arith.divf %150, %151 : vector<8x1xf32>
    %153 = vector.broadcast %152 : vector<8x1xf32> to vector<8x32xf32>
    %154 = arith.subf %146, %153 : vector<8x32xf32>
    %155 = arith.mulf %154, %154 : vector<8x32xf32>
    %cst_67 = arith.constant dense<0.000000e+00> : vector<8xf32>
    %156 = vector.multi_reduction <add>, %155, %cst_67 [1] : vector<8x32xf32> to vector<8xf32>
    %157 = vector.shape_cast %156 : vector<8xf32> to vector<8x1xf32>
    %cst_68 = arith.constant 3.200000e+01 : f32
    %158 = vector.broadcast %cst_68 : f32 to vector<8x1xf32>
    %159 = arith.divf %157, %158 : vector<8x1xf32>
    %160 = vector.broadcast %152 : vector<8x1xf32> to vector<8x32xf32>
    %161 = arith.subf %146, %160 : vector<8x32xf32>
    %cst_69 = arith.constant 9.99999974E-6 : f32
    %162 = vector.broadcast %cst_69 : f32 to vector<8x1xf32>
    %163 = arith.addf %159, %162 : vector<8x1xf32>
    %164 = math.rsqrt %163 : vector<8x1xf32>
    %165 = vector.broadcast %164 : vector<8x1xf32> to vector<8x32xf32>
    %166 = arith.mulf %161, %165 : vector<8x32xf32>
    %167 = vector.broadcast %147 : vector<1x32xf32> to vector<8x32xf32>
    %168 = arith.mulf %166, %167 : vector<8x32xf32>
    %169 = vector.broadcast %148 : vector<1x32xf32> to vector<8x32xf32>
    %170 = arith.addf %168, %169 : vector<8x32xf32>
    %c0_70 = arith.constant 0 : index
    %c0_71 = arith.constant 0 : index
    %c0_72 = arith.constant 0 : index
    %171 = vector.load %arg17[%c0_70, %c0_71, %c0_72] : memref<1x8x32xf32, #tpu.memory_space<vmem>>, vector<1x8x32xf32>
    %172 = vector.shape_cast %171 : vector<1x8x32xf32> to vector<8x32xf32>
    %173 = vector.shape_cast %170 : vector<8x32xf32> to vector<1x8x32xf32>
    tpu.vector_store %arg17[%c0_70, %c0_71, %c0_72], %173 {strides = array<i32>} : memref<1x8x32xf32, #tpu.memory_space<vmem>>, vector<1x8x32xf32>,
    return
  }
  func.func @transform_0(%arg0: i32, %arg1: i32) -> (i32, i32, i32) {
    %c0_i32 = arith.constant 0 : i32
    %c0_i32_0 = arith.constant 0 : i32
    %c0_i32_1 = arith.constant 0 : i32
    return %arg0, %c0_i32, %c0_i32_0 : i32, i32, i32
  }
  func.func @transform_1(%arg0: i32, %arg1: i32) -> (i32, i32) {
    %c0_i32 = arith.constant 0 : i32
    %c0_i32_0 = arith.constant 0 : i32
    %c0_i32_1 = arith.constant 0 : i32
    return %c0_i32, %c0_i32_0 : i32, i32
  }
  func.func @transform_2(%arg0: i32, %arg1: i32) -> (i32, i32) {
    %c0_i32 = arith.constant 0 : i32
    %c0_i32_0 = arith.constant 0 : i32
    %c0_i32_1 = arith.constant 0 : i32
    return %c0_i32, %c0_i32_0 : i32, i32
  }
  func.func @transform_3(%arg0: i32, %arg1: i32) -> (i32, i32) {
    %c0_i32 = arith.constant 0 : i32
    %c0_i32_0 = arith.constant 0 : i32
    %c0_i32_1 = arith.constant 0 : i32
    return %c0_i32, %c0_i32_0 : i32, i32
  }
  func.func @transform_4(%arg0: i32, %arg1: i32) -> (i32, i32) {
    %c0_i32 = arith.constant 0 : i32
    %c0_i32_0 = arith.constant 0 : i32
    %c0_i32_1 = arith.constant 0 : i32
    return %c0_i32, %c0_i32_0 : i32, i32
  }
  func.func @transform_5(%arg0: i32, %arg1: i32) -> (i32, i32) {
    %c0_i32 = arith.constant 0 : i32
    %c0_i32_0 = arith.constant 0 : i32
    %c0_i32_1 = arith.constant 0 : i32
    return %c0_i32, %c0_i32_0 : i32, i32
  }
  func.func @transform_6(%arg0: i32, %arg1: i32) -> (i32, i32) {
    %c0_i32 = arith.constant 0 : i32
    %c0_i32_0 = arith.constant 0 : i32
    %c0_i32_1 = arith.constant 0 : i32
    return %c0_i32, %c0_i32_0 : i32, i32
  }
  func.func @transform_7(%arg0: i32, %arg1: i32) -> (i32, i32) {
    %c0_i32 = arith.constant 0 : i32
    %c0_i32_0 = arith.constant 0 : i32
    %c0_i32_1 = arith.constant 0 : i32
    return %c0_i32, %c0_i32_0 : i32, i32
  }
  func.func @transform_8(%arg0: i32, %arg1: i32) -> (i32, i32) {
    %c0_i32 = arith.constant 0 : i32
    %c0_i32_0 = arith.constant 0 : i32
    %c0_i32_1 = arith.constant 0 : i32
    return %c0_i32, %c0_i32_0 : i32, i32
  }
  func.func @transform_9(%arg0: i32, %arg1: i32) -> (i32, i32) {
    %c0_i32 = arith.constant 0 : i32
    %c0_i32_0 = arith.constant 0 : i32
    %c0_i32_1 = arith.constant 0 : i32
    return %c0_i32, %c0_i32_0 : i32, i32
  }
  func.func @transform_10(%arg0: i32, %arg1: i32) -> (i32, i32) {
    %c0_i32 = arith.constant 0 : i32
    %c0_i32_0 = arith.constant 0 : i32
    %c0_i32_1 = arith.constant 0 : i32
    return %c0_i32, %c0_i32_0 : i32, i32
  }
  func.func @transform_11(%arg0: i32, %arg1: i32) -> (i32, i32) {
    %c0_i32 = arith.constant 0 : i32
    %c0_i32_0 = arith.constant 0 : i32
    %c0_i32_1 = arith.constant 0 : i32
    return %c0_i32, %c0_i32_0 : i32, i32
  }
  func.func @transform_12(%arg0: i32, %arg1: i32) -> (i32, i32) {
    %c0_i32 = arith.constant 0 : i32
    %c0_i32_0 = arith.constant 0 : i32
    %c0_i32_1 = arith.constant 0 : i32
    return %c0_i32, %c0_i32_0 : i32, i32
  }
  func.func @transform_13(%arg0: i32, %arg1: i32) -> (i32, i32) {
    %c0_i32 = arith.constant 0 : i32
    %c0_i32_0 = arith.constant 0 : i32
    %c0_i32_1 = arith.constant 0 : i32
    return %c0_i32, %c0_i32_0 : i32, i32
  }
  func.func @transform_14(%arg0: i32, %arg1: i32) -> (i32, i32) {
    %c0_i32 = arith.constant 0 : i32
    %c0_i32_0 = arith.constant 0 : i32
    %c0_i32_1 = arith.constant 0 : i32
    return %c0_i32, %c0_i32_0 : i32, i32
  }
  func.func @transform_15(%arg0: i32, %arg1: i32) -> (i32, i32, i32) {
    %c0_i32 = arith.constant 0 : i32
    %c0_i32_0 = arith.constant 0 : i32
    return %arg0, %arg1, %c0_i32 : i32, i32, i32
  }
}

module attributes {stable_mosaic.version = 11 : i64} {
  func.func @encoder_block_kernel(%arg0: i32, %arg1: i32, %arg2: memref<1x8x32xf32, #tpu.memory_space<vmem>>, %arg3: memref<32x32xbf16, #tpu.memory_space<vmem>>, %arg4: memref<1x32xf32, #tpu.memory_space<vmem>>, %arg5: memref<32x64xbf16, #tpu.memory_space<vmem>>, %arg6: memref<1x64xf32, #tpu.memory_space<vmem>>, %arg7: memref<32x32xbf16, #tpu.memory_space<vmem>>, %arg8: memref<1x32xf32, #tpu.memory_space<vmem>>, %arg9: memref<1x32xf32, #tpu.memory_space<vmem>>, %arg10: memref<1x32xf32, #tpu.memory_space<vmem>>, %arg11: memref<32x128xbf16, #tpu.memory_space<vmem>>, %arg12: memref<1x128xf32, #tpu.memory_space<vmem>>, %arg13: memref<128x32xbf16, #tpu.memory_space<vmem>>, %arg14: memref<1x32xf32, #tpu.memory_space<vmem>>, %arg15: memref<1x32xf32, #tpu.memory_space<vmem>>, %arg16: memref<1x32xf32, #tpu.memory_space<vmem>>, %arg17: memref<1x8x32xf32, #tpu.memory_space<vmem>>, %arg18: memref<1x4x8x8xbf16, #tpu.memory_space<vmem>>, %arg19: memref<1x4x8x8xbf16, #tpu.memory_space<vmem>>) attributes {dimension_semantics = [#tpu.dimension_semantics<parallel>, #tpu.dimension_semantics<arbitrary>], iteration_bounds = array<i64: 2, 1>, scalar_prefetch = 0 : i64, scratch_operands = 2 : i64, tpu.core_type = #tpu.core_type<tc>, window_params = [{transform_indices = @transform_0, window_bounds = array<i64: 1, 8, 32>}, {pipeline_mode = #tpu.pipeline_mode<synchronous>, transform_indices = @transform_1, window_bounds = array<i64: 32, 32>}, {pipeline_mode = #tpu.pipeline_mode<synchronous>, transform_indices = @transform_2, window_bounds = array<i64: 1, 32>}, {pipeline_mode = #tpu.pipeline_mode<synchronous>, transform_indices = @transform_3, window_bounds = array<i64: 32, 64>}, {pipeline_mode = #tpu.pipeline_mode<synchronous>, transform_indices = @transform_4, window_bounds = array<i64: 1, 64>}, {pipeline_mode = #tpu.pipeline_mode<synchronous>, transform_indices = @transform_5, window_bounds = array<i64: 32, 32>}, {pipeline_mode = #tpu.pipeline_mode<synchronous>, transform_indices = @transform_6, window_bounds = array<i64: 1, 32>}, {pipeline_mode = #tpu.pipeline_mode<synchronous>, transform_indices = @transform_7, window_bounds = array<i64: 1, 32>}, {pipeline_mode = #tpu.pipeline_mode<synchronous>, transform_indices = @transform_8, window_bounds = array<i64: 1, 32>}, {pipeline_mode = #tpu.pipeline_mode<synchronous>, transform_indices = @transform_9, window_bounds = array<i64: 32, 128>}, {pipeline_mode = #tpu.pipeline_mode<synchronous>, transform_indices = @transform_10, window_bounds = array<i64: 1, 128>}, {pipeline_mode = #tpu.pipeline_mode<synchronous>, transform_indices = @transform_11, window_bounds = array<i64: 128, 32>}, {pipeline_mode = #tpu.pipeline_mode<synchronous>, transform_indices = @transform_12, window_bounds = array<i64: 1, 32>}, {pipeline_mode = #tpu.pipeline_mode<synchronous>, transform_indices = @transform_13, window_bounds = array<i64: 1, 32>}, {pipeline_mode = #tpu.pipeline_mode<synchronous>, transform_indices = @transform_14, window_bounds = array<i64: 1, 32>}, {transform_indices = @transform_15, window_bounds = array<i64: 1, 8, 32>}]} {
    %c0_i32 = arith.constant 0 : i32
    %0 = arith.cmpi eq, %arg1, %c0_i32 : i32
    %1 = arith.extui %0 : i1 to i32
    %c0_i32_0 = arith.constant 0 : i32
    %2 = arith.cmpi ne, %1, %c0_i32_0 : i32
    scf.if %2 {
      %c0_73 = arith.constant 0 : index
      %c0_74 = arith.constant 0 : index
      %c0_75 = arith.constant 0 : index
      %174 = vector.load %arg2[%c0_73, %c0_74, %c0_75] : memref<1x8x32xf32, #tpu.memory_space<vmem>>, vector<1x8x32xf32>
      %175 = vector.shape_cast %174 : vector<1x8x32xf32> to vector<8x32xf32>
      %176 = arith.truncf %175 : vector<8x32xf32> to vector<8x32xbf16>
      %c0_76 = arith.constant 0 : index
      %c0_77 = arith.constant 0 : index
      %177 = vector.load %arg5[%c0_76, %c0_77] : memref<32x64xbf16, #tpu.memory_space<vmem>>, vector<32x64xbf16>
      %cst_78 = arith.constant dense<0.000000e+00> : vector<8x64xf32>
      %178 = tpu.matmul %176, %177, %cst_78 {dimension_numbers = #tpu.dot_dimension_numbers<[1], [0], [0], [1], [0, 0, 1, 1], [], []>} : vector<8x32xbf16>, vector<32x64xbf16>, vector<8x64xf32> -> vector<8x64xf32>
      %c0_79 = arith.constant 0 : index
      %c0_80 = arith.constant 0 : index
      %179 = vector.load %arg6[%c0_79, %c0_80] : memref<1x64xf32, #tpu.memory_space<vmem>>, vector<1x64xf32>
      %180 = vector.broadcast %179 : vector<1x64xf32> to vector<8x64xf32>
      %181 = arith.addf %178, %180 : vector<8x64xf32>
      %182 = vector.extract_strided_slice %181 {offsets = [0, 0], sizes = [8, 8], strides = [1, 1]} : vector<8x64xf32> to vector<8x8xf32>
      %183 = arith.truncf %182 : vector<8x8xf32> to vector<8x8xbf16>
      %c0_81 = arith.constant 0 : index
      %c0_82 = arith.constant 0 : index
      %c0_83 = arith.constant 0 : index
      %c0_84 = arith.constant 0 : index
      %184 = vector.load %arg18[%c0_81, %c0_82, %c0_83, %c0_84] : memref<1x4x8x8xbf16, #tpu.memory_space<vmem>>, vector<1x1x8x8xbf16>
      %185 = vector.shape_cast %184 : vector<1x1x8x8xbf16> to vector<8x8xbf16>
      %186 = vector.shape_cast %183 : vector<8x8xbf16> to vector<1x1x8x8xbf16>
      tpu.vector_store %arg18[%c0_81, %c0_82, %c0_83, %c0_84], %186 {strides = array<i32>} : memref<1x4x8x8xbf16, #tpu.memory_space<vmem>>, vector<1x1x8x8xbf16>,
      %187 = vector.extract_strided_slice %181 {offsets = [0, 32], sizes = [8, 8], strides = [1, 1]} : vector<8x64xf32> to vector<8x8xf32>
      %188 = arith.truncf %187 : vector<8x8xf32> to vector<8x8xbf16>
      %c0_85 = arith.constant 0 : index
      %c0_86 = arith.constant 0 : index
      %c0_87 = arith.constant 0 : index
      %c0_88 = arith.constant 0 : index
      %189 = vector.load %arg19[%c0_85, %c0_86, %c0_87, %c0_88] : memref<1x4x8x8xbf16, #tpu.memory_space<vmem>>, vector<1x1x8x8xbf16>
      %190 = vector.shape_cast %189 : vector<1x1x8x8xbf16> to vector<8x8xbf16>
      %191 = vector.shape_cast %188 : vector<8x8xbf16> to vector<1x1x8x8xbf16>
      tpu.vector_store %arg19[%c0_85, %c0_86, %c0_87, %c0_88], %191 {strides = array<i32>} : memref<1x4x8x8xbf16, #tpu.memory_space<vmem>>, vector<1x1x8x8xbf16>,
      %192 = vector.extract_strided_slice %181 {offsets = [0, 8], sizes = [8, 8], strides = [1, 1]} : vector<8x64xf32> to vector<8x8xf32>
      %193 = arith.truncf %192 : vector<8x8xf32> to vector<8x8xbf16>
      %c0_89 = arith.constant 0 : index
      %c1 = arith.constant 1 : index
      %c0_90 = arith.constant 0 : index
      %c0_91 = arith.constant 0 : index
      %194 = vector.load %arg18[%c0_89, %c1, %c0_90, %c0_91] : memref<1x4x8x8xbf16, #tpu.memory_space<vmem>>, vector<1x1x8x8xbf16>
      %195 = vector.shape_cast %194 : vector<1x1x8x8xbf16> to vector<8x8xbf16>
      %196 = vector.shape_cast %193 : vector<8x8xbf16> to vector<1x1x8x8xbf16>
      tpu.vector_store %arg18[%c0_89, %c1, %c0_90, %c0_91], %196 {strides = array<i32>} : memref<1x4x8x8xbf16, #tpu.memory_space<vmem>>, vector<1x1x8x8xbf16>,
      %197 = vector.extract_strided_slice %181 {offsets = [0, 40], sizes = [8, 8], strides = [1, 1]} : vector<8x64xf32> to vector<8x8xf32>
      %198 = arith.truncf %197 : vector<8x8xf32> to vector<8x8xbf16>
      %c0_92 = arith.constant 0 : index
      %c1_93 = arith.constant 1 : index
      %c0_94 = arith.constant 0 : index
      %c0_95 = arith.constant 0 : index
      %199 = vector.load %arg19[%c0_92, %c1_93, %c0_94, %c0_95] : memref<1x4x8x8xbf16, #tpu.memory_space<vmem>>, vector<1x1x8x8xbf16>
      %200 = vector.shape_cast %199 : vector<1x1x8x8xbf16> to vector<8x8xbf16>
      %201 = vector.shape_cast %198 : vector<8x8xbf16> to vector<1x1x8x8xbf16>
      tpu.vector_store %arg19[%c0_92, %c1_93, %c0_94, %c0_95], %201 {strides = array<i32>} : memref<1x4x8x8xbf16, #tpu.memory_space<vmem>>, vector<1x1x8x8xbf16>,
      %202 = vector.extract_strided_slice %181 {offsets = [0, 16], sizes = [8, 8], strides = [1, 1]} : vector<8x64xf32> to vector<8x8xf32>
      %203 = arith.truncf %202 : vector<8x8xf32> to vector<8x8xbf16>
      %c0_96 = arith.constant 0 : index
      %c2 = arith.constant 2 : index
      %c0_97 = arith.constant 0 : index
      %c0_98 = arith.constant 0 : index
      %204 = vector.load %arg18[%c0_96, %c2, %c0_97, %c0_98] : memref<1x4x8x8xbf16, #tpu.memory_space<vmem>>, vector<1x1x8x8xbf16>
      %205 = vector.shape_cast %204 : vector<1x1x8x8xbf16> to vector<8x8xbf16>
      %206 = vector.shape_cast %203 : vector<8x8xbf16> to vector<1x1x8x8xbf16>
      tpu.vector_store %arg18[%c0_96, %c2, %c0_97, %c0_98], %206 {strides = array<i32>} : memref<1x4x8x8xbf16, #tpu.memory_space<vmem>>, vector<1x1x8x8xbf16>,
      %207 = vector.extract_strided_slice %181 {offsets = [0, 48], sizes = [8, 8], strides = [1, 1]} : vector<8x64xf32> to vector<8x8xf32>
      %208 = arith.truncf %207 : vector<8x8xf32> to vector<8x8xbf16>
      %c0_99 = arith.constant 0 : index
      %c2_100 = arith.constant 2 : index
      %c0_101 = arith.constant 0 : index
      %c0_102 = arith.constant 0 : index
      %209 = vector.load %arg19[%c0_99, %c2_100, %c0_101, %c0_102] : memref<1x4x8x8xbf16, #tpu.memory_space<vmem>>, vector<1x1x8x8xbf16>
      %210 = vector.shape_cast %209 : vector<1x1x8x8xbf16> to vector<8x8xbf16>
      %211 = vector.shape_cast %208 : vector<8x8xbf16> to vector<1x1x8x8xbf16>
      tpu.vector_store %arg19[%c0_99, %c2_100, %c0_101, %c0_102], %211 {strides = array<i32>} : memref<1x4x8x8xbf16, #tpu.memory_space<vmem>>, vector<1x1x8x8xbf16>,
      %212 = vector.extract_strided_slice %181 {offsets = [0, 24], sizes = [8, 8], strides = [1, 1]} : vector<8x64xf32> to vector<8x8xf32>
      %213 = arith.truncf %212 : vector<8x8xf32> to vector<8x8xbf16>
      %c0_103 = arith.constant 0 : index
      %c3 = arith.constant 3 : index
      %c0_104 = arith.constant 0 : index
      %c0_105 = arith.constant 0 : index
      %214 = vector.load %arg18[%c0_103, %c3, %c0_104, %c0_105] : memref<1x4x8x8xbf16, #tpu.memory_space<vmem>>, vector<1x1x8x8xbf16>
      %215 = vector.shape_cast %214 : vector<1x1x8x8xbf16> to vector<8x8xbf16>
      %216 = vector.shape_cast %213 : vector<8x8xbf16> to vector<1x1x8x8xbf16>
      tpu.vector_store %arg18[%c0_103, %c3, %c0_104, %c0_105], %216 {strides = array<i32>} : memref<1x4x8x8xbf16, #tpu.memory_space<vmem>>, vector<1x1x8x8xbf16>,
      %217 = vector.extract_strided_slice %181 {offsets = [0, 56], sizes = [8, 8], strides = [1, 1]} : vector<8x64xf32> to vector<8x8xf32>
      %218 = arith.truncf %217 : vector<8x8xf32> to vector<8x8xbf16>
      %c0_106 = arith.constant 0 : index
      %c3_107 = arith.constant 3 : index
      %c0_108 = arith.constant 0 : index
      %c0_109 = arith.constant 0 : index
      %219 = vector.load %arg19[%c0_106, %c3_107, %c0_108, %c0_109] : memref<1x4x8x8xbf16, #tpu.memory_space<vmem>>, vector<1x1x8x8xbf16>
      %220 = vector.shape_cast %219 : vector<1x1x8x8xbf16> to vector<8x8xbf16>
      %221 = vector.shape_cast %218 : vector<8x8xbf16> to vector<1x1x8x8xbf16>
      tpu.vector_store %arg19[%c0_106, %c3_107, %c0_108, %c0_109], %221 {strides = array<i32>} : memref<1x4x8x8xbf16, #tpu.memory_space<vmem>>, vector<1x1x8x8xbf16>,
    } else {
    }
    %c8_i32 = arith.constant 8 : i32
    %3 = arith.muli %arg1, %c8_i32 : i32
    %4 = tpu.assume_multiple %3, 8 : i32
    %c0 = arith.constant 0 : index
    %5 = arith.index_cast %4 : i32 to index
    %c0_1 = arith.constant 0 : index
    %6 = vector.load %arg2[%c0, %5, %c0_1] : memref<1x8x32xf32, #tpu.memory_space<vmem>>, vector<1x8x32xf32>
    %7 = vector.shape_cast %6 : vector<1x8x32xf32> to vector<8x32xf32>
    %8 = arith.truncf %7 : vector<8x32xf32> to vector<8x32xbf16>
    %c0_2 = arith.constant 0 : index
    %c0_3 = arith.constant 0 : index
    %9 = vector.load %arg3[%c0_2, %c0_3] : memref<32x32xbf16, #tpu.memory_space<vmem>>, vector<32x32xbf16>
    %cst = arith.constant dense<0.000000e+00> : vector<8x32xf32>
    %10 = tpu.matmul %8, %9, %cst {dimension_numbers = #tpu.dot_dimension_numbers<[1], [0], [0], [1], [0, 0, 1, 1], [], []>} : vector<8x32xbf16>, vector<32x32xbf16>, vector<8x32xf32> -> vector<8x32xf32>
    %c0_4 = arith.constant 0 : index
    %c0_5 = arith.constant 0 : index
    %11 = vector.load %arg4[%c0_4, %c0_5] : memref<1x32xf32, #tpu.memory_space<vmem>>, vector<1x32xf32>
    %12 = vector.broadcast %11 : vector<1x32xf32> to vector<8x32xf32>
    %13 = arith.addf %10, %12 : vector<8x32xf32>
    %cst_6 = arith.constant 0.353553385 : f32
    %14 = vector.broadcast %cst_6 : f32 to vector<8x32xf32>
    %15 = arith.mulf %13, %14 : vector<8x32xf32>
    %16 = arith.truncf %15 : vector<8x32xf32> to vector<8x32xbf16>
    %17 = vector.extract_strided_slice %16 {offsets = [0, 0], sizes = [8, 8], strides = [1, 1]} : vector<8x32xbf16> to vector<8x8xbf16>
    %18 = vector.extract_strided_slice %16 {offsets = [0, 8], sizes = [8, 8], strides = [1, 1]} : vector<8x32xbf16> to vector<8x8xbf16>
    %19 = vector.extract_strided_slice %16 {offsets = [0, 16], sizes = [8, 8], strides = [1, 1]} : vector<8x32xbf16> to vector<8x8xbf16>
    %20 = vector.extract_strided_slice %16 {offsets = [0, 24], sizes = [8, 8], strides = [1, 1]} : vector<8x32xbf16> to vector<8x8xbf16>
    %21 = vector.shape_cast %17 : vector<8x8xbf16> to vector<1x8x8xbf16>
    %22 = vector.shape_cast %18 : vector<8x8xbf16> to vector<1x8x8xbf16>
    %23 = vector.shape_cast %19 : vector<8x8xbf16> to vector<1x8x8xbf16>
    %24 = vector.shape_cast %20 : vector<8x8xbf16> to vector<1x8x8xbf16>
    %25 = tpu.concatenate %21, %22, %23, %24 in 0 : vector<1x8x8xbf16>, vector<1x8x8xbf16>, vector<1x8x8xbf16>, vector<1x8x8xbf16> -> vector<4x8x8xbf16>
    %cst_7 = arith.constant 0xFF800000 : f32
    %26 = vector.broadcast %cst_7 : f32 to vector<4x8x1xf32>
    %cst_8 = arith.constant 0.000000e+00 : f32
    %27 = vector.broadcast %cst_8 : f32 to vector<4x8x1xf32>
    %cst_9 = arith.constant 0.000000e+00 : f32
    %28 = vector.broadcast %cst_9 : f32 to vector<4x8x8xf32>
    %c0_10 = arith.constant 0 : index
    %c0_11 = arith.constant 0 : index
    %c0_12 = arith.constant 0 : index
    %c0_13 = arith.constant 0 : index
    %29 = vector.load %arg18[%c0_10, %c0_11, %c0_12, %c0_13] : memref<1x4x8x8xbf16, #tpu.memory_space<vmem>>, vector<1x4x8x8xbf16>
    %30 = vector.shape_cast %29 : vector<1x4x8x8xbf16> to vector<4x8x8xbf16>
    %c0_14 = arith.constant 0 : index
    %c0_15 = arith.constant 0 : index
    %c0_16 = arith.constant 0 : index
    %c0_17 = arith.constant 0 : index
    %31 = vector.load %arg19[%c0_14, %c0_15, %c0_16, %c0_17] : memref<1x4x8x8xbf16, #tpu.memory_space<vmem>>, vector<1x4x8x8xbf16>
    %32 = vector.shape_cast %31 : vector<1x4x8x8xbf16> to vector<4x8x8xbf16>
    "tpu.trace_start"() <{level = 10 : i32, message = "hqd,hkd->hqk"}> : () -> ()
    %cst_18 = arith.constant dense<0.000000e+00> : vector<4x8x8xf32>
    %33 = tpu.matmul %25, %30, %cst_18 {dimension_numbers = #tpu.dot_dimension_numbers<[2], [2], [1], [1], [0, 0, 0, 1, 1, 1], [0], [0]>} : vector<4x8x8xbf16>, vector<4x8x8xbf16>, vector<4x8x8xf32> -> vector<4x8x8xf32>
    "tpu.trace_stop"() : () -> ()
    %cst_19 = arith.constant dense<0xFF800000> : vector<4x8xf32>
    %34 = vector.multi_reduction <maximumf>, %33, %cst_19 [2] : vector<4x8x8xf32> to vector<4x8xf32>
    %35 = vector.shape_cast %34 : vector<4x8xf32> to vector<4x8x1xf32>
    %36 = arith.maximumf %26, %35 : vector<4x8x1xf32>
    %37 = arith.subf %26, %36 : vector<4x8x1xf32>
    %38 = math.exp %37 : vector<4x8x1xf32>
    %39 = vector.broadcast %36 : vector<4x8x1xf32> to vector<4x8x8xf32>
    %40 = arith.subf %33, %39 : vector<4x8x8xf32>
    %41 = math.exp %40 : vector<4x8x8xf32>
    %42 = arith.mulf %38, %27 : vector<4x8x1xf32>
    %cst_20 = arith.constant dense<0.000000e+00> : vector<4x8xf32>
    %43 = vector.multi_reduction <add>, %41, %cst_20 [2] : vector<4x8x8xf32> to vector<4x8xf32>
    %44 = vector.shape_cast %43 : vector<4x8xf32> to vector<4x8x1xf32>
    %45 = arith.addf %42, %44 : vector<4x8x1xf32>
    %46 = vector.broadcast %38 : vector<4x8x1xf32> to vector<4x8x8xf32>
    %47 = arith.mulf %46, %28 : vector<4x8x8xf32>
    %48 = arith.truncf %41 : vector<4x8x8xf32> to vector<4x8x8xbf16>
    "tpu.trace_start"() <{level = 10 : i32, message = "hqk,hkd->hqd"}> : () -> ()
    %cst_21 = arith.constant dense<0.000000e+00> : vector<4x8x8xf32>
    %49 = tpu.matmul %48, %32, %cst_21 {dimension_numbers = #tpu.dot_dimension_numbers<[2], [1], [1], [2], [0, 0, 0, 1, 1, 2], [0], [0]>} : vector<4x8x8xbf16>, vector<4x8x8xbf16>, vector<4x8x8xf32> -> vector<4x8x8xf32>
    "tpu.trace_stop"() : () -> ()
    %50 = arith.addf %47, %49 : vector<4x8x8xf32>
    %51 = tpu.reciprocal %45 {approx = true} : vector<4x8x1xf32> -> vector<4x8x1xf32>
    %52 = vector.broadcast %51 : vector<4x8x1xf32> to vector<4x8x8xf32>
    %53 = arith.mulf %50, %52 : vector<4x8x8xf32>
    %54 = arith.truncf %53 : vector<4x8x8xf32> to vector<4x8x8xbf16>
    %55 = vector.extract_strided_slice %54 {offsets = [0, 0, 0], sizes = [1, 8, 8], strides = [1, 1, 1]} : vector<4x8x8xbf16> to vector<1x8x8xbf16>
    %56 = vector.shape_cast %55 : vector<1x8x8xbf16> to vector<8x8xbf16>
    %57 = vector.extract_strided_slice %54 {offsets = [1, 0, 0], sizes = [1, 8, 8], strides = [1, 1, 1]} : vector<4x8x8xbf16> to vector<1x8x8xbf16>
    %58 = vector.shape_cast %57 : vector<1x8x8xbf16> to vector<8x8xbf16>
    %59 = vector.extract_strided_slice %54 {offsets = [2, 0, 0], sizes = [1, 8, 8], strides = [1, 1, 1]} : vector<4x8x8xbf16> to vector<1x8x8xbf16>
    %60 = vector.shape_cast %59 : vector<1x8x8xbf16> to vector<8x8xbf16>
    %61 = vector.extract_strided_slice %54 {offsets = [3, 0, 0], sizes = [1, 8, 8], strides = [1, 1, 1]} : vector<4x8x8xbf16> to vector<1x8x8xbf16>
    %62 = vector.shape_cast %61 : vector<1x8x8xbf16> to vector<8x8xbf16>
    %63 = tpu.concatenate %56, %58, %60, %62 in 1 : vector<8x8xbf16>, vector<8x8xbf16>, vector<8x8xbf16>, vector<8x8xbf16> -> vector<8x32xbf16>
    %c0_22 = arith.constant 0 : index
    %c0_23 = arith.constant 0 : index
    %64 = vector.load %arg7[%c0_22, %c0_23] : memref<32x32xbf16, #tpu.memory_space<vmem>>, vector<32x32xbf16>
    %cst_24 = arith.constant dense<0.000000e+00> : vector<8x32xf32>
    %65 = tpu.matmul %63, %64, %cst_24 {dimension_numbers = #tpu.dot_dimension_numbers<[1], [0], [0], [1], [0, 0, 1, 1], [], []>} : vector<8x32xbf16>, vector<32x32xbf16>, vector<8x32xf32> -> vector<8x32xf32>
    %c0_25 = arith.constant 0 : index
    %c0_26 = arith.constant 0 : index
    %66 = vector.load %arg8[%c0_25, %c0_26] : memref<1x32xf32, #tpu.memory_space<vmem>>, vector<1x32xf32>
    %67 = vector.broadcast %66 : vector<1x32xf32> to vector<8x32xf32>
    %68 = arith.addf %65, %67 : vector<8x32xf32>
    %69 = arith.addf %7, %68 : vector<8x32xf32>
    %c0_27 = arith.constant 0 : index
    %c0_28 = arith.constant 0 : index
    %70 = vector.load %arg9[%c0_27, %c0_28] : memref<1x32xf32, #tpu.memory_space<vmem>>, vector<1x32xf32>
    %c0_29 = arith.constant 0 : index
    %c0_30 = arith.constant 0 : index
    %71 = vector.load %arg10[%c0_29, %c0_30] : memref<1x32xf32, #tpu.memory_space<vmem>>, vector<1x32xf32>
    %cst_31 = arith.constant dense<0.000000e+00> : vector<8xf32>
    %72 = vector.multi_reduction <add>, %69, %cst_31 [1] : vector<8x32xf32> to vector<8xf32>
    %73 = vector.shape_cast %72 : vector<8xf32> to vector<8x1xf32>
    %cst_32 = arith.constant 3.200000e+01 : f32
    %74 = vector.broadcast %cst_32 : f32 to vector<8x1xf32>
    %75 = arith.divf %73, %74 : vector<8x1xf32>
    %76 = vector.broadcast %75 : vector<8x1xf32> to vector<8x32xf32>
    %77 = arith.subf %69, %76 : vector<8x32xf32>
    %78 = arith.mulf %77, %77 : vector<8x32xf32>
    %cst_33 = arith.constant dense<0.000000e+00> : vector<8xf32>
    %79 = vector.multi_reduction <add>, %78, %cst_33 [1] : vector<8x32xf32> to vector<8xf32>
    %80 = vector.shape_cast %79 : vector<8xf32> to vector<8x1xf32>
    %cst_34 = arith.constant 3.200000e+01 : f32
    %81 = vector.broadcast %cst_34 : f32 to vector<8x1xf32>
    %82 = arith.divf %80, %81 : vector<8x1xf32>
    %83 = vector.broadcast %75 : vector<8x1xf32> to vector<8x32xf32>
    %84 = arith.subf %69, %83 : vector<8x32xf32>
    %cst_35 = arith.constant 9.99999974E-6 : f32
    %85 = vector.broadcast %cst_35 : f32 to vector<8x1xf32>
    %86 = arith.addf %82, %85 : vector<8x1xf32>
    %87 = math.rsqrt %86 : vector<8x1xf32>
    %88 = vector.broadcast %87 : vector<8x1xf32> to vector<8x32xf32>
    %89 = arith.mulf %84, %88 : vector<8x32xf32>
    %90 = vector.broadcast %70 : vector<1x32xf32> to vector<8x32xf32>
    %91 = arith.mulf %89, %90 : vector<8x32xf32>
    %92 = vector.broadcast %71 : vector<1x32xf32> to vector<8x32xf32>
    %93 = arith.addf %91, %92 : vector<8x32xf32>
    %94 = arith.truncf %93 : vector<8x32xf32> to vector<8x32xbf16>
    %c0_36 = arith.constant 0 : index
    %c0_37 = arith.constant 0 : index
    %95 = vector.load %arg11[%c0_36, %c0_37] : memref<32x128xbf16, #tpu.memory_space<vmem>>, vector<32x128xbf16>
    %cst_38 = arith.constant dense<0.000000e+00> : vector<8x128xf32>
    %96 = tpu.matmul %94, %95, %cst_38 {dimension_numbers = #tpu.dot_dimension_numbers<[1], [0], [0], [1], [0, 0, 1, 1], [], []>} : vector<8x32xbf16>, vector<32x128xbf16>, vector<8x128xf32> -> vector<8x128xf32>
    %c0_39 = arith.constant 0 : index
    %c0_40 = arith.constant 0 : index
    %97 = vector.load %arg12[%c0_39, %c0_40] : memref<1x128xf32, #tpu.memory_space<vmem>>, vector<1x128xf32>
    %98 = vector.broadcast %97 : vector<1x128xf32> to vector<8x128xf32>
    %99 = arith.addf %96, %98 : vector<8x128xf32>
    %cst_41 = arith.constant 5.000000e-01 : f32
    %100 = vector.broadcast %cst_41 : f32 to vector<8x128xf32>
    %101 = arith.mulf %100, %99 : vector<8x128xf32>
    %cst_42 = arith.constant 0.707106769 : f32
    %102 = vector.broadcast %cst_42 : f32 to vector<8x128xf32>
    %103 = arith.mulf %99, %102 : vector<8x128xf32>
    %104 = math.absf %103 : vector<8x128xf32>
    %cst_43 = arith.constant 0.327591091 : f32
    %105 = vector.broadcast %cst_43 : f32 to vector<8x128xf32>
    %106 = arith.mulf %105, %104 : vector<8x128xf32>
    %cst_44 = arith.constant 1.000000e+00 : f32
    %107 = vector.broadcast %cst_44 : f32 to vector<8x128xf32>
    %108 = arith.addf %107, %106 : vector<8x128xf32>
    %cst_45 = arith.constant 1.000000e+00 : f32
    %109 = vector.broadcast %cst_45 : f32 to vector<8x128xf32>
    %110 = arith.divf %109, %108 : vector<8x128xf32>
    %cst_46 = arith.constant 1.06140542 : f32
    %111 = vector.broadcast %cst_46 : f32 to vector<8x128xf32>
    %112 = arith.mulf %111, %110 : vector<8x128xf32>
    %cst_47 = arith.constant -1.45315206 : f32
    %113 = vector.broadcast %cst_47 : f32 to vector<8x128xf32>
    %114 = arith.addf %112, %113 : vector<8x128xf32>
    %115 = arith.mulf %114, %110 : vector<8x128xf32>
    %cst_48 = arith.constant 1.42141378 : f32
    %116 = vector.broadcast %cst_48 : f32 to vector<8x128xf32>
    %117 = arith.addf %115, %116 : vector<8x128xf32>
    %118 = arith.mulf %117, %110 : vector<8x128xf32>
    %cst_49 = arith.constant -0.284496725 : f32
    %119 = vector.broadcast %cst_49 : f32 to vector<8x128xf32>
    %120 = arith.addf %118, %119 : vector<8x128xf32>
    %121 = arith.mulf %120, %110 : vector<8x128xf32>
    %cst_50 = arith.constant 0.254829586 : f32
    %122 = vector.broadcast %cst_50 : f32 to vector<8x128xf32>
    %123 = arith.addf %121, %122 : vector<8x128xf32>
    %124 = arith.mulf %123, %110 : vector<8x128xf32>
    %125 = arith.mulf %104, %104 : vector<8x128xf32>
    %cst_51 = arith.constant 0.000000e+00 : f32
    %126 = vector.broadcast %cst_51 : f32 to vector<8x128xf32>
    %127 = arith.subf %126, %125 : vector<8x128xf32>
    %128 = math.exp %127 : vector<8x128xf32>
    %129 = arith.mulf %124, %128 : vector<8x128xf32>
    %cst_52 = arith.constant 1.000000e+00 : f32
    %130 = vector.broadcast %cst_52 : f32 to vector<8x128xf32>
    %131 = arith.subf %130, %129 : vector<8x128xf32>
    %cst_53 = arith.constant 0.000000e+00 : f32
    %132 = vector.broadcast %cst_53 : f32 to vector<8x128xf32>
    %133 = arith.cmpf oge, %103, %132 : vector<8x128xf32>
    %cst_54 = arith.constant 0.000000e+00 : f32
    %134 = vector.broadcast %cst_54 : f32 to vector<8x128xf32>
    %135 = arith.subf %134, %131 : vector<8x128xf32>
    %136 = arith.select %133, %131, %135 : vector<8x128xi1>, vector<8x128xf32>
    %cst_55 = arith.constant 1.000000e+00 : f32
    %137 = vector.broadcast %cst_55 : f32 to vector<8x128xf32>
    %138 = arith.addf %137, %136 : vector<8x128xf32>
    %139 = arith.mulf %101, %138 : vector<8x128xf32>
    %140 = arith.truncf %139 : vector<8x128xf32> to vector<8x128xbf16>
    %c0_56 = arith.constant 0 : index
    %c0_57 = arith.constant 0 : index
    %141 = vector.load %arg13[%c0_56, %c0_57] : memref<128x32xbf16, #tpu.memory_space<vmem>>, vector<128x32xbf16>
    %cst_58 = arith.constant dense<0.000000e+00> : vector<8x32xf32>
    %142 = tpu.matmul %140, %141, %cst_58 {dimension_numbers = #tpu.dot_dimension_numbers<[1], [0], [0], [1], [0, 0, 1, 1], [], []>} : vector<8x128xbf16>, vector<128x32xbf16>, vector<8x32xf32> -> vector<8x32xf32>
    %c0_59 = arith.constant 0 : index
    %c0_60 = arith.constant 0 : index
    %143 = vector.load %arg14[%c0_59, %c0_60] : memref<1x32xf32, #tpu.memory_space<vmem>>, vector<1x32xf32>
    %144 = vector.broadcast %143 : vector<1x32xf32> to vector<8x32xf32>
    %145 = arith.addf %142, %144 : vector<8x32xf32>
    %146 = arith.addf %93, %145 : vector<8x32xf32>
    %c0_61 = arith.constant 0 : index
    %c0_62 = arith.constant 0 : index
    %147 = vector.load %arg15[%c0_61, %c0_62] : memref<1x32xf32, #tpu.memory_space<vmem>>, vector<1x32xf32>
    %c0_63 = arith.constant 0 : index
    %c0_64 = arith.constant 0 : index
    %148 = vector.load %arg16[%c0_63, %c0_64] : memref<1x32xf32, #tpu.memory_space<vmem>>, vector<1x32xf32>
    %cst_65 = arith.constant dense<0.000000e+00> : vector<8xf32>
    %149 = vector.multi_reduction <add>, %146, %cst_65 [1] : vector<8x32xf32> to vector<8xf32>
    %150 = vector.shape_cast %149 : vector<8xf32> to vector<8x1xf32>
    %cst_66 = arith.constant 3.200000e+01 : f32
    %151 = vector.broadcast %cst_66 : f32 to vector<8x1xf32>
    %152 = arith.divf %150, %151 : vector<8x1xf32>
    %153 = vector.broadcast %152 : vector<8x1xf32> to vector<8x32xf32>
    %154 = arith.subf %146, %153 : vector<8x32xf32>
    %155 = arith.mulf %154, %154 : vector<8x32xf32>
    %cst_67 = arith.constant dense<0.000000e+00> : vector<8xf32>
    %156 = vector.multi_reduction <add>, %155, %cst_67 [1] : vector<8x32xf32> to vector<8xf32>
    %157 = vector.shape_cast %156 : vector<8xf32> to vector<8x1xf32>
    %cst_68 = arith.constant 3.200000e+01 : f32
    %158 = vector.broadcast %cst_68 : f32 to vector<8x1xf32>
    %159 = arith.divf %157, %158 : vector<8x1xf32>
    %160 = vector.broadcast %152 : vector<8x1xf32> to vector<8x32xf32>
    %161 = arith.subf %146, %160 : vector<8x32xf32>
    %cst_69 = arith.constant 9.99999974E-6 : f32
    %162 = vector.broadcast %cst_69 : f32 to vector<8x1xf32>
    %163 = arith.addf %159, %162 : vector<8x1xf32>
    %164 = math.rsqrt %163 : vector<8x1xf32>
    %165 = vector.broadcast %164 : vector<8x1xf32> to vector<8x32xf32>
    %166 = arith.mulf %161, %165 : vector<8x32xf32>
    %167 = vector.broadcast %147 : vector<1x32xf32> to vector<8x32xf32>
    %168 = arith.mulf %166, %167 : vector<8x32xf32>
    %169 = vector.broadcast %148 : vector<1x32xf32> to vector<8x32xf32>
    %170 = arith.addf %168, %169 : vector<8x32xf32>
    %c0_70 = arith.constant 0 : index
    %c0_71 = arith.constant 0 : index
    %c0_72 = arith.constant 0 : index
    %171 = vector.load %arg17[%c0_70, %c0_71, %c0_72] : memref<1x8x32xf32, #tpu.memory_space<vmem>>, vector<1x8x32xf32>
    %172 = vector.shape_cast %171 : vector<1x8x32xf32> to vector<8x32xf32>
    %173 = vector.shape_cast %170 : vector<8x32xf32> to vector<1x8x32xf32>
    tpu.vector_store %arg17[%c0_70, %c0_71, %c0_72], %173 {strides = array<i32>} : memref<1x8x32xf32, #tpu.memory_space<vmem>>, vector<1x8x32xf32>,
    return
  }
  func.func @transform_0(%arg0: i32, %arg1: i32) -> (i32, i32, i32) {
    %c0_i32 = arith.constant 0 : i32
    %c0_i32_0 = arith.constant 0 : i32
    %c0_i32_1 = arith.constant 0 : i32
    return %arg0, %c0_i32, %c0_i32_0 : i32, i32, i32
  }
  func.func @transform_1(%arg0: i32, %arg1: i32) -> (i32, i32) {
    %c0_i32 = arith.constant 0 : i32
    %c0_i32_0 = arith.constant 0 : i32
    %c0_i32_1 = arith.constant 0 : i32
    return %c0_i32, %c0_i32_0 : i32, i32
  }
  func.func @transform_2(%arg0: i32, %arg1: i32) -> (i32, i32) {
    %c0_i32 = arith.constant 0 : i32
    %c0_i32_0 = arith.constant 0 : i32
    %c0_i32_1 = arith.constant 0 : i32
    return %c0_i32, %c0_i32_0 : i32, i32
  }
  func.func @transform_3(%arg0: i32, %arg1: i32) -> (i32, i32) {
    %c0_i32 = arith.constant 0 : i32
    %c0_i32_0 = arith.constant 0 : i32
    %c0_i32_1 = arith.constant 0 : i32
    return %c0_i32, %c0_i32_0 : i32, i32
  }
  func.func @transform_4(%arg0: i32, %arg1: i32) -> (i32, i32) {
    %c0_i32 = arith.constant 0 : i32
    %c0_i32_0 = arith.constant 0 : i32
    %c0_i32_1 = arith.constant 0 : i32
    return %c0_i32, %c0_i32_0 : i32, i32
  }
  func.func @transform_5(%arg0: i32, %arg1: i32) -> (i32, i32) {
    %c0_i32 = arith.constant 0 : i32
    %c0_i32_0 = arith.constant 0 : i32
    %c0_i32_1 = arith.constant 0 : i32
    return %c0_i32, %c0_i32_0 : i32, i32
  }
  func.func @transform_6(%arg0: i32, %arg1: i32) -> (i32, i32) {
    %c0_i32 = arith.constant 0 : i32
    %c0_i32_0 = arith.constant 0 : i32
    %c0_i32_1 = arith.constant 0 : i32
    return %c0_i32, %c0_i32_0 : i32, i32
  }
  func.func @transform_7(%arg0: i32, %arg1: i32) -> (i32, i32) {
    %c0_i32 = arith.constant 0 : i32
    %c0_i32_0 = arith.constant 0 : i32
    %c0_i32_1 = arith.constant 0 : i32
    return %c0_i32, %c0_i32_0 : i32, i32
  }
  func.func @transform_8(%arg0: i32, %arg1: i32) -> (i32, i32) {
    %c0_i32 = arith.constant 0 : i32
    %c0_i32_0 = arith.constant 0 : i32
    %c0_i32_1 = arith.constant 0 : i32
    return %c0_i32, %c0_i32_0 : i32, i32
  }
  func.func @transform_9(%arg0: i32, %arg1: i32) -> (i32, i32) {
    %c0_i32 = arith.constant 0 : i32
    %c0_i32_0 = arith.constant 0 : i32
    %c0_i32_1 = arith.constant 0 : i32
    return %c0_i32, %c0_i32_0 : i32, i32
  }
  func.func @transform_10(%arg0: i32, %arg1: i32) -> (i32, i32) {
    %c0_i32 = arith.constant 0 : i32
    %c0_i32_0 = arith.constant 0 : i32
    %c0_i32_1 = arith.constant 0 : i32
    return %c0_i32, %c0_i32_0 : i32, i32
  }
  func.func @transform_11(%arg0: i32, %arg1: i32) -> (i32, i32) {
    %c0_i32 = arith.constant 0 : i32
    %c0_i32_0 = arith.constant 0 : i32
    %c0_i32_1 = arith.constant 0 : i32
    return %c0_i32, %c0_i32_0 : i32, i32
  }
  func.func @transform_12(%arg0: i32, %arg1: i32) -> (i32, i32) {
    %c0_i32 = arith.constant 0 : i32
    %c0_i32_0 = arith.constant 0 : i32
    %c0_i32_1 = arith.constant 0 : i32
    return %c0_i32, %c0_i32_0 : i32, i32
  }
  func.func @transform_13(%arg0: i32, %arg1: i32) -> (i32, i32) {
    %c0_i32 = arith.constant 0 : i32
    %c0_i32_0 = arith.constant 0 : i32
    %c0_i32_1 = arith.constant 0 : i32
    return %c0_i32, %c0_i32_0 : i32, i32
  }
  func.func @transform_14(%arg0: i32, %arg1: i32) -> (i32, i32) {
    %c0_i32 = arith.constant 0 : i32
    %c0_i32_0 = arith.constant 0 : i32
    %c0_i32_1 = arith.constant 0 : i32
    return %c0_i32, %c0_i32_0 : i32, i32
  }
  func.func @transform_15(%arg0: i32, %arg1: i32) -> (i32, i32, i32) {
    %c0_i32 = arith.constant 0 : i32
    %c0_i32_0 = arith.constant 0 : i32
    return %arg0, %arg1, %c0_i32 : i32, i32, i32
  }
}

</mosaic_0001>

<llo_original>
// kernel: tpu_custom_call.1
$region0: #{tpu_custom_call.1}
  #allocation0 [shape = 'u32[]', space=smem, size = 0x4, offset = 0x4, fixed_abs, tag = 'smem constant byte address 0x4 - core index']
  #allocation1 [shape = 'u32[144,128]{1,0:T(1,128)}', space=vmem, size = 0x12000, scoped, tag = 'internal scratch']
  #allocation2 [shape = 'bf16[1,4,8,8]{3,2,1,0:T(8,128)(2,1)}', space=vmem, size = 0x2000, scoped, tag = 'scratch operand']
  #allocation3 [shape = 'bf16[1,4,8,8]{3,2,1,0:T(8,128)(2,1)}', space=vmem, size = 0x2000, scoped, tag = 'scratch operand']
  %s0 = inlined_call_operand.hbm [shape: f32[2,8,32], index: 0, kind: input, shape index: {}]
  %s1 = inlined_call_operand.hbm [shape: bf16[32,32], index: 1, kind: input, shape index: {}]
  %s2 = inlined_call_operand.hbm [shape: f32[1,32], index: 2, kind: input, shape index: {}]
  %s3 = inlined_call_operand.hbm [shape: bf16[32,64], index: 3, kind: input, shape index: {}]
  %s4 = inlined_call_operand.hbm [shape: f32[1,64], index: 4, kind: input, shape index: {}]
  %s5 = inlined_call_operand.hbm [shape: bf16[32,32], index: 5, kind: input, shape index: {}]
  %s6 = inlined_call_operand.hbm [shape: f32[1,32], index: 6, kind: input, shape index: {}]
  %s7 = inlined_call_operand.hbm [shape: f32[1,32], index: 7, kind: input, shape index: {}]
  %s8 = inlined_call_operand.hbm [shape: f32[1,32], index: 8, kind: input, shape index: {}]
  %s9 = inlined_call_operand.hbm [shape: bf16[32,128], index: 9, kind: input, shape index: {}]
  %s10 = inlined_call_operand.hbm [shape: f32[1,128], index: 10, kind: input, shape index: {}]
  %s11 = inlined_call_operand.hbm [shape: bf16[128,32], index: 11, kind: input, shape index: {}]
  %s12 = inlined_call_operand.hbm [shape: f32[1,32], index: 12, kind: input, shape index: {}]
  %s13 = inlined_call_operand.hbm [shape: f32[1,32], index: 13, kind: input, shape index: {}]
  %s14 = inlined_call_operand.hbm [shape: f32[1,32], index: 14, kind: input, shape index: {}]
  %s15 = inlined_call_operand.hbm [shape: f32[2,8,32], index: 15, kind: output, shape index: {}]
  %s16 = sld [smem:[#allocation0]]
  $region157: #{tpu_custom_call.1} parent=0
    _
  %s18 = ssub.s32 1, %s16
  %s19 = scalar_select 0, %s18, %s16
  $region1: #{tpu_custom_call.1} parent=0
    #allocation4 [shape = 'u8[8192]{0}', space=vmem, size = 0x2000, scoped, tag = 'input window, operand 0']
    #allocation5 [shape = 's32[2]{0}', space=sflag, size = 0x8, scoped, tag = 'scoped memory for tpu_custom_call.1']
    #allocation6 [shape = 's32[2]{0}', space=sflag, size = 0x8, scoped, tag = 'scoped memory for tpu_custom_call.1']
    #allocation7 [shape = 'u8[8192]{0}', space=vmem, size = 0x2000, scoped, tag = 'input window, operand 1, single buffered']
    #allocation8 [shape = 's32[1]{0}', space=sflag, size = 0x4, scoped, tag = 'scoped memory for tpu_custom_call.1']
    #allocation9 [shape = 'u8[512]{0}', space=vmem, size = 0x400, scoped, tag = 'input window, operand 2, single buffered']
    #allocation10 [shape = 'u8[8192]{0}', space=vmem, size = 0x2000, scoped, tag = 'input window, operand 3, single buffered']
    #allocation11 [shape = 's32[1]{0}', space=sflag, size = 0x4, scoped, tag = 'scoped memory for tpu_custom_call.1']
    #allocation12 [shape = 'u8[512]{0}', space=vmem, size = 0x400, scoped, tag = 'input window, operand 4, single buffered']
    #allocation13 [shape = 'u8[8192]{0}', space=vmem, size = 0x2000, scoped, tag = 'input window, operand 5, single buffered']
    #allocation14 [shape = 's32[1]{0}', space=sflag, size = 0x4, scoped, tag = 'scoped memory for tpu_custom_call.1']
    #allocation15 [shape = 'u8[512]{0}', space=vmem, size = 0x400, scoped, tag = 'input window, operand 6, single buffered']
    #allocation16 [shape = 'u8[512]{0}', space=vmem, size = 0x400, scoped, tag = 'input window, operand 7, single buffered']
    #allocation17 [shape = 's32[1]{0}', space=sflag, size = 0x4, scoped, tag = 'scoped memory for tpu_custom_call.1']
    #allocation18 [shape = 'u8[512]{0}', space=vmem, size = 0x400, scoped, tag = 'input window, operand 8, single buffered']
    #allocation19 [shape = 'u8[8192]{0}', space=vmem, size = 0x2000, scoped, tag = 'input window, operand 9, single buffered']
    #allocation20 [shape = 's32[1]{0}', space=sflag, size = 0x4, scoped, tag = 'scoped memory for tpu_custom_call.1']
    #allocation21 [shape = 'u8[512]{0}', space=vmem, size = 0x400, scoped, tag = 'input window, operand 10, single buffered']
    #allocation22 [shape = 'u8[32768]{0}', space=vmem, size = 0x8000, scoped, tag = 'input window, operand 11, single buffered']
    #allocation23 [shape = 's32[1]{0}', space=sflag, size = 0x4, scoped, tag = 'scoped memory for tpu_custom_call.1']
    #allocation24 [shape = 'u8[512]{0}', space=vmem, size = 0x400, scoped, tag = 'input window, operand 12, single buffered']
    #allocation25 [shape = 'u8[512]{0}', space=vmem, size = 0x400, scoped, tag = 'input window, operand 13, single buffered']
    #allocation26 [shape = 's32[1]{0}', space=sflag, size = 0x4, scoped, tag = 'scoped memory for tpu_custom_call.1']
    #allocation27 [shape = 'u8[512]{0}', space=vmem, size = 0x400, scoped, tag = 'input window, operand 14, single buffered']
    #allocation28 [shape = 'u8[8192]{0}', space=vmem, size = 0x2000, scoped, tag = 'output window, operand 0']
    %20 = vsyncpa [#allocation5], 0
    %s21 = scalar_lea.sflag [#allocation5], 1
    %22 = vsyncpa %s21, 0
    %23 = vsyncpa [#allocation8], 0
    %24 = vsyncpa [#allocation11], 0
    %25 = vsyncpa [#allocation14], 0
    %26 = vsyncpa [#allocation17], 0
    %27 = vsyncpa [#allocation20], 0
    %28 = vsyncpa [#allocation23], 0
    %29 = vsyncpa [#allocation26], 0
    %30 = vsyncpa [#allocation6], 0
    %s31 = scalar_lea.sflag [#allocation6], 1
    %32 = vsyncpa %s31, 0
    loop: start=0, step=1, limit=4
    $region2: #{tpu_custom_call.1} parent=1 // loop_pre_header
      _
    $region3: #{tpu_custom_call.1} parent=1 // loop_header
      %s34 = sphi 0, %s38
      %p35 = scmp.ge.s32.totalorder %s34, 4
      %s41 = sphi 0, %s53
      %s42 = sphi 0, %s49
      %s43 = sphi 0, %s41
      %s44 = sphi 0, %s42
      %s45 = sphi 0, %s43
      %s46 = sphi 0, %s44
      %s56 = sphi 0, %s58
      %s59 = sphi 0, %s56
      %s60 = sphi 0, %s59
      %s76 = sphi 0, %s60
      %s80 = sphi 0, %s80
      %s82 = sphi 0, %s80
      %s83 = sphi 0, %s82
      %s97 = sphi 0, %s83
      %s101 = sphi 0, %s101
      %s103 = sphi 0, %s101
      %s104 = sphi 0, %s103
      %s118 = sphi 0, %s104
      %s122 = sphi 0, %s122
      %s124 = sphi 0, %s122
      %s125 = sphi 0, %s124
      %s139 = sphi 0, %s125
      %s143 = sphi 0, %s143
      %s145 = sphi 0, %s143
      %s146 = sphi 0, %s145
      %s160 = sphi 0, %s146
      %s164 = sphi 0, %s164
      %s166 = sphi 0, %s164
      %s167 = sphi 0, %s166
      %s181 = sphi 0, %s167
      %s185 = sphi 0, %s185
      %s187 = sphi 0, %s185
      %s188 = sphi 0, %s187
      %s202 = sphi 0, %s188
      %s206 = sphi 0, %s206
      %s208 = sphi 0, %s206
      %s209 = sphi 0, %s208
      %s223 = sphi 0, %s209
      %s227 = sphi 0, %s227
      %s229 = sphi 0, %s227
      %s230 = sphi 0, %s229
      %s244 = sphi 0, %s230
      %s248 = sphi 0, %s248
      %s250 = sphi 0, %s248
      %s251 = sphi 0, %s250
      %s265 = sphi 0, %s251
      %s269 = sphi 0, %s269
      %s271 = sphi 0, %s269
      %s272 = sphi 0, %s271
      %s286 = sphi 0, %s272
      %s290 = sphi 0, %s290
      %s292 = sphi 0, %s290
      %s293 = sphi 0, %s292
      %s307 = sphi 0, %s293
      %s311 = sphi 0, %s311
      %s313 = sphi 0, %s311
      %s314 = sphi 0, %s313
      %s328 = sphi 0, %s314
      %s332 = sphi 0, %s332
      %s334 = sphi 0, %s332
      %s335 = sphi 0, %s334
      %s349 = sphi 0, %s335
      %s353 = sphi 0, %s353
      %s355 = sphi 0, %s353
      %s356 = sphi 0, %s355
      %s370 = sphi 0, %s356
      %s378 = sphi 0, %s380
      %s381 = sphi 0, %s378
      %s382 = sphi 0, %s381
      %s398 = sphi 0, %s382
    $region4: #{tpu_custom_call.1} parent=1 // loop_header_branch
      %37 = sbr.rel (%p35) target = $region8
    $region5: #{tpu_custom_call.1} parent=1 // loop_body
      %s39 = ssub.s32 %s34, 1
      %s40 = ssub.s32 %s34, 2
      %s47 = sadd.s32 1, %s42
      %p48 = scmp.ge.s32.totalorder %s47, 1
      %s49 = scalar_select %p48, 0, %s47
      %s50 = sadd.s32 1, %s41
      %s51 = scalar_select %p48, %s50, %s41
      %p52 = scmp.ge.s32.totalorder %s51, 2
      %s53 = scalar_select %p52, 0, %s51
      %s54 = ssub.s32 %s41, %s53
      %p55 = scmp.eq.s32.totalorder %s54, 0
      %s57 = sadd.s32 %s56, 1
      %s58 = scalar_select %p55, %s56, %s57
      %p61 = pneg %p55
      %p62 = scmp.eq.s32.totalorder %s34, 1
      %p63 = por %p61, %p62
      %p64 = scmp.ne.s32.totalorder %s56, %s59
      %p65 = scmp.eq.s32.totalorder %s34, 0
      %p66 = por %p64, %p65
      %p67 = scmp.ne.s32.totalorder %s56, %s59
      %p68 = scmp.eq.s32.totalorder %s39, 1
      %p69 = por %p67, %p68
      %p70 = scmp.ne.s32.totalorder %s59, %s60
      %p71 = scmp.eq.s32.totalorder %s39, 0
      %p72 = por %p70, %p71
      %p73 = scmp.ne.s32.totalorder %s59, %s60
      %p74 = scmp.eq.s32.totalorder %s40, 1
      %p75 = por %p73, %p74
      %p77 = scmp.ne.s32.totalorder %s60, %s76
      %p78 = scmp.eq.s32.totalorder %s40, 0
      %p79 = por %p77, %p78
      %s81 = sadd.s32 %s80, 1
      %p84 = scmp.eq.s32.totalorder %s34, 1
      %p85 = scmp.ne.s32.totalorder %s80, %s82
      %p86 = scmp.eq.s32.totalorder %s34, 0
      %p87 = por %p85, %p86
      %p88 = scmp.ne.s32.totalorder %s80, %s82
      %p89 = scmp.eq.s32.totalorder %s39, 1
      %p90 = por %p88, %p89
      %p91 = scmp.ne.s32.totalorder %s82, %s83
      %p92 = scmp.eq.s32.totalorder %s39, 0
      %p93 = por %p91, %p92
      %p94 = scmp.ne.s32.totalorder %s82, %s83
      %p95 = scmp.eq.s32.totalorder %s40, 1
      %p96 = por %p94, %p95
      %p98 = scmp.ne.s32.totalorder %s83, %s97
      %p99 = scmp.eq.s32.totalorder %s40, 0
      %p100 = por %p98, %p99
      %s102 = sadd.s32 %s101, 1
      %p105 = scmp.eq.s32.totalorder %s34, 1
      %p106 = scmp.ne.s32.totalorder %s101, %s103
      %p107 = scmp.eq.s32.totalorder %s34, 0
      %p108 = por %p106, %p107
      %p109 = scmp.ne.s32.totalorder %s101, %s103
      %p110 = scmp.eq.s32.totalorder %s39, 1
      %p111 = por %p109, %p110
      %p112 = scmp.ne.s32.totalorder %s103, %s104
      %p113 = scmp.eq.s32.totalorder %s39, 0
      %p114 = por %p112, %p113
      %p115 = scmp.ne.s32.totalorder %s103, %s104
      %p116 = scmp.eq.s32.totalorder %s40, 1
      %p117 = por %p115, %p116
      %p119 = scmp.ne.s32.totalorder %s104, %s118
      %p120 = scmp.eq.s32.totalorder %s40, 0
      %p121 = por %p119, %p120
      %s123 = sadd.s32 %s122, 1
      %p126 = scmp.eq.s32.totalorder %s34, 1
      %p127 = scmp.ne.s32.totalorder %s122, %s124
      %p128 = scmp.eq.s32.totalorder %s34, 0
      %p129 = por %p127, %p128
      %p130 = scmp.ne.s32.totalorder %s122, %s124
      %p131 = scmp.eq.s32.totalorder %s39, 1
      %p132 = por %p130, %p131
      %p133 = scmp.ne.s32.totalorder %s124, %s125
      %p134 = scmp.eq.s32.totalorder %s39, 0
      %p135 = por %p133, %p134
      %p136 = scmp.ne.s32.totalorder %s124, %s125
      %p137 = scmp.eq.s32.totalorder %s40, 1
      %p138 = por %p136, %p137
      %p140 = scmp.ne.s32.totalorder %s125, %s139
      %p141 = scmp.eq.s32.totalorder %s40, 0
      %p142 = por %p140, %p141
      %s144 = sadd.s32 %s143, 1
      %p147 = scmp.eq.s32.totalorder %s34, 1
      %p148 = scmp.ne.s32.totalorder %s143, %s145
      %p149 = scmp.eq.s32.totalorder %s34, 0
      %p150 = por %p148, %p149
      %p151 = scmp.ne.s32.totalorder %s143, %s145
      %p152 = scmp.eq.s32.totalorder %s39, 1
      %p153 = por %p151, %p152
      %p154 = scmp.ne.s32.totalorder %s145, %s146
      %p155 = scmp.eq.s32.totalorder %s39, 0
      %p156 = por %p154, %p155
      %p157 = scmp.ne.s32.totalorder %s145, %s146
      %p158 = scmp.eq.s32.totalorder %s40, 1
      %p159 = por %p157, %p158
      %p161 = scmp.ne.s32.totalorder %s146, %s160
      %p162 = scmp.eq.s32.totalorder %s40, 0
      %p163 = por %p161, %p162
      %s165 = sadd.s32 %s164, 1
      %p168 = scmp.eq.s32.totalorder %s34, 1
      %p169 = scmp.ne.s32.totalorder %s164, %s166
      %p170 = scmp.eq.s32.totalorder %s34, 0
      %p171 = por %p169, %p170
      %p172 = scmp.ne.s32.totalorder %s164, %s166
      %p173 = scmp.eq.s32.totalorder %s39, 1
      %p174 = por %p172, %p173
      %p175 = scmp.ne.s32.totalorder %s166, %s167
      %p176 = scmp.eq.s32.totalorder %s39, 0
      %p177 = por %p175, %p176
      %p178 = scmp.ne.s32.totalorder %s166, %s167
      %p179 = scmp.eq.s32.totalorder %s40, 1
      %p180 = por %p178, %p179
      %p182 = scmp.ne.s32.totalorder %s167, %s181
      %p183 = scmp.eq.s32.totalorder %s40, 0
      %p184 = por %p182, %p183
      %s186 = sadd.s32 %s185, 1
      %p189 = scmp.eq.s32.totalorder %s34, 1
      %p190 = scmp.ne.s32.totalorder %s185, %s187
      %p191 = scmp.eq.s32.totalorder %s34, 0
      %p192 = por %p190, %p191
      %p193 = scmp.ne.s32.totalorder %s185, %s187
      %p194 = scmp.eq.s32.totalorder %s39, 1
      %p195 = por %p193, %p194
      %p196 = scmp.ne.s32.totalorder %s187, %s188
      %p197 = scmp.eq.s32.totalorder %s39, 0
      %p198 = por %p196, %p197
      %p199 = scmp.ne.s32.totalorder %s187, %s188
      %p200 = scmp.eq.s32.totalorder %s40, 1
      %p201 = por %p199, %p200
      %p203 = scmp.ne.s32.totalorder %s188, %s202
      %p204 = scmp.eq.s32.totalorder %s40, 0
      %p205 = por %p203, %p204
      %s207 = sadd.s32 %s206, 1
      %p210 = scmp.eq.s32.totalorder %s34, 1
      %p211 = scmp.ne.s32.totalorder %s206, %s208
      %p212 = scmp.eq.s32.totalorder %s34, 0
      %p213 = por %p211, %p212
      %p214 = scmp.ne.s32.totalorder %s206, %s208
      %p215 = scmp.eq.s32.totalorder %s39, 1
      %p216 = por %p214, %p215
      %p217 = scmp.ne.s32.totalorder %s208, %s209
      %p218 = scmp.eq.s32.totalorder %s39, 0
      %p219 = por %p217, %p218
      %p220 = scmp.ne.s32.totalorder %s208, %s209
      %p221 = scmp.eq.s32.totalorder %s40, 1
      %p222 = por %p220, %p221
      %p224 = scmp.ne.s32.totalorder %s209, %s223
      %p225 = scmp.eq.s32.totalorder %s40, 0
      %p226 = por %p224, %p225
      %s228 = sadd.s32 %s227, 1
      %p231 = scmp.eq.s32.totalorder %s34, 1
      %p232 = scmp.ne.s32.totalorder %s227, %s229
      %p233 = scmp.eq.s32.totalorder %s34, 0
      %p234 = por %p232, %p233
      %p235 = scmp.ne.s32.totalorder %s227, %s229
      %p236 = scmp.eq.s32.totalorder %s39, 1
      %p237 = por %p235, %p236
      %p238 = scmp.ne.s32.totalorder %s229, %s230
      %p239 = scmp.eq.s32.totalorder %s39, 0
      %p240 = por %p238, %p239
      %p241 = scmp.ne.s32.totalorder %s229, %s230
      %p242 = scmp.eq.s32.totalorder %s40, 1
      %p243 = por %p241, %p242
      %p245 = scmp.ne.s32.totalorder %s230, %s244
      %p246 = scmp.eq.s32.totalorder %s40, 0
      %p247 = por %p245, %p246
      %s249 = sadd.s32 %s248, 1
      %p252 = scmp.eq.s32.totalorder %s34, 1
      %p253 = scmp.ne.s32.totalorder %s248, %s250
      %p254 = scmp.eq.s32.totalorder %s34, 0
      %p255 = por %p253, %p254
      %p256 = scmp.ne.s32.totalorder %s248, %s250
      %p257 = scmp.eq.s32.totalorder %s39, 1
      %p258 = por %p256, %p257
      %p259 = scmp.ne.s32.totalorder %s250, %s251
      %p260 = scmp.eq.s32.totalorder %s39, 0
      %p261 = por %p259, %p260
      %p262 = scmp.ne.s32.totalorder %s250, %s251
      %p263 = scmp.eq.s32.totalorder %s40, 1
      %p264 = por %p262, %p263
      %p266 = scmp.ne.s32.totalorder %s251, %s265
      %p267 = scmp.eq.s32.totalorder %s40, 0
      %p268 = por %p266, %p267
      %s270 = sadd.s32 %s269, 1
      %p273 = scmp.eq.s32.totalorder %s34, 1
      %p274 = scmp.ne.s32.totalorder %s269, %s271
      %p275 = scmp.eq.s32.totalorder %s34, 0
      %p276 = por %p274, %p275
      %p277 = scmp.ne.s32.totalorder %s269, %s271
      %p278 = scmp.eq.s32.totalorder %s39, 1
      %p279 = por %p277, %p278
      %p280 = scmp.ne.s32.totalorder %s271, %s272
      %p281 = scmp.eq.s32.totalorder %s39, 0
      %p282 = por %p280, %p281
      %p283 = scmp.ne.s32.totalorder %s271, %s272
      %p284 = scmp.eq.s32.totalorder %s40, 1
      %p285 = por %p283, %p284
      %p287 = scmp.ne.s32.totalorder %s272, %s286
      %p288 = scmp.eq.s32.totalorder %s40, 0
      %p289 = por %p287, %p288
      %s291 = sadd.s32 %s290, 1
      %p294 = scmp.eq.s32.totalorder %s34, 1
      %p295 = scmp.ne.s32.totalorder %s290, %s292
      %p296 = scmp.eq.s32.totalorder %s34, 0
      %p297 = por %p295, %p296
      %p298 = scmp.ne.s32.totalorder %s290, %s292
      %p299 = scmp.eq.s32.totalorder %s39, 1
      %p300 = por %p298, %p299
      %p301 = scmp.ne.s32.totalorder %s292, %s293
      %p302 = scmp.eq.s32.totalorder %s39, 0
      %p303 = por %p301, %p302
      %p304 = scmp.ne.s32.totalorder %s292, %s293
      %p305 = scmp.eq.s32.totalorder %s40, 1
      %p306 = por %p304, %p305
      %p308 = scmp.ne.s32.totalorder %s293, %s307
      %p309 = scmp.eq.s32.totalorder %s40, 0
      %p310 = por %p308, %p309
      %s312 = sadd.s32 %s311, 1
      %p315 = scmp.eq.s32.totalorder %s34, 1
      %p316 = scmp.ne.s32.totalorder %s311, %s313
      %p317 = scmp.eq.s32.totalorder %s34, 0
      %p318 = por %p316, %p317
      %p319 = scmp.ne.s32.totalorder %s311, %s313
      %p320 = scmp.eq.s32.totalorder %s39, 1
      %p321 = por %p319, %p320
      %p322 = scmp.ne.s32.totalorder %s313, %s314
      %p323 = scmp.eq.s32.totalorder %s39, 0
      %p324 = por %p322, %p323
      %p325 = scmp.ne.s32.totalorder %s313, %s314
      %p326 = scmp.eq.s32.totalorder %s40, 1
      %p327 = por %p325, %p326
      %p329 = scmp.ne.s32.totalorder %s314, %s328
      %p330 = scmp.eq.s32.totalorder %s40, 0
      %p331 = por %p329, %p330
      %s333 = sadd.s32 %s332, 1
      %p336 = scmp.eq.s32.totalorder %s34, 1
      %p337 = scmp.ne.s32.totalorder %s332, %s334
      %p338 = scmp.eq.s32.totalorder %s34, 0
      %p339 = por %p337, %p338
      %p340 = scmp.ne.s32.totalorder %s332, %s334
      %p341 = scmp.eq.s32.totalorder %s39, 1
      %p342 = por %p340, %p341
      %p343 = scmp.ne.s32.totalorder %s334, %s335
      %p344 = scmp.eq.s32.totalorder %s39, 0
      %p345 = por %p343, %p344
      %p346 = scmp.ne.s32.totalorder %s334, %s335
      %p347 = scmp.eq.s32.totalorder %s40, 1
      %p348 = por %p346, %p347
      %p350 = scmp.ne.s32.totalorder %s335, %s349
      %p351 = scmp.eq.s32.totalorder %s40, 0
      %p352 = por %p350, %p351
      %s354 = sadd.s32 %s353, 1
      %p357 = scmp.eq.s32.totalorder %s34, 1
      %p358 = scmp.ne.s32.totalorder %s353, %s355
      %p359 = scmp.eq.s32.totalorder %s34, 0
      %p360 = por %p358, %p359
      %p361 = scmp.ne.s32.totalorder %s353, %s355
      %p362 = scmp.eq.s32.totalorder %s39, 1
      %p363 = por %p361, %p362
      %p364 = scmp.ne.s32.totalorder %s355, %s356
      %p365 = scmp.eq.s32.totalorder %s39, 0
      %p366 = por %p364, %p365
      %p367 = scmp.ne.s32.totalorder %s355, %s356
      %p368 = scmp.eq.s32.totalorder %s40, 1
      %p369 = por %p367, %p368
      %p371 = scmp.ne.s32.totalorder %s356, %s370
      %p372 = scmp.eq.s32.totalorder %s40, 0
      %p373 = por %p371, %p372
      %s374 = ssub.s32 %s41, %s53
      %s375 = ssub.s32 %s42, %s49
      %s376 = sor.u32 %s374, %s375
      %p377 = scmp.eq.s32.totalorder %s376, 0
      %s379 = sadd.s32 %s378, 1
      %s380 = scalar_select %p377, %s378, %s379
      %p383 = pneg %p377
      %p384 = scmp.eq.s32.totalorder %s34, 1
      %p385 = por %p383, %p384
      %p386 = scmp.ne.s32.totalorder %s378, %s381
      %p387 = scmp.eq.s32.totalorder %s34, 0
      %p388 = por %p386, %p387
      %p389 = scmp.ne.s32.totalorder %s378, %s381
      %p390 = scmp.eq.s32.totalorder %s39, 1
      %p391 = por %p389, %p390
      %p392 = scmp.ne.s32.totalorder %s381, %s382
      %p393 = scmp.eq.s32.totalorder %s39, 0
      %p394 = por %p392, %p393
      %p395 = scmp.ne.s32.totalorder %s381, %s382
      %p396 = scmp.eq.s32.totalorder %s40, 1
      %p397 = por %p395, %p396
      %p399 = scmp.ne.s32.totalorder %s382, %s398
      %p400 = scmp.eq.s32.totalorder %s40, 0
      %p401 = por %p399, %p400
      %p402 = scmp.le.s32.totalorder 1, %s34
      %p403 = scmp.lt.s32.totalorder %s34, 3
      %p404 = pnand %p402, %p403
      %p405 = pneg %p404
      // Predicated region
      $region9: #{tpu_custom_call.1} parent=5 // pred_check
        _
      $region10: #{tpu_custom_call.1} parent=5 // pred_check_branch
        %407 = sbr.rel (%p404) target = $region12
      $region11: #{tpu_custom_call.1} parent=5 // pred_region
        %s408 = ssub.s32 %s34, 1
        // Predicated region
        $region13: #{tpu_custom_call.1} parent=11 // pred_check
          %p409 = pneg %p93
        $region14: #{tpu_custom_call.1} parent=11 // pred_check_branch
          %411 = sbr.rel (%p409) target = $region16
        $region15: #{tpu_custom_call.1} parent=11 // pred_region
          %s413 = ssub.s32 256, 256
          %414 = vsyncadd [#allocation8], %s413
          %s415 = sshll.u32 [#allocation7], 4
          %s416 = int_to_ptr.vmem [resolvable:$true] %s415
          %421 = dma.hbm_to_vmem [thread:$0]  %s1, 256, %s416, [#allocation8], 64, 64, 4
        $region16: #{tpu_custom_call.1} parent=11 // pred_fallthru
          _
        // Predicated region
        $region17: #{tpu_custom_call.1} parent=11 // pred_check
          %p422 = pneg %p114
        $region18: #{tpu_custom_call.1} parent=11 // pred_check_branch
          %424 = sbr.rel (%p422) target = $region20
        $region19: #{tpu_custom_call.1} parent=11 // pred_region
          %s426 = ssub.s32 16, 16
          %427 = vsyncadd [#allocation8], %s426
          %s429 = sshll.u32 [#allocation9], 4
          %s430 = int_to_ptr.vmem [resolvable:$true] %s429
          %432 = dma.hbm_to_vmem [thread:$0]  %s2, 16, %s430, [#allocation8]
        $region20: #{tpu_custom_call.1} parent=11 // pred_fallthru
          _
        // Predicated region
        $region21: #{tpu_custom_call.1} parent=11 // pred_check
          %p433 = pneg %p135
        $region22: #{tpu_custom_call.1} parent=11 // pred_check_branch
          %435 = sbr.rel (%p433) target = $region24
        $region23: #{tpu_custom_call.1} parent=11 // pred_region
          %s437 = ssub.s32 256, 256
          %438 = vsyncadd [#allocation11], %s437
          %s439 = sshll.u32 [#allocation10], 4
          %s440 = int_to_ptr.vmem [resolvable:$true] %s439
          %445 = dma.hbm_to_vmem [thread:$0]  %s3, 256, %s440, [#allocation11], 64, 64, 4
        $region24: #{tpu_custom_call.1} parent=11 // pred_fallthru
          _
        // Predicated region
        $region25: #{tpu_custom_call.1} parent=11 // pred_check
          %p446 = pneg %p156
        $region26: #{tpu_custom_call.1} parent=11 // pred_check_branch
          %448 = sbr.rel (%p446) target = $region28
        $region27: #{tpu_custom_call.1} parent=11 // pred_region
          %s450 = ssub.s32 16, 16
          %451 = vsyncadd [#allocation11], %s450
          %s453 = sshll.u32 [#allocation12], 4
          %s454 = int_to_ptr.vmem [resolvable:$true] %s453
          %456 = dma.hbm_to_vmem [thread:$0]  %s4, 16, %s454, [#allocation11]
        $region28: #{tpu_custom_call.1} parent=11 // pred_fallthru
          _
        // Predicated region
        $region29: #{tpu_custom_call.1} parent=11 // pred_check
          %p457 = pneg %p177
        $region30: #{tpu_custom_call.1} parent=11 // pred_check_branch
          %459 = sbr.rel (%p457) target = $region32
        $region31: #{tpu_custom_call.1} parent=11 // pred_region
          %s461 = ssub.s32 256, 256
          %462 = vsyncadd [#allocation14], %s461
          %s463 = sshll.u32 [#allocation13], 4
          %s464 = int_to_ptr.vmem [resolvable:$true] %s463
          %469 = dma.hbm_to_vmem [thread:$0]  %s5, 256, %s464, [#allocation14], 64, 64, 4
        $region32: #{tpu_custom_call.1} parent=11 // pred_fallthru
          _
        // Predicated region
        $region33: #{tpu_custom_call.1} parent=11 // pred_check
          %p470 = pneg %p198
        $region34: #{tpu_custom_call.1} parent=11 // pred_check_branch
          %472 = sbr.rel (%p470) target = $region36
        $region35: #{tpu_custom_call.1} parent=11 // pred_region
          %s474 = ssub.s32 16, 16
          %475 = vsyncadd [#allocation14], %s474
          %s477 = sshll.u32 [#allocation15], 4
          %s478 = int_to_ptr.vmem [resolvable:$true] %s477
          %480 = dma.hbm_to_vmem [thread:$0]  %s6, 16, %s478, [#allocation14]
        $region36: #{tpu_custom_call.1} parent=11 // pred_fallthru
          _
        // Predicated region
        $region37: #{tpu_custom_call.1} parent=11 // pred_check
          %p481 = pneg %p219
        $region38: #{tpu_custom_call.1} parent=11 // pred_check_branch
          %483 = sbr.rel (%p481) target = $region40
        $region39: #{tpu_custom_call.1} parent=11 // pred_region
          %s485 = ssub.s32 16, 16
          %486 = vsyncadd [#allocation17], %s485
          %s488 = sshll.u32 [#allocation16], 4
          %s489 = int_to_ptr.vmem [resolvable:$true] %s488
          %491 = dma.hbm_to_vmem [thread:$0]  %s7, 16, %s489, [#allocation17]
        $region40: #{tpu_custom_call.1} parent=11 // pred_fallthru
          _
        // Predicated region
        $region41: #{tpu_custom_call.1} parent=11 // pred_check
          %p492 = pneg %p240
        $region42: #{tpu_custom_call.1} parent=11 // pred_check_branch
          %494 = sbr.rel (%p492) target = $region44
        $region43: #{tpu_custom_call.1} parent=11 // pred_region
          %s496 = ssub.s32 16, 16
          %497 = vsyncadd [#allocation17], %s496
          %s499 = sshll.u32 [#allocation18], 4
          %s500 = int_to_ptr.vmem [resolvable:$true] %s499
          %502 = dma.hbm_to_vmem [thread:$0]  %s8, 16, %s500, [#allocation17]
        $region44: #{tpu_custom_call.1} parent=11 // pred_fallthru
          _
        // Predicated region
        $region45: #{tpu_custom_call.1} parent=11 // pred_check
          %p503 = pneg %p261
        $region46: #{tpu_custom_call.1} parent=11 // pred_check_branch
          %505 = sbr.rel (%p503) target = $region48
        $region47: #{tpu_custom_call.1} parent=11 // pred_region
          %s507 = ssub.s32 256, 256
          %508 = vsyncadd [#allocation20], %s507
          %s509 = sshll.u32 [#allocation19], 4
          %s510 = int_to_ptr.vmem [resolvable:$true] %s509
          %515 = dma.hbm_to_vmem [thread:$0]  %s9, 256, %s510, [#allocation20], 64, 64, 4
        $region48: #{tpu_custom_call.1} parent=11 // pred_fallthru
          _
        // Predicated region
        $region49: #{tpu_custom_call.1} parent=11 // pred_check
          %p516 = pneg %p282
        $region50: #{tpu_custom_call.1} parent=11 // pred_check_branch
          %518 = sbr.rel (%p516) target = $region52
        $region51: #{tpu_custom_call.1} parent=11 // pred_region
          %s520 = ssub.s32 16, 16
          %521 = vsyncadd [#allocation20], %s520
          %s523 = sshll.u32 [#allocation21], 4
          %s524 = int_to_ptr.vmem [resolvable:$true] %s523
          %526 = dma.hbm_to_vmem [thread:$0]  %s10, 16, %s524, [#allocation20]
        $region52: #{tpu_custom_call.1} parent=11 // pred_fallthru
          _
        // Predicated region
        $region53: #{tpu_custom_call.1} parent=11 // pred_check
          %p527 = pneg %p303
        $region54: #{tpu_custom_call.1} parent=11 // pred_check_branch
          %529 = sbr.rel (%p527) target = $region56
        $region55: #{tpu_custom_call.1} parent=11 // pred_region
          %s531 = ssub.s32 1024, 1024
          %532 = vsyncadd [#allocation23], %s531
          %s533 = sshll.u32 [#allocation22], 4
          %s534 = int_to_ptr.vmem [resolvable:$true] %s533
          %539 = dma.hbm_to_vmem [thread:$0]  %s11, 1024, %s534, [#allocation23], 64, 64, 4
        $region56: #{tpu_custom_call.1} parent=11 // pred_fallthru
          _
        // Predicated region
        $region57: #{tpu_custom_call.1} parent=11 // pred_check
          %p540 = pneg %p324
        $region58: #{tpu_custom_call.1} parent=11 // pred_check_branch
          %542 = sbr.rel (%p540) target = $region60
        $region59: #{tpu_custom_call.1} parent=11 // pred_region
          %s544 = ssub.s32 16, 16
          %545 = vsyncadd [#allocation23], %s544
          %s547 = sshll.u32 [#allocation24], 4
          %s548 = int_to_ptr.vmem [resolvable:$true] %s547
          %550 = dma.hbm_to_vmem [thread:$0]  %s12, 16, %s548, [#allocation23]
        $region60: #{tpu_custom_call.1} parent=11 // pred_fallthru
          _
        // Predicated region
        $region61: #{tpu_custom_call.1} parent=11 // pred_check
          %p551 = pneg %p345
        $region62: #{tpu_custom_call.1} parent=11 // pred_check_branch
          %553 = sbr.rel (%p551) target = $region64
        $region63: #{tpu_custom_call.1} parent=11 // pred_region
          %s555 = ssub.s32 16, 16
          %556 = vsyncadd [#allocation26], %s555
          %s558 = sshll.u32 [#allocation25], 4
          %s559 = int_to_ptr.vmem [resolvable:$true] %s558
          %561 = dma.hbm_to_vmem [thread:$0]  %s13, 16, %s559, [#allocation26]
        $region64: #{tpu_custom_call.1} parent=11 // pred_fallthru
          _
        // Predicated region
        $region65: #{tpu_custom_call.1} parent=11 // pred_check
          %p562 = pneg %p366
        $region66: #{tpu_custom_call.1} parent=11 // pred_check_branch
          %564 = sbr.rel (%p562) target = $region68
        $region67: #{tpu_custom_call.1} parent=11 // pred_region
          %s566 = ssub.s32 16, 16
          %567 = vsyncadd [#allocation26], %s566
          %s569 = sshll.u32 [#allocation27], 4
          %s570 = int_to_ptr.vmem [resolvable:$true] %s569
          %572 = dma.hbm_to_vmem [thread:$0]  %s14, 16, %s570, [#allocation26]
        $region68: #{tpu_custom_call.1} parent=11 // pred_fallthru
          _
      $region12: #{tpu_custom_call.1} parent=5 // pred_fallthru
        _
      %p573 = scmp.lt.s32.totalorder %s34, 2
      // Predicated region
      $region69: #{tpu_custom_call.1} parent=5 // pred_check
        %p574 = pneg %p573
      $region70: #{tpu_custom_call.1} parent=5 // pred_check_branch
        %576 = sbr.rel (%p574) target = $region72
      $region71: #{tpu_custom_call.1} parent=5 // pred_region
        // Predicated region
        $region73: #{tpu_custom_call.1} parent=71 // pred_check
          %p577 = pneg %p66
        $region74: #{tpu_custom_call.1} parent=71 // pred_check_branch
          %579 = sbr.rel (%p577) target = $region76
        $region75: #{tpu_custom_call.1} parent=71 // pred_region
          %s580 = sand.u32 %s56, 1
          %s581 = scalar_lea.sflag [#allocation5], %s580
          %s582 = sand.u32 %s56, 1
          %s583 = smul.addr %s582, 8
          %s584 = scalar_lea.vmem [#allocation4], %s583
          %s586 = ssub.s32 128, 128
          %587 = vsyncadd %s581, %s586
          %s588 = smul.addr %s41, 128
          %s589 = scalar_lea.hbm %s0, %s588
          %s591 = sshll.u32 %s584, 4
          %s592 = int_to_ptr.vmem [resolvable:$true] %s591
          %594 = dma.hbm_to_vmem [thread:$0]  %s589, 128, %s592, %s581
        $region76: #{tpu_custom_call.1} parent=71 // pred_fallthru
          _
      $region72: #{tpu_custom_call.1} parent=5 // pred_fallthru
        _
      %p595 = scmp.le.s32.totalorder 1, %s34
      %p596 = scmp.lt.s32.totalorder %s34, 3
      %p597 = pnand %p595, %p596
      %p598 = pneg %p597
      // Predicated region
      $region77: #{tpu_custom_call.1} parent=5 // pred_check
        _
      $region78: #{tpu_custom_call.1} parent=5 // pred_check_branch
        %600 = sbr.rel (%p597) target = $region80
      $region79: #{tpu_custom_call.1} parent=5 // pred_region
        %s601 = ssub.s32 %s34, 1
        %s602 = sand.u32 %s59, 1
        %s603 = scalar_lea.sflag [#allocation5], %s602
        %s604 = sand.u32 %s59, 1
        %s605 = smul.addr %s604, 8
        %s606 = scalar_lea.vmem [#allocation4], %s605
        // Predicated region
        $region81: #{tpu_custom_call.1} parent=79 // pred_check
          %p607 = pneg %p72
        $region82: #{tpu_custom_call.1} parent=79 // pred_check_branch
          %609 = sbr.rel (%p607) target = $region84
        $region83: #{tpu_custom_call.1} parent=79 // pred_region
          %610 = dma.done %s603, 128
        $region84: #{tpu_custom_call.1} parent=79 // pred_fallthru
          _
        // Predicated region
        $region85: #{tpu_custom_call.1} parent=79 // pred_check
          %p611 = pneg %p93
        $region86: #{tpu_custom_call.1} parent=79 // pred_check_branch
          %613 = sbr.rel (%p611) target = $region88
        $region87: #{tpu_custom_call.1} parent=79 // pred_region
          %614 = dma.done [#allocation8], 256
        $region88: #{tpu_custom_call.1} parent=79 // pred_fallthru
          _
        // Predicated region
        $region89: #{tpu_custom_call.1} parent=79 // pred_check
          %p615 = pneg %p114
        $region90: #{tpu_custom_call.1} parent=79 // pred_check_branch
          %617 = sbr.rel (%p615) target = $region92
        $region91: #{tpu_custom_call.1} parent=79 // pred_region
          %618 = dma.done [#allocation8], 16
        $region92: #{tpu_custom_call.1} parent=79 // pred_fallthru
          _
        // Predicated region
        $region93: #{tpu_custom_call.1} parent=79 // pred_check
          %p619 = pneg %p135
        $region94: #{tpu_custom_call.1} parent=79 // pred_check_branch
          %621 = sbr.rel (%p619) target = $region96
        $region95: #{tpu_custom_call.1} parent=79 // pred_region
          %622 = dma.done [#allocation11], 256
        $region96: #{tpu_custom_call.1} parent=79 // pred_fallthru
          _
        // Predicated region
        $region97: #{tpu_custom_call.1} parent=79 // pred_check
          %p623 = pneg %p156
        $region98: #{tpu_custom_call.1} parent=79 // pred_check_branch
          %625 = sbr.rel (%p623) target = $region100
        $region99: #{tpu_custom_call.1} parent=79 // pred_region
          %626 = dma.done [#allocation11], 16
        $region100: #{tpu_custom_call.1} parent=79 // pred_fallthru
          _
        // Predicated region
        $region101: #{tpu_custom_call.1} parent=79 // pred_check
          %p627 = pneg %p177
        $region102: #{tpu_custom_call.1} parent=79 // pred_check_branch
          %629 = sbr.rel (%p627) target = $region104
        $region103: #{tpu_custom_call.1} parent=79 // pred_region
          %630 = dma.done [#allocation14], 256
        $region104: #{tpu_custom_call.1} parent=79 // pred_fallthru
          _
        // Predicated region
        $region105: #{tpu_custom_call.1} parent=79 // pred_check
          %p631 = pneg %p198
        $region106: #{tpu_custom_call.1} parent=79 // pred_check_branch
          %633 = sbr.rel (%p631) target = $region108
        $region107: #{tpu_custom_call.1} parent=79 // pred_region
          %634 = dma.done [#allocation14], 16
        $region108: #{tpu_custom_call.1} parent=79 // pred_fallthru
          _
        // Predicated region
        $region109: #{tpu_custom_call.1} parent=79 // pred_check
          %p635 = pneg %p219
        $region110: #{tpu_custom_call.1} parent=79 // pred_check_branch
          %637 = sbr.rel (%p635) target = $region112
        $region111: #{tpu_custom_call.1} parent=79 // pred_region
          %638 = dma.done [#allocation17], 16
        $region112: #{tpu_custom_call.1} parent=79 // pred_fallthru
          _
        // Predicated region
        $region113: #{tpu_custom_call.1} parent=79 // pred_check
          %p639 = pneg %p240
        $region114: #{tpu_custom_call.1} parent=79 // pred_check_branch
          %641 = sbr.rel (%p639) target = $region116
        $region115: #{tpu_custom_call.1} parent=79 // pred_region
          %642 = dma.done [#allocation17], 16
        $region116: #{tpu_custom_call.1} parent=79 // pred_fallthru
          _
        // Predicated region
        $region117: #{tpu_custom_call.1} parent=79 // pred_check
          %p643 = pneg %p261
        $region118: #{tpu_custom_call.1} parent=79 // pred_check_branch
          %645 = sbr.rel (%p643) target = $region120
        $region119: #{tpu_custom_call.1} parent=79 // pred_region
          %646 = dma.done [#allocation20], 256
        $region120: #{tpu_custom_call.1} parent=79 // pred_fallthru
          _
        // Predicated region
        $region121: #{tpu_custom_call.1} parent=79 // pred_check
          %p647 = pneg %p282
        $region122: #{tpu_custom_call.1} parent=79 // pred_check_branch
          %649 = sbr.rel (%p647) target = $region124
        $region123: #{tpu_custom_call.1} parent=79 // pred_region
          %650 = dma.done [#allocation20], 16
        $region124: #{tpu_custom_call.1} parent=79 // pred_fallthru
          _
        // Predicated region
        $region125: #{tpu_custom_call.1} parent=79 // pred_check
          %p651 = pneg %p303
        $region126: #{tpu_custom_call.1} parent=79 // pred_check_branch
          %653 = sbr.rel (%p651) target = $region128
        $region127: #{tpu_custom_call.1} parent=79 // pred_region
          %654 = dma.done [#allocation23], 1024
        $region128: #{tpu_custom_call.1} parent=79 // pred_fallthru
          _
        // Predicated region
        $region129: #{tpu_custom_call.1} parent=79 // pred_check
          %p655 = pneg %p324
        $region130: #{tpu_custom_call.1} parent=79 // pred_check_branch
          %657 = sbr.rel (%p655) target = $region132
        $region131: #{tpu_custom_call.1} parent=79 // pred_region
          %658 = dma.done [#allocation23], 16
        $region132: #{tpu_custom_call.1} parent=79 // pred_fallthru
          _
        // Predicated region
        $region133: #{tpu_custom_call.1} parent=79 // pred_check
          %p659 = pneg %p345
        $region134: #{tpu_custom_call.1} parent=79 // pred_check_branch
          %661 = sbr.rel (%p659) target = $region136
        $region135: #{tpu_custom_call.1} parent=79 // pred_region
          %662 = dma.done [#allocation26], 16
        $region136: #{tpu_custom_call.1} parent=79 // pred_fallthru
          _
        // Predicated region
        $region137: #{tpu_custom_call.1} parent=79 // pred_check
          %p663 = pneg %p366
        $region138: #{tpu_custom_call.1} parent=79 // pred_check_branch
          %665 = sbr.rel (%p663) target = $region140
        $region139: #{tpu_custom_call.1} parent=79 // pred_region
          %666 = dma.done [#allocation26], 16
        $region140: #{tpu_custom_call.1} parent=79 // pred_fallthru
          _
        %s667 = sand.u32 %s59, 1
        %s668 = scalar_lea.sflag [#allocation5], %s667
        %s669 = sand.u32 %s59, 1
        %s670 = smul.addr %s669, 8
        %s671 = scalar_lea.vmem [#allocation4], %s670
        %p672 = pneg %p72
        %p673 = pneg %p69
        %p674 = pneg %p93
        %p675 = pneg %p90
        %p676 = pneg %p114
        %p677 = pneg %p111
        %p678 = pneg %p135
        %p679 = pneg %p132
        %p680 = pneg %p156
        %p681 = pneg %p153
        %p682 = pneg %p177
        %p683 = pneg %p174
        %p684 = pneg %p198
        %p685 = pneg %p195
        %p686 = pneg %p219
        %p687 = pneg %p216
        %p688 = pneg %p240
        %p689 = pneg %p237
        %p690 = pneg %p261
        %p691 = pneg %p258
        %p692 = pneg %p282
        %p693 = pneg %p279
        %p694 = pneg %p303
        %p695 = pneg %p300
        %p696 = pneg %p324
        %p697 = pneg %p321
        %p698 = pneg %p345
        %p699 = pneg %p342
        %p700 = pneg %p366
        %p701 = pneg %p363
        %p702 = pneg %p394
        %p703 = pneg %p391
        %s704 = sand.u32 %s381, 1
        %s705 = scalar_lea.sflag [#allocation6], %s704
        %s706 = sand.u32 %s381, 1
        %s707 = smul.addr %s706, 8
        %s708 = scalar_lea.vmem [#allocation28], %s707
        %p710 = scmp.eq.s32.totalorder %s44, 0
        // Predicated region
        $region141: #{tpu_custom_call.1} parent=79 // pred_check
          %p711 = pneg %p710
        $region142: #{tpu_custom_call.1} parent=79 // pred_check_branch
          %713 = sbr.rel (%p711) target = $region144
        $region143: #{tpu_custom_call.1} parent=79 // pred_region
          %v714 = vld [vmem:[%s606] sm:$0xff]
          %v715 = vpack.c.bf16 %v714, %v714
          %v716 = vld [vmem:[#allocation10] sm:$0xf]
          %v717 = vld [vmem:[#allocation10 + $0x4] sm:$0xf]
          %v718 = vld [vmem:[#allocation10 + $0x8] sm:$0xf]
          %v719 = vld [vmem:[#allocation10 + $0xc] sm:$0xf]
          %v720 = vld [vmem:[#allocation12] sm:$0x1]
          %v722 = vlaneseq
          %v723 = vshrl.u32 %v722, 7
          %v724 = vsub.s32 0, %v723
          %v725 = vrot.slane %v720, %v724
          %v731 = vunpack.c.l.b16 %v716
          %v732 = vunpack.c.l.b16 %v717
          %v733 = vunpack.c.l.b16 %v718
          %v734 = vunpack.c.l.b16 %v719
          %v735 = vpack.c.b16 %v732, %v731
          %v736 = vpack.c.b16 %v734, %v733
          %vm739 = vcmask 261120
          %v741 = vsel %vm739, %v715, 0
          %743 = vmatprep.subr.bf16.mxu0 0
          %744 = vmatpush1.bf16.msra.mxu0 %v735
          %745 = vmatprep.subr.bf16.mxu0 0
          %746 = vmatpush1.bf16.msra.mxu0 %v736
          %747 = vmatprep.subr.bf16.mxu0 0
          %748 = vmatpush1.bf16.msra.mxu0 0
          %749 = vmatprep.subr.bf16.mxu0 0
          %750 = vmatpush1.bf16.msra.mxu0 0
          %751 = vmatprep.subr.bf16.mxu0 0
          %752 = vmatpush1.bf16.msra.mxu0 0
          %753 = vmatprep.subr.bf16.mxu0 0
          %754 = vmatpush1.bf16.msra.mxu0 0
          %755 = vmatprep.subr.bf16.mxu0 0
          %756 = vmatpush1.bf16.msra.mxu0 0
          %757 = vmatprep.subr.bf16.mxu0 0
          %758 = vmatpush1.bf16.msra.mxu0 0
          %759 = vmatprep.subr.bf16.mxu0 0
          %760 = vmatpush1.bf16.msra.mxu0 0
          %761 = vmatprep.subr.bf16.mxu0 0
          %762 = vmatpush1.bf16.msra.mxu0 0
          %763 = vmatprep.subr.bf16.mxu0 0
          %764 = vmatpush1.bf16.msra.mxu0 0
          %765 = vmatprep.subr.bf16.mxu0 0
          %766 = vmatpush1.bf16.msra.mxu0 0
          %767 = vmatprep.subr.bf16.mxu0 0
          %768 = vmatpush1.bf16.msra.mxu0 0
          %769 = vmatprep.subr.bf16.mxu0 0
          %770 = vmatpush1.bf16.msra.mxu0 0
          %771 = vmatprep.subr.bf16.mxu0 0
          %772 = vmatpush1.bf16.msra.mxu0 0
          %773 = vmatprep.subr.bf16.mxu0 0
          %774 = vmatpush1.bf16.msra.mxu0 0
          %775 = vmatprep.mubr.bf16.mxu0 0
          %776 = vmatmul.mubr.bf16.gmra.mrb[0].mxu0 %v741
          %v777 = vpop.f32.mrb[0].mxu0
          %v778 = vadd.f32 %v725, %v777
          %v779 = vpop.f32.mrb[0].mxu0
          %v780 = vpop.f32.mrb[0].mxu0
          %v781 = vpop.f32.mrb[0].mxu0
          %782 = vdwg.mxu0
          %v783 = vpack.c.bf16 %v778, %v778
          %vm784 = vcmask 60416
          %785 = vst.msk [vmem:[#allocation2] sm:$0xf] %vm784, %v783
          %v787 = vunpack.c.l.b16 %v783
          %v788 = vpack.c.b16 %v787, %v787
          %789 = vrot.lane.b32.xlu0 %v788, 96
          %v790 = vpop.permute.xlu0 %789
          %792 = vst.msk [vmem:[#allocation3] sm:$0xf] %vm784, %v790
          %793 = vrot.lane.b32.xlu0 %v788, 120
          %v794 = vpop.permute.xlu0 %793
          %s796 = scalar_lea.vmem [#allocation2], 4
          %797 = vst.msk [vmem:[%s796] sm:$0xf] %vm784, %v794
          %798 = vrot.lane.b32.xlu0 %v788, 88
          %v799 = vpop.permute.xlu0 %798
          %s801 = scalar_lea.vmem [#allocation3], 4
          %802 = vst.msk [vmem:[%s801] sm:$0xf] %vm784, %v799
          %803 = vrot.lane.b32.xlu0 %v788, 112
          %v804 = vpop.permute.xlu0 %803
          %s806 = scalar_lea.vmem [#allocation2], 8
          %807 = vst.msk [vmem:[%s806] sm:$0xf] %vm784, %v804
          %808 = vrot.lane.b32.xlu0 %v788, 80
          %v809 = vpop.permute.xlu0 %808
          %s811 = scalar_lea.vmem [#allocation3], 8
          %812 = vst.msk [vmem:[%s811] sm:$0xf] %vm784, %v809
          %813 = vrot.lane.b32.xlu0 %v788, 104
          %v814 = vpop.permute.xlu0 %813
          %s816 = scalar_lea.vmem [#allocation2], 12
          %817 = vst.msk [vmem:[%s816] sm:$0xf] %vm784, %v814
          %818 = vrot.lane.b32.xlu0 %v788, 72
          %v819 = vpop.permute.xlu0 %818
          %s821 = scalar_lea.vmem [#allocation3], 12
          %822 = vst.msk [vmem:[%s821] sm:$0xf] %vm784, %v819
        $region144: #{tpu_custom_call.1} parent=79 // pred_fallthru
          _
        %s823 = smul.u32 %s44, 8
        %s824 = scalar_lea.vmem %s606, %s823 [#allocation4]
        %v825 = vld [vmem:[%s824] sm:$0xff]
        %v826 = vpack.c.bf16 %v825, %v825
        %v827 = vld [vmem:[#allocation7] sm:$0xf]
        %v828 = vld [vmem:[#allocation7 + $0x4] sm:$0xf]
        %v829 = vld [vmem:[#allocation7 + $0x8] sm:$0xf]
        %v830 = vld [vmem:[#allocation7 + $0xc] sm:$0xf]
        %v831 = vld [vmem:[#allocation9] sm:$0x1]
        %v833 = vlaneseq
        %v834 = vshrl.u32 %v833, 7
        %v835 = vsub.s32 0, %v834
        %v836 = vrot.slane %v831, %v835
        %v842 = vunpack.c.l.b16 %v827
        %v843 = vunpack.c.l.b16 %v828
        %v844 = vunpack.c.l.b16 %v829
        %v845 = vunpack.c.l.b16 %v830
        %v846 = vpack.c.b16 %v843, %v842
        %v847 = vpack.c.b16 %v845, %v844
        %vm850 = vcmask 261120
        %v852 = vsel %vm850, %v826, 0
        %854 = vmatprep.subr.bf16.mxu0 0
        %855 = vmatpush1.bf16.msra.mxu0 %v846
        %856 = vmatprep.subr.bf16.mxu0 0
        %857 = vmatpush1.bf16.msra.mxu0 %v847
        %858 = vmatprep.subr.bf16.mxu0 0
        %859 = vmatpush1.bf16.msra.mxu0 0
        %860 = vmatprep.subr.bf16.mxu0 0
        %861 = vmatpush1.bf16.msra.mxu0 0
        %862 = vmatprep.subr.bf16.mxu0 0
        %863 = vmatpush1.bf16.msra.mxu0 0
        %864 = vmatprep.subr.bf16.mxu0 0
        %865 = vmatpush1.bf16.msra.mxu0 0
        %866 = vmatprep.subr.bf16.mxu0 0
        %867 = vmatpush1.bf16.msra.mxu0 0
        %868 = vmatprep.subr.bf16.mxu0 0
        %869 = vmatpush1.bf16.msra.mxu0 0
        %870 = vmatprep.subr.bf16.mxu0 0
        %871 = vmatpush1.bf16.msra.mxu0 0
        %872 = vmatprep.subr.bf16.mxu0 0
        %873 = vmatpush1.bf16.msra.mxu0 0
        %874 = vmatprep.subr.bf16.mxu0 0
        %875 = vmatpush1.bf16.msra.mxu0 0
        %876 = vmatprep.subr.bf16.mxu0 0
        %877 = vmatpush1.bf16.msra.mxu0 0
        %878 = vmatprep.subr.bf16.mxu0 0
        %879 = vmatpush1.bf16.msra.mxu0 0
        %880 = vmatprep.subr.bf16.mxu0 0
        %881 = vmatpush1.bf16.msra.mxu0 0
        %882 = vmatprep.subr.bf16.mxu0 0
        %883 = vmatpush1.bf16.msra.mxu0 0
        %884 = vmatprep.subr.bf16.mxu0 0
        %885 = vmatpush1.bf16.msra.mxu0 0
        %886 = vmatprep.mubr.bf16.mxu0 0
        %887 = vmatmul.mubr.bf16.gmra.mrb[0].mxu0 %v852
        %v888 = vpop.f32.mrb[0].mxu0
        %v889 = vadd.f32 %v836, %v888
        %v890 = vpop.f32.mrb[0].mxu0
        %v891 = vpop.f32.mrb[0].mxu0
        %v892 = vpop.f32.mrb[0].mxu0
        %893 = vdwg.mxu0
        %v894 = vmul.f32 %v889, 0.35355338
        %v895 = vpack.c.bf16 %v894, %v894
        %897 = vrot.lane.b32.xlu0 %v895, 120
        %v898 = vpop.permute.xlu0 %897
        %899 = vrot.lane.b32.xlu0 %v895, 112
        %v900 = vpop.permute.xlu0 %899
        %901 = vrot.lane.b32.xlu0 %v895, 104
        %v902 = vpop.permute.xlu0 %901
        %v903 = vld [vmem:[#allocation2] sm:$0xf]
        %v904 = vld [vmem:[#allocation2 + $0x4] sm:$0xf]
        %v905 = vld [vmem:[#allocation2 + $0x8] sm:$0xf]
        %v906 = vld [vmem:[#allocation2 + $0xc] sm:$0xf]
        %v907 = vld [vmem:[#allocation3] sm:$0xf]
        %v908 = vld [vmem:[#allocation3 + $0x4] sm:$0xf]
        %v909 = vld [vmem:[#allocation3 + $0x8] sm:$0xf]
        %v910 = vld [vmem:[#allocation3 + $0xc] sm:$0xf]
        %vm911 = vcmask 64512
        %v913 = vsel %vm911, %v895, 0
        %v916 = vsel %vm911, %v903, 0
        %918 = vmatprep.subr.bf16.mxu0 0
        %919 = vmatpush1.bf16.xpose.msra.mxu0 %v916
        %920 = vmatprep.subr.bf16.mxu0 0
        %921 = vmatpush1.bf16.xpose.msra.mxu0 0
        %922 = vmatprep.subr.bf16.mxu0 0
        %923 = vmatpush1.bf16.xpose.msra.mxu0 0
        %924 = vmatprep.subr.bf16.mxu0 0
        %925 = vmatpush1.bf16.xpose.msra.mxu0 0
        %926 = vmatprep.subr.bf16.mxu0 0
        %927 = vmatpush1.bf16.xpose.msra.mxu0 0
        %928 = vmatprep.subr.bf16.mxu0 0
        %929 = vmatpush1.bf16.xpose.msra.mxu0 0
        %930 = vmatprep.subr.bf16.mxu0 0
        %931 = vmatpush1.bf16.xpose.msra.mxu0 0
        %932 = vmatprep.subr.bf16.mxu0 0
        %933 = vmatpush1.bf16.xpose.msra.mxu0 0
        %934 = vmatprep.subr.bf16.mxu0 0
        %935 = vmatpush1.bf16.xpose.msra.mxu0 0
        %936 = vmatprep.subr.bf16.mxu0 0
        %937 = vmatpush1.bf16.xpose.msra.mxu0 0
        %938 = vmatprep.subr.bf16.mxu0 0
        %939 = vmatpush1.bf16.xpose.msra.mxu0 0
        %940 = vmatprep.subr.bf16.mxu0 0
        %941 = vmatpush1.bf16.xpose.msra.mxu0 0
        %942 = vmatprep.subr.bf16.mxu0 0
        %943 = vmatpush1.bf16.xpose.msra.mxu0 0
        %944 = vmatprep.subr.bf16.mxu0 0
        %945 = vmatpush1.bf16.xpose.msra.mxu0 0
        %946 = vmatprep.subr.bf16.mxu0 0
        %947 = vmatpush1.bf16.xpose.msra.mxu0 0
        %948 = vmatprep.subr.bf16.mxu0 0
        %949 = vmatpush1.bf16.xpose.msra.mxu0 0
        %950 = vmatprep.mubr.bf16.mxu0 0
        %951 = vmatmul.mubr.bf16.gmra.mrb[0].mxu0 %v913
        %v952 = vpop.f32.mrb[0].mxu0
        %v953 = vadd.f32 0.0, %v952
        %v954 = vpop.f32.mrb[0].mxu0
        %v955 = vpop.f32.mrb[0].mxu0
        %v956 = vpop.f32.mrb[0].mxu0
        %957 = vdwg.mxu0
        %v959 = vsel %vm911, %v898, 0
        %v962 = vsel %vm911, %v904, 0
        %964 = vmatprep.subr.bf16.mxu0 0
        %965 = vmatpush1.bf16.xpose.msra.mxu0 %v962
        %966 = vmatprep.subr.bf16.mxu0 0
        %967 = vmatpush1.bf16.xpose.msra.mxu0 0
        %968 = vmatprep.subr.bf16.mxu0 0
        %969 = vmatpush1.bf16.xpose.msra.mxu0 0
        %970 = vmatprep.subr.bf16.mxu0 0
        %971 = vmatpush1.bf16.xpose.msra.mxu0 0
        %972 = vmatprep.subr.bf16.mxu0 0
        %973 = vmatpush1.bf16.xpose.msra.mxu0 0
        %974 = vmatprep.subr.bf16.mxu0 0
        %975 = vmatpush1.bf16.xpose.msra.mxu0 0
        %976 = vmatprep.subr.bf16.mxu0 0
        %977 = vmatpush1.bf16.xpose.msra.mxu0 0
        %978 = vmatprep.subr.bf16.mxu0 0
        %979 = vmatpush1.bf16.xpose.msra.mxu0 0
        %980 = vmatprep.subr.bf16.mxu0 0
        %981 = vmatpush1.bf16.xpose.msra.mxu0 0
        %982 = vmatprep.subr.bf16.mxu0 0
        %983 = vmatpush1.bf16.xpose.msra.mxu0 0
        %984 = vmatprep.subr.bf16.mxu0 0
        %985 = vmatpush1.bf16.xpose.msra.mxu0 0
        %986 = vmatprep.subr.bf16.mxu0 0
        %987 = vmatpush1.bf16.xpose.msra.mxu0 0
        %988 = vmatprep.subr.bf16.mxu0 0
        %989 = vmatpush1.bf16.xpose.msra.mxu0 0
        %990 = vmatprep.subr.bf16.mxu0 0
        %991 = vmatpush1.bf16.xpose.msra.mxu0 0
        %992 = vmatprep.subr.bf16.mxu0 0
        %993 = vmatpush1.bf16.xpose.msra.mxu0 0
        %994 = vmatprep.subr.bf16.mxu0 0
        %995 = vmatpush1.bf16.xpose.msra.mxu0 0
        %996 = vmatprep.mubr.bf16.mxu0 0
        %997 = vmatmul.mubr.bf16.gmra.mrb[0].mxu0 %v959
        %v998 = vpop.f32.mrb[0].mxu0
        %v999 = vadd.f32 0.0, %v998
        %v1000 = vpop.f32.mrb[0].mxu0
        %v1001 = vpop.f32.mrb[0].mxu0
        %v1002 = vpop.f32.mrb[0].mxu0
        %1003 = vdwg.mxu0
        %v1005 = vsel %vm911, %v900, 0
        %v1008 = vsel %vm911, %v905, 0
        %1010 = vmatprep.subr.bf16.mxu0 0
        %1011 = vmatpush1.bf16.xpose.msra.mxu0 %v1008
        %1012 = vmatprep.subr.bf16.mxu0 0
        %1013 = vmatpush1.bf16.xpose.msra.mxu0 0
        %1014 = vmatprep.subr.bf16.mxu0 0
        %1015 = vmatpush1.bf16.xpose.msra.mxu0 0
        %1016 = vmatprep.subr.bf16.mxu0 0
        %1017 = vmatpush1.bf16.xpose.msra.mxu0 0
        %1018 = vmatprep.subr.bf16.mxu0 0
        %1019 = vmatpush1.bf16.xpose.msra.mxu0 0
        %1020 = vmatprep.subr.bf16.mxu0 0
        %1021 = vmatpush1.bf16.xpose.msra.mxu0 0
        %1022 = vmatprep.subr.bf16.mxu0 0
        %1023 = vmatpush1.bf16.xpose.msra.mxu0 0
        %1024 = vmatprep.subr.bf16.mxu0 0
        %1025 = vmatpush1.bf16.xpose.msra.mxu0 0
        %1026 = vmatprep.subr.bf16.mxu0 0
        %1027 = vmatpush1.bf16.xpose.msra.mxu0 0
        %1028 = vmatprep.subr.bf16.mxu0 0
        %1029 = vmatpush1.bf16.xpose.msra.mxu0 0
        %1030 = vmatprep.subr.bf16.mxu0 0
        %1031 = vmatpush1.bf16.xpose.msra.mxu0 0
        %1032 = vmatprep.subr.bf16.mxu0 0
        %1033 = vmatpush1.bf16.xpose.msra.mxu0 0
        %1034 = vmatprep.subr.bf16.mxu0 0
        %1035 = vmatpush1.bf16.xpose.msra.mxu0 0
        %1036 = vmatprep.subr.bf16.mxu0 0
        %1037 = vmatpush1.bf16.xpose.msra.mxu0 0
        %1038 = vmatprep.subr.bf16.mxu0 0
        %1039 = vmatpush1.bf16.xpose.msra.mxu0 0
        %1040 = vmatprep.subr.bf16.mxu0 0
        %1041 = vmatpush1.bf16.xpose.msra.mxu0 0
        %1042 = vmatprep.mubr.bf16.mxu0 0
        %1043 = vmatmul.mubr.bf16.gmra.mrb[0].mxu0 %v1005
        %v1044 = vpop.f32.mrb[0].mxu0
        %v1045 = vadd.f32 0.0, %v1044
        %v1046 = vpop.f32.mrb[0].mxu0
        %v1047 = vpop.f32.mrb[0].mxu0
        %v1048 = vpop.f32.mrb[0].mxu0
        %1049 = vdwg.mxu0
        %v1051 = vsel %vm911, %v902, 0
        %v1054 = vsel %vm911, %v906, 0
        %1056 = vmatprep.subr.bf16.mxu0 0
        %1057 = vmatpush1.bf16.xpose.msra.mxu0 %v1054
        %1058 = vmatprep.subr.bf16.mxu0 0
        %1059 = vmatpush1.bf16.xpose.msra.mxu0 0
        %1060 = vmatprep.subr.bf16.mxu0 0
        %1061 = vmatpush1.bf16.xpose.msra.mxu0 0
        %1062 = vmatprep.subr.bf16.mxu0 0
        %1063 = vmatpush1.bf16.xpose.msra.mxu0 0
        %1064 = vmatprep.subr.bf16.mxu0 0
        %1065 = vmatpush1.bf16.xpose.msra.mxu0 0
        %1066 = vmatprep.subr.bf16.mxu0 0
        %1067 = vmatpush1.bf16.xpose.msra.mxu0 0
        %1068 = vmatprep.subr.bf16.mxu0 0
        %1069 = vmatpush1.bf16.xpose.msra.mxu0 0
        %1070 = vmatprep.subr.bf16.mxu0 0
        %1071 = vmatpush1.bf16.xpose.msra.mxu0 0
        %1072 = vmatprep.subr.bf16.mxu0 0
        %1073 = vmatpush1.bf16.xpose.msra.mxu0 0
        %1074 = vmatprep.subr.bf16.mxu0 0
        %1075 = vmatpush1.bf16.xpose.msra.mxu0 0
        %1076 = vmatprep.subr.bf16.mxu0 0
        %1077 = vmatpush1.bf16.xpose.msra.mxu0 0
        %1078 = vmatprep.subr.bf16.mxu0 0
        %1079 = vmatpush1.bf16.xpose.msra.mxu0 0
        %1080 = vmatprep.subr.bf16.mxu0 0
        %1081 = vmatpush1.bf16.xpose.msra.mxu0 0
        %1082 = vmatprep.subr.bf16.mxu0 0
        %1083 = vmatpush1.bf16.xpose.msra.mxu0 0
        %1084 = vmatprep.subr.bf16.mxu0 0
        %1085 = vmatpush1.bf16.xpose.msra.mxu0 0
        %1086 = vmatprep.subr.bf16.mxu0 0
        %1087 = vmatpush1.bf16.xpose.msra.mxu0 0
        %1088 = vmatprep.mubr.bf16.mxu0 0
        %1089 = vmatmul.mubr.bf16.gmra.mrb[0].mxu0 %v1051
        %v1090 = vpop.f32.mrb[0].mxu0
        %v1091 = vadd.f32 0.0, %v1090
        %v1092 = vpop.f32.mrb[0].mxu0
        %v1093 = vpop.f32.mrb[0].mxu0
        %v1094 = vpop.f32.mrb[0].mxu0
        %1095 = vdwg.mxu0
        %v1096 = vsel %vm911, %v953, -inf
        %1097 = vmax.xlane.f32.xlu0 %v1096
        %v1098 = vpop.xlane.xlu0 %1097
        %v1099 = vsel %vm911, %v999, -inf
        %1100 = vmax.xlane.f32.xlu0 %v1099
        %v1101 = vpop.xlane.xlu0 %1100
        %v1102 = vsel %vm911, %v1045, -inf
        %1103 = vmax.xlane.f32.xlu0 %v1102
        %v1104 = vpop.xlane.xlu0 %1103
        %v1105 = vsel %vm911, %v1091, -inf
        %1106 = vmax.xlane.f32.xlu0 %v1105
        %v1107 = vpop.xlane.xlu0 %1106
        %v1108 = vsub.f32 -inf, %v1098
        %v1109 = vsub.f32 -inf, %v1101
        %v1110 = vsub.f32 -inf, %v1104
        %v1111 = vsub.f32 -inf, %v1107
        %v1112 = vmul.f32 %v1108, 1.442695
        %v1113 = vpow.pop %v1112
        %v1114 = vmul.f32 %v1109, 1.442695
        %v1115 = vpow.pop %v1114
        %v1116 = vmul.f32 %v1110, 1.442695
        %v1117 = vpow.pop %v1116
        %v1118 = vmul.f32 %v1111, 1.442695
        %v1119 = vpow.pop %v1118
        %v1120 = vsub.f32 %v953, %v1098
        %v1121 = vsub.f32 %v999, %v1101
        %v1122 = vsub.f32 %v1045, %v1104
        %v1123 = vsub.f32 %v1091, %v1107
        %v1124 = vmul.f32 %v1120, 1.442695
        %v1125 = vpow.pop %v1124
        %v1126 = vmul.f32 %v1121, 1.442695
        %v1127 = vpow.pop %v1126
        %v1128 = vmul.f32 %v1122, 1.442695
        %v1129 = vpow.pop %v1128
        %v1130 = vmul.f32 %v1123, 1.442695
        %v1131 = vpow.pop %v1130
        %v1132 = vmul.f32 %v1113, 0.0
        %v1133 = vmul.f32 %v1115, 0.0
        %v1134 = vmul.f32 %v1117, 0.0
        %v1135 = vmul.f32 %v1119, 0.0
        %v1136 = vsel %vm911, %v1125, 0.0
        %1137 = vadd.xlane.f32.xlu0 %v1136
        %v1138 = vpop.xlane.xlu0 %1137
        %v1139 = vsel %vm911, %v1127, 0.0
        %1140 = vadd.xlane.f32.xlu0 %v1139
        %v1141 = vpop.xlane.xlu0 %1140
        %v1142 = vsel %vm911, %v1129, 0.0
        %1143 = vadd.xlane.f32.xlu0 %v1142
        %v1144 = vpop.xlane.xlu0 %1143
        %v1145 = vsel %vm911, %v1131, 0.0
        %1146 = vadd.xlane.f32.xlu0 %v1145
        %v1147 = vpop.xlane.xlu0 %1146
        %v1148 = vadd.f32 %v1132, %v1138
        %v1149 = vadd.f32 %v1133, %v1141
        %v1150 = vadd.f32 %v1134, %v1144
        %v1151 = vadd.f32 %v1135, %v1147
        %v1152 = vpack.c.bf16 %v1125, %v1125
        %v1153 = vpack.c.bf16 %v1127, %v1127
        %v1154 = vpack.c.bf16 %v1129, %v1129
        %v1155 = vpack.c.bf16 %v1131, %v1131
        %v1157 = vsel %vm911, %v1152, 0
        %vm1159 = vcmask 1043456
        %v1161 = vsel %vm1159, %v907, 0
        %1163 = vmatprep.subr.bf16.mxu0 0
        %1164 = vmatpush1.bf16.msra.mxu0 %v1161
        %1165 = vmatprep.subr.bf16.mxu0 0
        %1166 = vmatpush1.bf16.msra.mxu0 0
        %1167 = vmatprep.subr.bf16.mxu0 0
        %1168 = vmatpush1.bf16.msra.mxu0 0
        %1169 = vmatprep.subr.bf16.mxu0 0
        %1170 = vmatpush1.bf16.msra.mxu0 0
        %1171 = vmatprep.subr.bf16.mxu0 0
        %1172 = vmatpush1.bf16.msra.mxu0 0
        %1173 = vmatprep.subr.bf16.mxu0 0
        %1174 = vmatpush1.bf16.msra.mxu0 0
        %1175 = vmatprep.subr.bf16.mxu0 0
        %1176 = vmatpush1.bf16.msra.mxu0 0
        %1177 = vmatprep.subr.bf16.mxu0 0
        %1178 = vmatpush1.bf16.msra.mxu0 0
        %1179 = vmatprep.subr.bf16.mxu0 0
        %1180 = vmatpush1.bf16.msra.mxu0 0
        %1181 = vmatprep.subr.bf16.mxu0 0
        %1182 = vmatpush1.bf16.msra.mxu0 0
        %1183 = vmatprep.subr.bf16.mxu0 0
        %1184 = vmatpush1.bf16.msra.mxu0 0
        %1185 = vmatprep.subr.bf16.mxu0 0
        %1186 = vmatpush1.bf16.msra.mxu0 0
        %1187 = vmatprep.subr.bf16.mxu0 0
        %1188 = vmatpush1.bf16.msra.mxu0 0
        %1189 = vmatprep.subr.bf16.mxu0 0
        %1190 = vmatpush1.bf16.msra.mxu0 0
        %1191 = vmatprep.subr.bf16.mxu0 0
        %1192 = vmatpush1.bf16.msra.mxu0 0
        %1193 = vmatprep.subr.bf16.mxu0 0
        %1194 = vmatpush1.bf16.msra.mxu0 0
        %1195 = vmatprep.mubr.bf16.mxu0 0
        %1196 = vmatmul.mubr.bf16.gmra.mrb[0].mxu0 %v1157
        %v1197 = vpop.f32.mrb[0].mxu0
        %v1198 = vadd.f32 0.0, %v1197
        %v1199 = vpop.f32.mrb[0].mxu0
        %v1200 = vpop.f32.mrb[0].mxu0
        %v1201 = vpop.f32.mrb[0].mxu0
        %1202 = vdwg.mxu0
        %v1204 = vsel %vm911, %v1153, 0
        %v1207 = vsel %vm1159, %v908, 0
        %1209 = vmatprep.subr.bf16.mxu0 0
        %1210 = vmatpush1.bf16.msra.mxu0 %v1207
        %1211 = vmatprep.subr.bf16.mxu0 0
        %1212 = vmatpush1.bf16.msra.mxu0 0
        %1213 = vmatprep.subr.bf16.mxu0 0
        %1214 = vmatpush1.bf16.msra.mxu0 0
        %1215 = vmatprep.subr.bf16.mxu0 0
        %1216 = vmatpush1.bf16.msra.mxu0 0
        %1217 = vmatprep.subr.bf16.mxu0 0
        %1218 = vmatpush1.bf16.msra.mxu0 0
        %1219 = vmatprep.subr.bf16.mxu0 0
        %1220 = vmatpush1.bf16.msra.mxu0 0
        %1221 = vmatprep.subr.bf16.mxu0 0
        %1222 = vmatpush1.bf16.msra.mxu0 0
        %1223 = vmatprep.subr.bf16.mxu0 0
        %1224 = vmatpush1.bf16.msra.mxu0 0
        %1225 = vmatprep.subr.bf16.mxu0 0
        %1226 = vmatpush1.bf16.msra.mxu0 0
        %1227 = vmatprep.subr.bf16.mxu0 0
        %1228 = vmatpush1.bf16.msra.mxu0 0
        %1229 = vmatprep.subr.bf16.mxu0 0
        %1230 = vmatpush1.bf16.msra.mxu0 0
        %1231 = vmatprep.subr.bf16.mxu0 0
        %1232 = vmatpush1.bf16.msra.mxu0 0
        %1233 = vmatprep.subr.bf16.mxu0 0
        %1234 = vmatpush1.bf16.msra.mxu0 0
        %1235 = vmatprep.subr.bf16.mxu0 0
        %1236 = vmatpush1.bf16.msra.mxu0 0
        %1237 = vmatprep.subr.bf16.mxu0 0
        %1238 = vmatpush1.bf16.msra.mxu0 0
        %1239 = vmatprep.subr.bf16.mxu0 0
        %1240 = vmatpush1.bf16.msra.mxu0 0
        %1241 = vmatprep.mubr.bf16.mxu0 0
        %1242 = vmatmul.mubr.bf16.gmra.mrb[0].mxu0 %v1204
        %v1243 = vpop.f32.mrb[0].mxu0
        %v1244 = vadd.f32 0.0, %v1243
        %v1245 = vpop.f32.mrb[0].mxu0
        %v1246 = vpop.f32.mrb[0].mxu0
        %v1247 = vpop.f32.mrb[0].mxu0
        %1248 = vdwg.mxu0
        %v1250 = vsel %vm911, %v1154, 0
        %v1253 = vsel %vm1159, %v909, 0
        %1255 = vmatprep.subr.bf16.mxu0 0
        %1256 = vmatpush1.bf16.msra.mxu0 %v1253
        %1257 = vmatprep.subr.bf16.mxu0 0
        %1258 = vmatpush1.bf16.msra.mxu0 0
        %1259 = vmatprep.subr.bf16.mxu0 0
        %1260 = vmatpush1.bf16.msra.mxu0 0
        %1261 = vmatprep.subr.bf16.mxu0 0
        %1262 = vmatpush1.bf16.msra.mxu0 0
        %1263 = vmatprep.subr.bf16.mxu0 0
        %1264 = vmatpush1.bf16.msra.mxu0 0
        %1265 = vmatprep.subr.bf16.mxu0 0
        %1266 = vmatpush1.bf16.msra.mxu0 0
        %1267 = vmatprep.subr.bf16.mxu0 0
        %1268 = vmatpush1.bf16.msra.mxu0 0
        %1269 = vmatprep.subr.bf16.mxu0 0
        %1270 = vmatpush1.bf16.msra.mxu0 0
        %1271 = vmatprep.subr.bf16.mxu0 0
        %1272 = vmatpush1.bf16.msra.mxu0 0
        %1273 = vmatprep.subr.bf16.mxu0 0
        %1274 = vmatpush1.bf16.msra.mxu0 0
        %1275 = vmatprep.subr.bf16.mxu0 0
        %1276 = vmatpush1.bf16.msra.mxu0 0
        %1277 = vmatprep.subr.bf16.mxu0 0
        %1278 = vmatpush1.bf16.msra.mxu0 0
        %1279 = vmatprep.subr.bf16.mxu0 0
        %1280 = vmatpush1.bf16.msra.mxu0 0
        %1281 = vmatprep.subr.bf16.mxu0 0
        %1282 = vmatpush1.bf16.msra.mxu0 0
        %1283 = vmatprep.subr.bf16.mxu0 0
        %1284 = vmatpush1.bf16.msra.mxu0 0
        %1285 = vmatprep.subr.bf16.mxu0 0
        %1286 = vmatpush1.bf16.msra.mxu0 0
        %1287 = vmatprep.mubr.bf16.mxu0 0
        %1288 = vmatmul.mubr.bf16.gmra.mrb[0].mxu0 %v1250
        %v1289 = vpop.f32.mrb[0].mxu0
        %v1290 = vadd.f32 0.0, %v1289
        %v1291 = vpop.f32.mrb[0].mxu0
        %v1292 = vpop.f32.mrb[0].mxu0
        %v1293 = vpop.f32.mrb[0].mxu0
        %1294 = vdwg.mxu0
        %v1296 = vsel %vm911, %v1155, 0
        %v1299 = vsel %vm1159, %v910, 0
        %1301 = vmatprep.subr.bf16.mxu0 0
        %1302 = vmatpush1.bf16.msra.mxu0 %v1299
        %1303 = vmatprep.subr.bf16.mxu0 0
        %1304 = vmatpush1.bf16.msra.mxu0 0
        %1305 = vmatprep.subr.bf16.mxu0 0
        %1306 = vmatpush1.bf16.msra.mxu0 0
        %1307 = vmatprep.subr.bf16.mxu0 0
        %1308 = vmatpush1.bf16.msra.mxu0 0
        %1309 = vmatprep.subr.bf16.mxu0 0
        %1310 = vmatpush1.bf16.msra.mxu0 0
        %1311 = vmatprep.subr.bf16.mxu0 0
        %1312 = vmatpush1.bf16.msra.mxu0 0
        %1313 = vmatprep.subr.bf16.mxu0 0
        %1314 = vmatpush1.bf16.msra.mxu0 0
        %1315 = vmatprep.subr.bf16.mxu0 0
        %1316 = vmatpush1.bf16.msra.mxu0 0
        %1317 = vmatprep.subr.bf16.mxu0 0
        %1318 = vmatpush1.bf16.msra.mxu0 0
        %1319 = vmatprep.subr.bf16.mxu0 0
        %1320 = vmatpush1.bf16.msra.mxu0 0
        %1321 = vmatprep.subr.bf16.mxu0 0
        %1322 = vmatpush1.bf16.msra.mxu0 0
        %1323 = vmatprep.subr.bf16.mxu0 0
        %1324 = vmatpush1.bf16.msra.mxu0 0
        %1325 = vmatprep.subr.bf16.mxu0 0
        %1326 = vmatpush1.bf16.msra.mxu0 0
        %1327 = vmatprep.subr.bf16.mxu0 0
        %1328 = vmatpush1.bf16.msra.mxu0 0
        %1329 = vmatprep.subr.bf16.mxu0 0
        %1330 = vmatpush1.bf16.msra.mxu0 0
        %1331 = vmatprep.subr.bf16.mxu0 0
        %1332 = vmatpush1.bf16.msra.mxu0 0
        %1333 = vmatprep.mubr.bf16.mxu0 0
        %1334 = vmatmul.mubr.bf16.gmra.mrb[0].mxu0 %v1296
        %v1335 = vpop.f32.mrb[0].mxu0
        %v1336 = vadd.f32 0.0, %v1335
        %v1337 = vpop.f32.mrb[0].mxu0
        %v1338 = vpop.f32.mrb[0].mxu0
        %v1339 = vpop.f32.mrb[0].mxu0
        %1340 = vdwg.mxu0
        %v1341 = vadd.f32 %v1132, %v1198
        %v1342 = vadd.f32 %v1133, %v1244
        %v1343 = vadd.f32 %v1134, %v1290
        %v1344 = vadd.f32 %v1135, %v1336
        %v1345 = vrcp.pop %v1148
        %v1346 = vrcp.pop %v1149
        %v1347 = vrcp.pop %v1150
        %v1348 = vrcp.pop %v1151
        %v1349 = vmul.f32 %v1341, %v1345
        %v1350 = vmul.f32 %v1342, %v1346
        %v1351 = vmul.f32 %v1343, %v1347
        %v1352 = vmul.f32 %v1344, %v1348
        %v1353 = vpack.c.bf16 %v1349, %v1349
        %v1354 = vpack.c.bf16 %v1350, %v1350
        %v1355 = vpack.c.bf16 %v1351, %v1351
        %v1356 = vpack.c.bf16 %v1352, %v1352
        %1358 = vrot.lane.b32.xlu0 %v1354, 8
        %v1359 = vpop.permute.xlu0 %1358
        %1361 = vrot.lane.b32.xlu0 %v1355, 16
        %v1362 = vpop.permute.xlu0 %1361
        %1364 = vrot.lane.b32.xlu0 %v1356, 24
        %v1365 = vpop.permute.xlu0 %1364
        %v1368 = vsel %vm911, %v1353, %v1359
        %vm1369 = vcmask 130048
        %v1371 = vsel %vm1369, %v1368, %v1362
        %vm1372 = vcmask 195584
        %v1374 = vsel %vm1372, %v1371, %v1365
        %v1375 = vld [vmem:[#allocation13] sm:$0xf]
        %v1376 = vld [vmem:[#allocation13 + $0x4] sm:$0xf]
        %v1377 = vld [vmem:[#allocation13 + $0x8] sm:$0xf]
        %v1378 = vld [vmem:[#allocation13 + $0xc] sm:$0xf]
        %v1379 = vld [vmem:[#allocation15] sm:$0x1]
        %v1381 = vlaneseq
        %v1382 = vshrl.u32 %v1381, 7
        %v1383 = vsub.s32 0, %v1382
        %v1384 = vrot.slane %v1379, %v1383
        %v1390 = vunpack.c.l.b16 %v1375
        %v1391 = vunpack.c.l.b16 %v1376
        %v1392 = vunpack.c.l.b16 %v1377
        %v1393 = vunpack.c.l.b16 %v1378
        %v1394 = vpack.c.b16 %v1391, %v1390
        %v1395 = vpack.c.b16 %v1393, %v1392
        %v1398 = vsel %vm850, %v1374, 0
        %1400 = vmatprep.subr.bf16.mxu0 0
        %1401 = vmatpush1.bf16.msra.mxu0 %v1394
        %1402 = vmatprep.subr.bf16.mxu0 0
        %1403 = vmatpush1.bf16.msra.mxu0 %v1395
        %1404 = vmatprep.subr.bf16.mxu0 0
        %1405 = vmatpush1.bf16.msra.mxu0 0
        %1406 = vmatprep.subr.bf16.mxu0 0
        %1407 = vmatpush1.bf16.msra.mxu0 0
        %1408 = vmatprep.subr.bf16.mxu0 0
        %1409 = vmatpush1.bf16.msra.mxu0 0
        %1410 = vmatprep.subr.bf16.mxu0 0
        %1411 = vmatpush1.bf16.msra.mxu0 0
        %1412 = vmatprep.subr.bf16.mxu0 0
        %1413 = vmatpush1.bf16.msra.mxu0 0
        %1414 = vmatprep.subr.bf16.mxu0 0
        %1415 = vmatpush1.bf16.msra.mxu0 0
        %1416 = vmatprep.subr.bf16.mxu0 0
        %1417 = vmatpush1.bf16.msra.mxu0 0
        %1418 = vmatprep.subr.bf16.mxu0 0
        %1419 = vmatpush1.bf16.msra.mxu0 0
        %1420 = vmatprep.subr.bf16.mxu0 0
        %1421 = vmatpush1.bf16.msra.mxu0 0
        %1422 = vmatprep.subr.bf16.mxu0 0
        %1423 = vmatpush1.bf16.msra.mxu0 0
        %1424 = vmatprep.subr.bf16.mxu0 0
        %1425 = vmatpush1.bf16.msra.mxu0 0
        %1426 = vmatprep.subr.bf16.mxu0 0
        %1427 = vmatpush1.bf16.msra.mxu0 0
        %1428 = vmatprep.subr.bf16.mxu0 0
        %1429 = vmatpush1.bf16.msra.mxu0 0
        %1430 = vmatprep.subr.bf16.mxu0 0
        %1431 = vmatpush1.bf16.msra.mxu0 0
        %1432 = vmatprep.mubr.bf16.mxu0 0
        %1433 = vmatmul.mubr.bf16.gmra.mrb[0].mxu0 %v1398
        %v1434 = vpop.f32.mrb[0].mxu0
        %v1435 = vadd.f32 %v1384, %v1434
        %v1436 = vpop.f32.mrb[0].mxu0
        %v1437 = vpop.f32.mrb[0].mxu0
        %v1438 = vpop.f32.mrb[0].mxu0
        %1439 = vdwg.mxu0
        %v1440 = vadd.f32 %v825, %v1435
        %v1441 = vld [vmem:[#allocation16] sm:$0x1]
        %v1442 = vld [vmem:[#allocation18] sm:$0x1]
        %v1443 = vsel %vm850, %v1440, 0.0
        %1444 = vadd.xlane.f32.xlu0 %v1443
        %v1445 = vpop.xlane.xlu0 %1444
        %v1446 = vrcp.pop 32.0
        %v1447 = vmul.f32 %v1445, %v1446
        %v1448 = vsub.f32 %v1440, %v1447
        %v1449 = vmul.f32 %v1448, %v1448
        %v1450 = vsel %vm850, %v1449, 0.0
        %1451 = vadd.xlane.f32.xlu0 %v1450
        %v1452 = vpop.xlane.xlu0 %1451
        %v1453 = vmul.f32 %v1452, %v1446
        %v1454 = vadd.f32 %v1453, 1e-05
        %v1455 = vrsqrt.pop %v1454
        %v1456 = vmul.f32 %v1448, %v1455
        %v1458 = vlaneseq
        %v1459 = vshrl.u32 %v1458, 7
        %v1460 = vsub.s32 0, %v1459
        %v1461 = vrot.slane %v1441, %v1460
        %v1463 = vmul.f32 %v1456, %v1461
        %v1465 = vlaneseq
        %v1466 = vshrl.u32 %v1465, 7
        %v1467 = vsub.s32 0, %v1466
        %v1468 = vrot.slane %v1442, %v1467
        %v1470 = vadd.f32 %v1463, %v1468
        %v1471 = vpack.c.bf16 %v1470, %v1470
        %v1472 = vld [vmem:[#allocation19] sm:$0xf]
        %v1473 = vld [vmem:[#allocation19 + $0x4] sm:$0xf]
        %v1474 = vld [vmem:[#allocation19 + $0x8] sm:$0xf]
        %v1475 = vld [vmem:[#allocation19 + $0xc] sm:$0xf]
        %v1476 = vld [vmem:[#allocation21] sm:$0x1]
        %v1478 = vlaneseq
        %v1479 = vshrl.u32 %v1478, 7
        %v1480 = vsub.s32 0, %v1479
        %v1481 = vrot.slane %v1476, %v1480
        %v1487 = vunpack.c.l.b16 %v1472
        %v1488 = vunpack.c.l.b16 %v1473
        %v1489 = vunpack.c.l.b16 %v1474
        %v1490 = vunpack.c.l.b16 %v1475
        %v1491 = vpack.c.b16 %v1488, %v1487
        %v1492 = vpack.c.b16 %v1490, %v1489
        %v1496 = vsel %vm850, %v1471, 0
        %1498 = vmatprep.subr.bf16.mxu0 0
        %1499 = vmatpush1.bf16.msra.mxu0 %v1491
        %1500 = vmatprep.subr.bf16.mxu0 0
        %1501 = vmatpush1.bf16.msra.mxu0 %v1492
        %1502 = vmatprep.subr.bf16.mxu0 0
        %1503 = vmatpush1.bf16.msra.mxu0 0
        %1504 = vmatprep.subr.bf16.mxu0 0
        %1505 = vmatpush1.bf16.msra.mxu0 0
        %1506 = vmatprep.subr.bf16.mxu0 0
        %1507 = vmatpush1.bf16.msra.mxu0 0
        %1508 = vmatprep.subr.bf16.mxu0 0
        %1509 = vmatpush1.bf16.msra.mxu0 0
        %1510 = vmatprep.subr.bf16.mxu0 0
        %1511 = vmatpush1.bf16.msra.mxu0 0
        %1512 = vmatprep.subr.bf16.mxu0 0
        %1513 = vmatpush1.bf16.msra.mxu0 0
        %1514 = vmatprep.subr.bf16.mxu0 0
        %1515 = vmatpush1.bf16.msra.mxu0 0
        %1516 = vmatprep.subr.bf16.mxu0 0
        %1517 = vmatpush1.bf16.msra.mxu0 0
        %1518 = vmatprep.subr.bf16.mxu0 0
        %1519 = vmatpush1.bf16.msra.mxu0 0
        %1520 = vmatprep.subr.bf16.mxu0 0
        %1521 = vmatpush1.bf16.msra.mxu0 0
        %1522 = vmatprep.subr.bf16.mxu0 0
        %1523 = vmatpush1.bf16.msra.mxu0 0
        %1524 = vmatprep.subr.bf16.mxu0 0
        %1525 = vmatpush1.bf16.msra.mxu0 0
        %1526 = vmatprep.subr.bf16.mxu0 0
        %1527 = vmatpush1.bf16.msra.mxu0 0
        %1528 = vmatprep.subr.bf16.mxu0 0
        %1529 = vmatpush1.bf16.msra.mxu0 0
        %1530 = vmatprep.mubr.bf16.mxu0 0
        %1531 = vmatmul.mubr.bf16.gmra.mrb[0].mxu0 %v1496
        %v1532 = vpop.f32.mrb[0].mxu0
        %v1533 = vadd.f32 %v1481, %v1532
        %v1534 = vpop.f32.mrb[0].mxu0
        %v1535 = vpop.f32.mrb[0].mxu0
        %v1536 = vpop.f32.mrb[0].mxu0
        %1537 = vdwg.mxu0
        %v1538 = vmul.f32 %v1533, 0.5
        %v1539 = vmul.f32 %v1533, 0.70710677
        %v1540 = vand.u32 2147483647, %v1539
        %v1541 = vmul.f32 %v1540, 0.3275911
        %v1542 = vadd.f32 %v1541, 1.0
        %v1543 = vrcp.pop %v1542
        %v1544 = vmul.f32 1.0, %v1543
        %v1545 = vmul.f32 %v1544, 1.0614054
        %v1546 = vadd.f32 %v1545, -1.4531521
        %v1547 = vmul.f32 %v1546, %v1544
        %v1548 = vadd.f32 %v1547, 1.4214138
        %v1549 = vmul.f32 %v1548, %v1544
        %v1550 = vadd.f32 %v1549, -0.28449672
        %v1551 = vmul.f32 %v1550, %v1544
        %v1552 = vadd.f32 %v1551, 0.2548296
        %v1553 = vmul.f32 %v1552, %v1544
        %v1554 = vmul.f32 %v1540, %v1540
        %v1555 = vsub.f32 0.0, %v1554
        %v1556 = vmul.f32 %v1555, 1.442695
        %v1557 = vpow.pop %v1556
        %v1558 = vmul.f32 %v1553, %v1557
        %v1559 = vsub.f32 1.0, %v1558
        %vm1560 = vcmp.ge.f32.partialorder %v1539, 0.0
        %v1561 = vsub.f32 0.0, %v1559
        %v1562 = vsel %vm1560, %v1559, %v1561
        %v1563 = vadd.f32 %v1562, 1.0
        %v1564 = vmul.f32 %v1538, %v1563
        %v1565 = vpack.c.bf16 %v1564, %v1564
        %v1566 = vld [vmem:[#allocation22] sm:$0xf]
        %v1567 = vld [vmem:[#allocation22 + $0x4] sm:$0xf]
        %v1568 = vld [vmem:[#allocation22 + $0x8] sm:$0xf]
        %v1569 = vld [vmem:[#allocation22 + $0xc] sm:$0xf]
        %v1570 = vld [vmem:[#allocation22 + $0x10] sm:$0xf]
        %v1571 = vld [vmem:[#allocation22 + $0x14] sm:$0xf]
        %v1572 = vld [vmem:[#allocation22 + $0x18] sm:$0xf]
        %v1573 = vld [vmem:[#allocation22 + $0x1c] sm:$0xf]
        %v1574 = vld [vmem:[#allocation22 + $0x20] sm:$0xf]
        %v1575 = vld [vmem:[#allocation22 + $0x24] sm:$0xf]
        %v1576 = vld [vmem:[#allocation22 + $0x28] sm:$0xf]
        %v1577 = vld [vmem:[#allocation22 + $0x2c] sm:$0xf]
        %v1578 = vld [vmem:[#allocation22 + $0x30] sm:$0xf]
        %v1579 = vld [vmem:[#allocation22 + $0x34] sm:$0xf]
        %v1580 = vld [vmem:[#allocation22 + $0x38] sm:$0xf]
        %v1581 = vld [vmem:[#allocation22 + $0x3c] sm:$0xf]
        %v1582 = vld [vmem:[#allocation24] sm:$0x1]
        %v1584 = vlaneseq
        %v1585 = vshrl.u32 %v1584, 7
        %v1586 = vsub.s32 0, %v1585
        %v1587 = vrot.slane %v1582, %v1586
        %v1605 = vunpack.c.l.b16 %v1566
        %v1606 = vunpack.c.l.b16 %v1567
        %v1607 = vunpack.c.l.b16 %v1568
        %v1608 = vunpack.c.l.b16 %v1569
        %v1609 = vunpack.c.l.b16 %v1570
        %v1610 = vunpack.c.l.b16 %v1571
        %v1611 = vunpack.c.l.b16 %v1572
        %v1612 = vunpack.c.l.b16 %v1573
        %v1613 = vunpack.c.l.b16 %v1574
        %v1614 = vunpack.c.l.b16 %v1575
        %v1615 = vunpack.c.l.b16 %v1576
        %v1616 = vunpack.c.l.b16 %v1577
        %v1617 = vunpack.c.l.b16 %v1578
        %v1618 = vunpack.c.l.b16 %v1579
        %v1619 = vunpack.c.l.b16 %v1580
        %v1620 = vunpack.c.l.b16 %v1581
        %v1621 = vpack.c.b16 %v1606, %v1605
        %v1622 = vpack.c.b16 %v1608, %v1607
        %v1623 = vpack.c.b16 %v1610, %v1609
        %v1624 = vpack.c.b16 %v1612, %v1611
        %v1625 = vpack.c.b16 %v1614, %v1613
        %v1626 = vpack.c.b16 %v1616, %v1615
        %v1627 = vpack.c.b16 %v1618, %v1617
        %v1628 = vpack.c.b16 %v1620, %v1619
        %1637 = vmatprep.subr.bf16.mxu0 0
        %1638 = vmatpush1.bf16.msra.mxu0 %v1621
        %1639 = vmatprep.subr.bf16.mxu0 0
        %1640 = vmatpush1.bf16.msra.mxu0 %v1622
        %1641 = vmatprep.subr.bf16.mxu0 0
        %1642 = vmatpush1.bf16.msra.mxu0 %v1623
        %1643 = vmatprep.subr.bf16.mxu0 0
        %1644 = vmatpush1.bf16.msra.mxu0 %v1624
        %1645 = vmatprep.subr.bf16.mxu0 0
        %1646 = vmatpush1.bf16.msra.mxu0 %v1625
        %1647 = vmatprep.subr.bf16.mxu0 0
        %1648 = vmatpush1.bf16.msra.mxu0 %v1626
        %1649 = vmatprep.subr.bf16.mxu0 0
        %1650 = vmatpush1.bf16.msra.mxu0 %v1627
        %1651 = vmatprep.subr.bf16.mxu0 0
        %1652 = vmatpush1.bf16.msra.mxu0 %v1628
        %1653 = vmatprep.subr.bf16.mxu0 0
        %1654 = vmatpush1.bf16.msra.mxu0 0
        %1655 = vmatprep.subr.bf16.mxu0 0
        %1656 = vmatpush1.bf16.msra.mxu0 0
        %1657 = vmatprep.subr.bf16.mxu0 0
        %1658 = vmatpush1.bf16.msra.mxu0 0
        %1659 = vmatprep.subr.bf16.mxu0 0
        %1660 = vmatpush1.bf16.msra.mxu0 0
        %1661 = vmatprep.subr.bf16.mxu0 0
        %1662 = vmatpush1.bf16.msra.mxu0 0
        %1663 = vmatprep.subr.bf16.mxu0 0
        %1664 = vmatpush1.bf16.msra.mxu0 0
        %1665 = vmatprep.subr.bf16.mxu0 0
        %1666 = vmatpush1.bf16.msra.mxu0 0
        %1667 = vmatprep.subr.bf16.mxu0 0
        %1668 = vmatpush1.bf16.msra.mxu0 0
        %1669 = vmatprep.mubr.bf16.mxu0 0
        %1670 = vmatmul.mubr.bf16.gmra.mrb[0].mxu0 %v1565
        %v1671 = vpop.f32.mrb[0].mxu0
        %v1672 = vadd.f32 %v1587, %v1671
        %v1673 = vpop.f32.mrb[0].mxu0
        %v1674 = vpop.f32.mrb[0].mxu0
        %v1675 = vpop.f32.mrb[0].mxu0
        %1676 = vdwg.mxu0
        %v1677 = vadd.f32 %v1470, %v1672
        %v1678 = vld [vmem:[#allocation25] sm:$0x1]
        %v1679 = vld [vmem:[#allocation27] sm:$0x1]
        %v1680 = vsel %vm850, %v1677, 0.0
        %1681 = vadd.xlane.f32.xlu0 %v1680
        %v1682 = vpop.xlane.xlu0 %1681
        %v1683 = vmul.f32 %v1682, %v1446
        %v1684 = vsub.f32 %v1677, %v1683
        %v1685 = vmul.f32 %v1684, %v1684
        %v1686 = vsel %vm850, %v1685, 0.0
        %1687 = vadd.xlane.f32.xlu0 %v1686
        %v1688 = vpop.xlane.xlu0 %1687
        %v1689 = vmul.f32 %v1688, %v1446
        %v1690 = vadd.f32 %v1689, 1e-05
        %v1691 = vrsqrt.pop %v1690
        %v1692 = vmul.f32 %v1684, %v1691
        %v1694 = vlaneseq
        %v1695 = vshrl.u32 %v1694, 7
        %v1696 = vsub.s32 0, %v1695
        %v1697 = vrot.slane %v1678, %v1696
        %v1699 = vmul.f32 %v1692, %v1697
        %v1701 = vlaneseq
        %v1702 = vshrl.u32 %v1701, 7
        %v1703 = vsub.s32 0, %v1702
        %v1704 = vrot.slane %v1679, %v1703
        %v1706 = vadd.f32 %v1699, %v1704
        %1707 = vst.msk [vmem:[%s708] sm:$0xff] %vm850, %v1706
        %s1708 = sand.u32 %s381, 1
        %s1709 = scalar_lea.sflag [#allocation6], %s1708
        %s1710 = sand.u32 %s381, 1
        %s1711 = smul.addr %s1710, 8
        %s1712 = scalar_lea.vmem [#allocation28], %s1711
        // Predicated region
        $region145: #{tpu_custom_call.1} parent=79 // pred_check
          %p1713 = pneg %p391
        $region146: #{tpu_custom_call.1} parent=79 // pred_check_branch
          %1715 = sbr.rel (%p1713) target = $region148
        $region147: #{tpu_custom_call.1} parent=79 // pred_region
          %s1717 = ssub.s32 128, 128
          %1718 = vsyncadd %s1709, %s1717
          %s1719 = sadd.s32 %s44, %s43
          %s1720 = smul.addr %s1719, 128
          %s1721 = scalar_lea.hbm %s15, %s1720
          %s1723 = sshll.u32 %s1712, 4
          %s1724 = int_to_ptr.vmem [resolvable:$true] %s1723
          %1726 = dma.vmem_to_hbm [thread:$0]  %s1724, 128, %s1721, %s1709
        $region148: #{tpu_custom_call.1} parent=79 // pred_fallthru
          _
      $region80: #{tpu_custom_call.1} parent=5 // pred_fallthru
        _
      %p1727 = scmp.le.s32.totalorder 2, %s34
      // Predicated region
      $region149: #{tpu_custom_call.1} parent=5 // pred_check
        %p1728 = pneg %p1727
      $region150: #{tpu_custom_call.1} parent=5 // pred_check_branch
        %1730 = sbr.rel (%p1728) target = $region152
      $region151: #{tpu_custom_call.1} parent=5 // pred_region
        %s1731 = ssub.s32 %s34, 2
        // Predicated region
        $region153: #{tpu_custom_call.1} parent=151 // pred_check
          %p1732 = pneg %p397
        $region154: #{tpu_custom_call.1} parent=151 // pred_check_branch
          %1734 = sbr.rel (%p1732) target = $region156
        $region155: #{tpu_custom_call.1} parent=151 // pred_region
          %s1735 = sand.u32 %s382, 1
          %s1736 = scalar_lea.sflag [#allocation6], %s1735
          %s1737 = sand.u32 %s382, 1
          %s1738 = smul.addr %s1737, 8
          %s1739 = scalar_lea.vmem [#allocation28], %s1738
          %1740 = dma.done %s1736, 128
        $region156: #{tpu_custom_call.1} parent=151 // pred_fallthru
          _
      $region152: #{tpu_custom_call.1} parent=5 // pred_fallthru
        _
    $region6: #{tpu_custom_call.1} parent=1 // loop_footer
      %s38 = sadd.s32 1, %s34
    $region7: #{tpu_custom_call.1} parent=1 // loop_footer_branch
      %33 = sbr.rel target = $region3
    $region8: #{tpu_custom_call.1} parent=1 // loop_exit
      _
    %1741 = vsyncpa [#allocation5], 1
    %s1742 = scalar_lea.sflag [#allocation5], 1
    %1743 = vsyncpa %s1742, 1
    %1744 = vsyncpa [#allocation8], 1
    %1745 = vsyncpa [#allocation11], 1
    %1746 = vsyncpa [#allocation14], 1
    %1747 = vsyncpa [#allocation17], 1
    %1748 = vsyncpa [#allocation20], 1
    %1749 = vsyncpa [#allocation23], 1
    %1750 = vsyncpa [#allocation26], 1
    %1751 = vsyncpa [#allocation6], 1
    %s1752 = scalar_lea.sflag [#allocation6], 1
    %1753 = vsyncpa %s1752, 1

// kernel: tpu_custom_call.1
$region0: #{tpu_custom_call.1}
  #allocation0 [shape = 'u32[]', space=smem, size = 0x4, offset = 0x4, fixed_abs, tag = 'smem constant byte address 0x4 - core index']
  #allocation1 [shape = 'u32[144,128]{1,0:T(1,128)}', space=vmem, size = 0x12000, scoped, tag = 'internal scratch']
  #allocation2 [shape = 'bf16[1,4,8,8]{3,2,1,0:T(8,128)(2,1)}', space=vmem, size = 0x2000, scoped, tag = 'scratch operand']
  #allocation3 [shape = 'bf16[1,4,8,8]{3,2,1,0:T(8,128)(2,1)}', space=vmem, size = 0x2000, scoped, tag = 'scratch operand']
  %s0 = inlined_call_operand.hbm [shape: f32[2,8,32], index: 0, kind: input, shape index: {}]
  %s1 = inlined_call_operand.hbm [shape: bf16[32,32], index: 1, kind: input, shape index: {}]
  %s2 = inlined_call_operand.hbm [shape: f32[1,32], index: 2, kind: input, shape index: {}]
  %s3 = inlined_call_operand.hbm [shape: bf16[32,64], index: 3, kind: input, shape index: {}]
  %s4 = inlined_call_operand.hbm [shape: f32[1,64], index: 4, kind: input, shape index: {}]
  %s5 = inlined_call_operand.hbm [shape: bf16[32,32], index: 5, kind: input, shape index: {}]
  %s6 = inlined_call_operand.hbm [shape: f32[1,32], index: 6, kind: input, shape index: {}]
  %s7 = inlined_call_operand.hbm [shape: f32[1,32], index: 7, kind: input, shape index: {}]
  %s8 = inlined_call_operand.hbm [shape: f32[1,32], index: 8, kind: input, shape index: {}]
  %s9 = inlined_call_operand.hbm [shape: bf16[32,128], index: 9, kind: input, shape index: {}]
  %s10 = inlined_call_operand.hbm [shape: f32[1,128], index: 10, kind: input, shape index: {}]
  %s11 = inlined_call_operand.hbm [shape: bf16[128,32], index: 11, kind: input, shape index: {}]
  %s12 = inlined_call_operand.hbm [shape: f32[1,32], index: 12, kind: input, shape index: {}]
  %s13 = inlined_call_operand.hbm [shape: f32[1,32], index: 13, kind: input, shape index: {}]
  %s14 = inlined_call_operand.hbm [shape: f32[1,32], index: 14, kind: input, shape index: {}]
  %s15 = inlined_call_operand.hbm [shape: f32[2,8,32], index: 15, kind: output, shape index: {}]
  %s16 = sld [smem:[#allocation0]]
  $region157: #{tpu_custom_call.1} parent=0
    _
  %s18 = ssub.s32 1, %s16
  %s19 = scalar_select 0, %s18, %s16
  $region1: #{tpu_custom_call.1} parent=0
    #allocation4 [shape = 'u8[8192]{0}', space=vmem, size = 0x2000, scoped, tag = 'input window, operand 0']
    #allocation5 [shape = 's32[2]{0}', space=sflag, size = 0x8, scoped, tag = 'scoped memory for tpu_custom_call.1']
    #allocation6 [shape = 's32[2]{0}', space=sflag, size = 0x8, scoped, tag = 'scoped memory for tpu_custom_call.1']
    #allocation7 [shape = 'u8[8192]{0}', space=vmem, size = 0x2000, scoped, tag = 'input window, operand 1, single buffered']
    #allocation8 [shape = 's32[1]{0}', space=sflag, size = 0x4, scoped, tag = 'scoped memory for tpu_custom_call.1']
    #allocation9 [shape = 'u8[512]{0}', space=vmem, size = 0x400, scoped, tag = 'input window, operand 2, single buffered']
    #allocation10 [shape = 'u8[8192]{0}', space=vmem, size = 0x2000, scoped, tag = 'input window, operand 3, single buffered']
    #allocation11 [shape = 's32[1]{0}', space=sflag, size = 0x4, scoped, tag = 'scoped memory for tpu_custom_call.1']
    #allocation12 [shape = 'u8[512]{0}', space=vmem, size = 0x400, scoped, tag = 'input window, operand 4, single buffered']
    #allocation13 [shape = 'u8[8192]{0}', space=vmem, size = 0x2000, scoped, tag = 'input window, operand 5, single buffered']
    #allocation14 [shape = 's32[1]{0}', space=sflag, size = 0x4, scoped, tag = 'scoped memory for tpu_custom_call.1']
    #allocation15 [shape = 'u8[512]{0}', space=vmem, size = 0x400, scoped, tag = 'input window, operand 6, single buffered']
    #allocation16 [shape = 'u8[512]{0}', space=vmem, size = 0x400, scoped, tag = 'input window, operand 7, single buffered']
    #allocation17 [shape = 's32[1]{0}', space=sflag, size = 0x4, scoped, tag = 'scoped memory for tpu_custom_call.1']
    #allocation18 [shape = 'u8[512]{0}', space=vmem, size = 0x400, scoped, tag = 'input window, operand 8, single buffered']
    #allocation19 [shape = 'u8[8192]{0}', space=vmem, size = 0x2000, scoped, tag = 'input window, operand 9, single buffered']
    #allocation20 [shape = 's32[1]{0}', space=sflag, size = 0x4, scoped, tag = 'scoped memory for tpu_custom_call.1']
    #allocation21 [shape = 'u8[512]{0}', space=vmem, size = 0x400, scoped, tag = 'input window, operand 10, single buffered']
    #allocation22 [shape = 'u8[32768]{0}', space=vmem, size = 0x8000, scoped, tag = 'input window, operand 11, single buffered']
    #allocation23 [shape = 's32[1]{0}', space=sflag, size = 0x4, scoped, tag = 'scoped memory for tpu_custom_call.1']
    #allocation24 [shape = 'u8[512]{0}', space=vmem, size = 0x400, scoped, tag = 'input window, operand 12, single buffered']
    #allocation25 [shape = 'u8[512]{0}', space=vmem, size = 0x400, scoped, tag = 'input window, operand 13, single buffered']
    #allocation26 [shape = 's32[1]{0}', space=sflag, size = 0x4, scoped, tag = 'scoped memory for tpu_custom_call.1']
    #allocation27 [shape = 'u8[512]{0}', space=vmem, size = 0x400, scoped, tag = 'input window, operand 14, single buffered']
    #allocation28 [shape = 'u8[8192]{0}', space=vmem, size = 0x2000, scoped, tag = 'output window, operand 0']
    %20 = vsyncpa [#allocation5], 0
    %s21 = scalar_lea.sflag [#allocation5], 1
    %22 = vsyncpa %s21, 0
    %23 = vsyncpa [#allocation8], 0
    %24 = vsyncpa [#allocation11], 0
    %25 = vsyncpa [#allocation14], 0
    %26 = vsyncpa [#allocation17], 0
    %27 = vsyncpa [#allocation20], 0
    %28 = vsyncpa [#allocation23], 0
    %29 = vsyncpa [#allocation26], 0
    %30 = vsyncpa [#allocation6], 0
    %s31 = scalar_lea.sflag [#allocation6], 1
    %32 = vsyncpa %s31, 0
    loop: start=0, step=1, limit=4
    $region2: #{tpu_custom_call.1} parent=1 // loop_pre_header
      _
    $region3: #{tpu_custom_call.1} parent=1 // loop_header
      %s34 = sphi 0, %s38
      %p35 = scmp.ge.s32.totalorder %s34, 4
      %s41 = sphi 0, %s53
      %s42 = sphi 0, %s49
      %s43 = sphi 0, %s41
      %s44 = sphi 0, %s42
      %s45 = sphi 0, %s43
      %s46 = sphi 0, %s44
      %s56 = sphi 0, %s58
      %s59 = sphi 0, %s56
      %s60 = sphi 0, %s59
      %s76 = sphi 0, %s60
      %s80 = sphi 0, %s80
      %s82 = sphi 0, %s80
      %s83 = sphi 0, %s82
      %s97 = sphi 0, %s83
      %s101 = sphi 0, %s101
      %s103 = sphi 0, %s101
      %s104 = sphi 0, %s103
      %s118 = sphi 0, %s104
      %s122 = sphi 0, %s122
      %s124 = sphi 0, %s122
      %s125 = sphi 0, %s124
      %s139 = sphi 0, %s125
      %s143 = sphi 0, %s143
      %s145 = sphi 0, %s143
      %s146 = sphi 0, %s145
      %s160 = sphi 0, %s146
      %s164 = sphi 0, %s164
      %s166 = sphi 0, %s164
      %s167 = sphi 0, %s166
      %s181 = sphi 0, %s167
      %s185 = sphi 0, %s185
      %s187 = sphi 0, %s185
      %s188 = sphi 0, %s187
      %s202 = sphi 0, %s188
      %s206 = sphi 0, %s206
      %s208 = sphi 0, %s206
      %s209 = sphi 0, %s208
      %s223 = sphi 0, %s209
      %s227 = sphi 0, %s227
      %s229 = sphi 0, %s227
      %s230 = sphi 0, %s229
      %s244 = sphi 0, %s230
      %s248 = sphi 0, %s248
      %s250 = sphi 0, %s248
      %s251 = sphi 0, %s250
      %s265 = sphi 0, %s251
      %s269 = sphi 0, %s269
      %s271 = sphi 0, %s269
      %s272 = sphi 0, %s271
      %s286 = sphi 0, %s272
      %s290 = sphi 0, %s290
      %s292 = sphi 0, %s290
      %s293 = sphi 0, %s292
      %s307 = sphi 0, %s293
      %s311 = sphi 0, %s311
      %s313 = sphi 0, %s311
      %s314 = sphi 0, %s313
      %s328 = sphi 0, %s314
      %s332 = sphi 0, %s332
      %s334 = sphi 0, %s332
      %s335 = sphi 0, %s334
      %s349 = sphi 0, %s335
      %s353 = sphi 0, %s353
      %s355 = sphi 0, %s353
      %s356 = sphi 0, %s355
      %s370 = sphi 0, %s356
      %s378 = sphi 0, %s380
      %s381 = sphi 0, %s378
      %s382 = sphi 0, %s381
      %s398 = sphi 0, %s382
    $region4: #{tpu_custom_call.1} parent=1 // loop_header_branch
      %37 = sbr.rel (%p35) target = $region8
    $region5: #{tpu_custom_call.1} parent=1 // loop_body
      %s39 = ssub.s32 %s34, 1
      %s40 = ssub.s32 %s34, 2
      %s47 = sadd.s32 1, %s42
      %p48 = scmp.ge.s32.totalorder %s47, 1
      %s49 = scalar_select %p48, 0, %s47
      %s50 = sadd.s32 1, %s41
      %s51 = scalar_select %p48, %s50, %s41
      %p52 = scmp.ge.s32.totalorder %s51, 2
      %s53 = scalar_select %p52, 0, %s51
      %s54 = ssub.s32 %s41, %s53
      %p55 = scmp.eq.s32.totalorder %s54, 0
      %s57 = sadd.s32 %s56, 1
      %s58 = scalar_select %p55, %s56, %s57
      %p61 = pneg %p55
      %p62 = scmp.eq.s32.totalorder %s34, 1
      %p63 = por %p61, %p62
      %p64 = scmp.ne.s32.totalorder %s56, %s59
      %p65 = scmp.eq.s32.totalorder %s34, 0
      %p66 = por %p64, %p65
      %p67 = scmp.ne.s32.totalorder %s56, %s59
      %p68 = scmp.eq.s32.totalorder %s39, 1
      %p69 = por %p67, %p68
      %p70 = scmp.ne.s32.totalorder %s59, %s60
      %p71 = scmp.eq.s32.totalorder %s39, 0
      %p72 = por %p70, %p71
      %p73 = scmp.ne.s32.totalorder %s59, %s60
      %p74 = scmp.eq.s32.totalorder %s40, 1
      %p75 = por %p73, %p74
      %p77 = scmp.ne.s32.totalorder %s60, %s76
      %p78 = scmp.eq.s32.totalorder %s40, 0
      %p79 = por %p77, %p78
      %s81 = sadd.s32 %s80, 1
      %p84 = scmp.eq.s32.totalorder %s34, 1
      %p85 = scmp.ne.s32.totalorder %s80, %s82
      %p86 = scmp.eq.s32.totalorder %s34, 0
      %p87 = por %p85, %p86
      %p88 = scmp.ne.s32.totalorder %s80, %s82
      %p89 = scmp.eq.s32.totalorder %s39, 1
      %p90 = por %p88, %p89
      %p91 = scmp.ne.s32.totalorder %s82, %s83
      %p92 = scmp.eq.s32.totalorder %s39, 0
      %p93 = por %p91, %p92
      %p94 = scmp.ne.s32.totalorder %s82, %s83
      %p95 = scmp.eq.s32.totalorder %s40, 1
      %p96 = por %p94, %p95
      %p98 = scmp.ne.s32.totalorder %s83, %s97
      %p99 = scmp.eq.s32.totalorder %s40, 0
      %p100 = por %p98, %p99
      %s102 = sadd.s32 %s101, 1
      %p105 = scmp.eq.s32.totalorder %s34, 1
      %p106 = scmp.ne.s32.totalorder %s101, %s103
      %p107 = scmp.eq.s32.totalorder %s34, 0
      %p108 = por %p106, %p107
      %p109 = scmp.ne.s32.totalorder %s101, %s103
      %p110 = scmp.eq.s32.totalorder %s39, 1
      %p111 = por %p109, %p110
      %p112 = scmp.ne.s32.totalorder %s103, %s104
      %p113 = scmp.eq.s32.totalorder %s39, 0
      %p114 = por %p112, %p113
      %p115 = scmp.ne.s32.totalorder %s103, %s104
      %p116 = scmp.eq.s32.totalorder %s40, 1
      %p117 = por %p115, %p116
      %p119 = scmp.ne.s32.totalorder %s104, %s118
      %p120 = scmp.eq.s32.totalorder %s40, 0
      %p121 = por %p119, %p120
      %s123 = sadd.s32 %s122, 1
      %p126 = scmp.eq.s32.totalorder %s34, 1
      %p127 = scmp.ne.s32.totalorder %s122, %s124
      %p128 = scmp.eq.s32.totalorder %s34, 0
      %p129 = por %p127, %p128
      %p130 = scmp.ne.s32.totalorder %s122, %s124
      %p131 = scmp.eq.s32.totalorder %s39, 1
      %p132 = por %p130, %p131
      %p133 = scmp.ne.s32.totalorder %s124, %s125
      %p134 = scmp.eq.s32.totalorder %s39, 0
      %p135 = por %p133, %p134
      %p136 = scmp.ne.s32.totalorder %s124, %s125
      %p137 = scmp.eq.s32.totalorder %s40, 1
      %p138 = por %p136, %p137
      %p140 = scmp.ne.s32.totalorder %s125, %s139
      %p141 = scmp.eq.s32.totalorder %s40, 0
      %p142 = por %p140, %p141
      %s144 = sadd.s32 %s143, 1
      %p147 = scmp.eq.s32.totalorder %s34, 1
      %p148 = scmp.ne.s32.totalorder %s143, %s145
      %p149 = scmp.eq.s32.totalorder %s34, 0
      %p150 = por %p148, %p149
      %p151 = scmp.ne.s32.totalorder %s143, %s145
      %p152 = scmp.eq.s32.totalorder %s39, 1
      %p153 = por %p151, %p152
      %p154 = scmp.ne.s32.totalorder %s145, %s146
      %p155 = scmp.eq.s32.totalorder %s39, 0
      %p156 = por %p154, %p155
      %p157 = scmp.ne.s32.totalorder %s145, %s146
      %p158 = scmp.eq.s32.totalorder %s40, 1
      %p159 = por %p157, %p158
      %p161 = scmp.ne.s32.totalorder %s146, %s160
      %p162 = scmp.eq.s32.totalorder %s40, 0
      %p163 = por %p161, %p162
      %s165 = sadd.s32 %s164, 1
      %p168 = scmp.eq.s32.totalorder %s34, 1
      %p169 = scmp.ne.s32.totalorder %s164, %s166
      %p170 = scmp.eq.s32.totalorder %s34, 0
      %p171 = por %p169, %p170
      %p172 = scmp.ne.s32.totalorder %s164, %s166
      %p173 = scmp.eq.s32.totalorder %s39, 1
      %p174 = por %p172, %p173
      %p175 = scmp.ne.s32.totalorder %s166, %s167
      %p176 = scmp.eq.s32.totalorder %s39, 0
      %p177 = por %p175, %p176
      %p178 = scmp.ne.s32.totalorder %s166, %s167
      %p179 = scmp.eq.s32.totalorder %s40, 1
      %p180 = por %p178, %p179
      %p182 = scmp.ne.s32.totalorder %s167, %s181
      %p183 = scmp.eq.s32.totalorder %s40, 0
      %p184 = por %p182, %p183
      %s186 = sadd.s32 %s185, 1
      %p189 = scmp.eq.s32.totalorder %s34, 1
      %p190 = scmp.ne.s32.totalorder %s185, %s187
      %p191 = scmp.eq.s32.totalorder %s34, 0
      %p192 = por %p190, %p191
      %p193 = scmp.ne.s32.totalorder %s185, %s187
      %p194 = scmp.eq.s32.totalorder %s39, 1
      %p195 = por %p193, %p194
      %p196 = scmp.ne.s32.totalorder %s187, %s188
      %p197 = scmp.eq.s32.totalorder %s39, 0
      %p198 = por %p196, %p197
      %p199 = scmp.ne.s32.totalorder %s187, %s188
      %p200 = scmp.eq.s32.totalorder %s40, 1
      %p201 = por %p199, %p200
      %p203 = scmp.ne.s32.totalorder %s188, %s202
      %p204 = scmp.eq.s32.totalorder %s40, 0
      %p205 = por %p203, %p204
      %s207 = sadd.s32 %s206, 1
      %p210 = scmp.eq.s32.totalorder %s34, 1
      %p211 = scmp.ne.s32.totalorder %s206, %s208
      %p212 = scmp.eq.s32.totalorder %s34, 0
      %p213 = por %p211, %p212
      %p214 = scmp.ne.s32.totalorder %s206, %s208
      %p215 = scmp.eq.s32.totalorder %s39, 1
      %p216 = por %p214, %p215
      %p217 = scmp.ne.s32.totalorder %s208, %s209
      %p218 = scmp.eq.s32.totalorder %s39, 0
      %p219 = por %p217, %p218
      %p220 = scmp.ne.s32.totalorder %s208, %s209
      %p221 = scmp.eq.s32.totalorder %s40, 1
      %p222 = por %p220, %p221
      %p224 = scmp.ne.s32.totalorder %s209, %s223
      %p225 = scmp.eq.s32.totalorder %s40, 0
      %p226 = por %p224, %p225
      %s228 = sadd.s32 %s227, 1
      %p231 = scmp.eq.s32.totalorder %s34, 1
      %p232 = scmp.ne.s32.totalorder %s227, %s229
      %p233 = scmp.eq.s32.totalorder %s34, 0
      %p234 = por %p232, %p233
      %p235 = scmp.ne.s32.totalorder %s227, %s229
      %p236 = scmp.eq.s32.totalorder %s39, 1
      %p237 = por %p235, %p236
      %p238 = scmp.ne.s32.totalorder %s229, %s230
      %p239 = scmp.eq.s32.totalorder %s39, 0
      %p240 = por %p238, %p239
      %p241 = scmp.ne.s32.totalorder %s229, %s230
      %p242 = scmp.eq.s32.totalorder %s40, 1
      %p243 = por %p241, %p242
      %p245 = scmp.ne.s32.totalorder %s230, %s244
      %p246 = scmp.eq.s32.totalorder %s40, 0
      %p247 = por %p245, %p246
      %s249 = sadd.s32 %s248, 1
      %p252 = scmp.eq.s32.totalorder %s34, 1
      %p253 = scmp.ne.s32.totalorder %s248, %s250
      %p254 = scmp.eq.s32.totalorder %s34, 0
      %p255 = por %p253, %p254
      %p256 = scmp.ne.s32.totalorder %s248, %s250
      %p257 = scmp.eq.s32.totalorder %s39, 1
      %p258 = por %p256, %p257
      %p259 = scmp.ne.s32.totalorder %s250, %s251
      %p260 = scmp.eq.s32.totalorder %s39, 0
      %p261 = por %p259, %p260
      %p262 = scmp.ne.s32.totalorder %s250, %s251
      %p263 = scmp.eq.s32.totalorder %s40, 1
      %p264 = por %p262, %p263
      %p266 = scmp.ne.s32.totalorder %s251, %s265
      %p267 = scmp.eq.s32.totalorder %s40, 0
      %p268 = por %p266, %p267
      %s270 = sadd.s32 %s269, 1
      %p273 = scmp.eq.s32.totalorder %s34, 1
      %p274 = scmp.ne.s32.totalorder %s269, %s271
      %p275 = scmp.eq.s32.totalorder %s34, 0
      %p276 = por %p274, %p275
      %p277 = scmp.ne.s32.totalorder %s269, %s271
      %p278 = scmp.eq.s32.totalorder %s39, 1
      %p279 = por %p277, %p278
      %p280 = scmp.ne.s32.totalorder %s271, %s272
      %p281 = scmp.eq.s32.totalorder %s39, 0
      %p282 = por %p280, %p281
      %p283 = scmp.ne.s32.totalorder %s271, %s272
      %p284 = scmp.eq.s32.totalorder %s40, 1
      %p285 = por %p283, %p284
      %p287 = scmp.ne.s32.totalorder %s272, %s286
      %p288 = scmp.eq.s32.totalorder %s40, 0
      %p289 = por %p287, %p288
      %s291 = sadd.s32 %s290, 1
      %p294 = scmp.eq.s32.totalorder %s34, 1
      %p295 = scmp.ne.s32.totalorder %s290, %s292
      %p296 = scmp.eq.s32.totalorder %s34, 0
      %p297 = por %p295, %p296
      %p298 = scmp.ne.s32.totalorder %s290, %s292
      %p299 = scmp.eq.s32.totalorder %s39, 1
      %p300 = por %p298, %p299
      %p301 = scmp.ne.s32.totalorder %s292, %s293
      %p302 = scmp.eq.s32.totalorder %s39, 0
      %p303 = por %p301, %p302
      %p304 = scmp.ne.s32.totalorder %s292, %s293
      %p305 = scmp.eq.s32.totalorder %s40, 1
      %p306 = por %p304, %p305
      %p308 = scmp.ne.s32.totalorder %s293, %s307
      %p309 = scmp.eq.s32.totalorder %s40, 0
      %p310 = por %p308, %p309
      %s312 = sadd.s32 %s311, 1
      %p315 = scmp.eq.s32.totalorder %s34, 1
      %p316 = scmp.ne.s32.totalorder %s311, %s313
      %p317 = scmp.eq.s32.totalorder %s34, 0
      %p318 = por %p316, %p317
      %p319 = scmp.ne.s32.totalorder %s311, %s313
      %p320 = scmp.eq.s32.totalorder %s39, 1
      %p321 = por %p319, %p320
      %p322 = scmp.ne.s32.totalorder %s313, %s314
      %p323 = scmp.eq.s32.totalorder %s39, 0
      %p324 = por %p322, %p323
      %p325 = scmp.ne.s32.totalorder %s313, %s314
      %p326 = scmp.eq.s32.totalorder %s40, 1
      %p327 = por %p325, %p326
      %p329 = scmp.ne.s32.totalorder %s314, %s328
      %p330 = scmp.eq.s32.totalorder %s40, 0
      %p331 = por %p329, %p330
      %s333 = sadd.s32 %s332, 1
      %p336 = scmp.eq.s32.totalorder %s34, 1
      %p337 = scmp.ne.s32.totalorder %s332, %s334
      %p338 = scmp.eq.s32.totalorder %s34, 0
      %p339 = por %p337, %p338
      %p340 = scmp.ne.s32.totalorder %s332, %s334
      %p341 = scmp.eq.s32.totalorder %s39, 1
      %p342 = por %p340, %p341
      %p343 = scmp.ne.s32.totalorder %s334, %s335
      %p344 = scmp.eq.s32.totalorder %s39, 0
      %p345 = por %p343, %p344
      %p346 = scmp.ne.s32.totalorder %s334, %s335
      %p347 = scmp.eq.s32.totalorder %s40, 1
      %p348 = por %p346, %p347
      %p350 = scmp.ne.s32.totalorder %s335, %s349
      %p351 = scmp.eq.s32.totalorder %s40, 0
      %p352 = por %p350, %p351
      %s354 = sadd.s32 %s353, 1
      %p357 = scmp.eq.s32.totalorder %s34, 1
      %p358 = scmp.ne.s32.totalorder %s353, %s355
      %p359 = scmp.eq.s32.totalorder %s34, 0
      %p360 = por %p358, %p359
      %p361 = scmp.ne.s32.totalorder %s353, %s355
      %p362 = scmp.eq.s32.totalorder %s39, 1
      %p363 = por %p361, %p362
      %p364 = scmp.ne.s32.totalorder %s355, %s356
      %p365 = scmp.eq.s32.totalorder %s39, 0
      %p366 = por %p364, %p365
      %p367 = scmp.ne.s32.totalorder %s355, %s356
      %p368 = scmp.eq.s32.totalorder %s40, 1
      %p369 = por %p367, %p368
      %p371 = scmp.ne.s32.totalorder %s356, %s370
      %p372 = scmp.eq.s32.totalorder %s40, 0
      %p373 = por %p371, %p372
      %s374 = ssub.s32 %s41, %s53
      %s375 = ssub.s32 %s42, %s49
      %s376 = sor.u32 %s374, %s375
      %p377 = scmp.eq.s32.totalorder %s376, 0
      %s379 = sadd.s32 %s378, 1
      %s380 = scalar_select %p377, %s378, %s379
      %p383 = pneg %p377
      %p384 = scmp.eq.s32.totalorder %s34, 1
      %p385 = por %p383, %p384
      %p386 = scmp.ne.s32.totalorder %s378, %s381
      %p387 = scmp.eq.s32.totalorder %s34, 0
      %p388 = por %p386, %p387
      %p389 = scmp.ne.s32.totalorder %s378, %s381
      %p390 = scmp.eq.s32.totalorder %s39, 1
      %p391 = por %p389, %p390
      %p392 = scmp.ne.s32.totalorder %s381, %s382
      %p393 = scmp.eq.s32.totalorder %s39, 0
      %p394 = por %p392, %p393
      %p395 = scmp.ne.s32.totalorder %s381, %s382
      %p396 = scmp.eq.s32.totalorder %s40, 1
      %p397 = por %p395, %p396
      %p399 = scmp.ne.s32.totalorder %s382, %s398
      %p400 = scmp.eq.s32.totalorder %s40, 0
      %p401 = por %p399, %p400
      %p402 = scmp.le.s32.totalorder 1, %s34
      %p403 = scmp.lt.s32.totalorder %s34, 3
      %p404 = pnand %p402, %p403
      %p405 = pneg %p404
      // Predicated region
      $region9: #{tpu_custom_call.1} parent=5 // pred_check
        _
      $region10: #{tpu_custom_call.1} parent=5 // pred_check_branch
        %407 = sbr.rel (%p404) target = $region12
      $region11: #{tpu_custom_call.1} parent=5 // pred_region
        %s408 = ssub.s32 %s34, 1
        // Predicated region
        $region13: #{tpu_custom_call.1} parent=11 // pred_check
          %p409 = pneg %p93
        $region14: #{tpu_custom_call.1} parent=11 // pred_check_branch
          %411 = sbr.rel (%p409) target = $region16
        $region15: #{tpu_custom_call.1} parent=11 // pred_region
          %s413 = ssub.s32 256, 256
          %414 = vsyncadd [#allocation8], %s413
          %s415 = sshll.u32 [#allocation7], 4
          %s416 = int_to_ptr.vmem [resolvable:$true] %s415
          %421 = dma.hbm_to_vmem [thread:$0]  %s1, 256, %s416, [#allocation8], 64, 64, 4
        $region16: #{tpu_custom_call.1} parent=11 // pred_fallthru
          _
        // Predicated region
        $region17: #{tpu_custom_call.1} parent=11 // pred_check
          %p422 = pneg %p114
        $region18: #{tpu_custom_call.1} parent=11 // pred_check_branch
          %424 = sbr.rel (%p422) target = $region20
        $region19: #{tpu_custom_call.1} parent=11 // pred_region
          %s426 = ssub.s32 16, 16
          %427 = vsyncadd [#allocation8], %s426
          %s429 = sshll.u32 [#allocation9], 4
          %s430 = int_to_ptr.vmem [resolvable:$true] %s429
          %432 = dma.hbm_to_vmem [thread:$0]  %s2, 16, %s430, [#allocation8]
        $region20: #{tpu_custom_call.1} parent=11 // pred_fallthru
          _
        // Predicated region
        $region21: #{tpu_custom_call.1} parent=11 // pred_check
          %p433 = pneg %p135
        $region22: #{tpu_custom_call.1} parent=11 // pred_check_branch
          %435 = sbr.rel (%p433) target = $region24
        $region23: #{tpu_custom_call.1} parent=11 // pred_region
          %s437 = ssub.s32 256, 256
          %438 = vsyncadd [#allocation11], %s437
          %s439 = sshll.u32 [#allocation10], 4
          %s440 = int_to_ptr.vmem [resolvable:$true] %s439
          %445 = dma.hbm_to_vmem [thread:$0]  %s3, 256, %s440, [#allocation11], 64, 64, 4
        $region24: #{tpu_custom_call.1} parent=11 // pred_fallthru
          _
        // Predicated region
        $region25: #{tpu_custom_call.1} parent=11 // pred_check
          %p446 = pneg %p156
        $region26: #{tpu_custom_call.1} parent=11 // pred_check_branch
          %448 = sbr.rel (%p446) target = $region28
        $region27: #{tpu_custom_call.1} parent=11 // pred_region
          %s450 = ssub.s32 16, 16
          %451 = vsyncadd [#allocation11], %s450
          %s453 = sshll.u32 [#allocation12], 4
          %s454 = int_to_ptr.vmem [resolvable:$true] %s453
          %456 = dma.hbm_to_vmem [thread:$0]  %s4, 16, %s454, [#allocation11]
        $region28: #{tpu_custom_call.1} parent=11 // pred_fallthru
          _
        // Predicated region
        $region29: #{tpu_custom_call.1} parent=11 // pred_check
          %p457 = pneg %p177
        $region30: #{tpu_custom_call.1} parent=11 // pred_check_branch
          %459 = sbr.rel (%p457) target = $region32
        $region31: #{tpu_custom_call.1} parent=11 // pred_region
          %s461 = ssub.s32 256, 256
          %462 = vsyncadd [#allocation14], %s461
          %s463 = sshll.u32 [#allocation13], 4
          %s464 = int_to_ptr.vmem [resolvable:$true] %s463
          %469 = dma.hbm_to_vmem [thread:$0]  %s5, 256, %s464, [#allocation14], 64, 64, 4
        $region32: #{tpu_custom_call.1} parent=11 // pred_fallthru
          _
        // Predicated region
        $region33: #{tpu_custom_call.1} parent=11 // pred_check
          %p470 = pneg %p198
        $region34: #{tpu_custom_call.1} parent=11 // pred_check_branch
          %472 = sbr.rel (%p470) target = $region36
        $region35: #{tpu_custom_call.1} parent=11 // pred_region
          %s474 = ssub.s32 16, 16
          %475 = vsyncadd [#allocation14], %s474
          %s477 = sshll.u32 [#allocation15], 4
          %s478 = int_to_ptr.vmem [resolvable:$true] %s477
          %480 = dma.hbm_to_vmem [thread:$0]  %s6, 16, %s478, [#allocation14]
        $region36: #{tpu_custom_call.1} parent=11 // pred_fallthru
          _
        // Predicated region
        $region37: #{tpu_custom_call.1} parent=11 // pred_check
          %p481 = pneg %p219
        $region38: #{tpu_custom_call.1} parent=11 // pred_check_branch
          %483 = sbr.rel (%p481) target = $region40
        $region39: #{tpu_custom_call.1} parent=11 // pred_region
          %s485 = ssub.s32 16, 16
          %486 = vsyncadd [#allocation17], %s485
          %s488 = sshll.u32 [#allocation16], 4
          %s489 = int_to_ptr.vmem [resolvable:$true] %s488
          %491 = dma.hbm_to_vmem [thread:$0]  %s7, 16, %s489, [#allocation17]
        $region40: #{tpu_custom_call.1} parent=11 // pred_fallthru
          _
        // Predicated region
        $region41: #{tpu_custom_call.1} parent=11 // pred_check
          %p492 = pneg %p240
        $region42: #{tpu_custom_call.1} parent=11 // pred_check_branch
          %494 = sbr.rel (%p492) target = $region44
        $region43: #{tpu_custom_call.1} parent=11 // pred_region
          %s496 = ssub.s32 16, 16
          %497 = vsyncadd [#allocation17], %s496
          %s499 = sshll.u32 [#allocation18], 4
          %s500 = int_to_ptr.vmem [resolvable:$true] %s499
          %502 = dma.hbm_to_vmem [thread:$0]  %s8, 16, %s500, [#allocation17]
        $region44: #{tpu_custom_call.1} parent=11 // pred_fallthru
          _
        // Predicated region
        $region45: #{tpu_custom_call.1} parent=11 // pred_check
          %p503 = pneg %p261
        $region46: #{tpu_custom_call.1} parent=11 // pred_check_branch
          %505 = sbr.rel (%p503) target = $region48
        $region47: #{tpu_custom_call.1} parent=11 // pred_region
          %s507 = ssub.s32 256, 256
          %508 = vsyncadd [#allocation20], %s507
          %s509 = sshll.u32 [#allocation19], 4
          %s510 = int_to_ptr.vmem [resolvable:$true] %s509
          %515 = dma.hbm_to_vmem [thread:$0]  %s9, 256, %s510, [#allocation20], 64, 64, 4
        $region48: #{tpu_custom_call.1} parent=11 // pred_fallthru
          _
        // Predicated region
        $region49: #{tpu_custom_call.1} parent=11 // pred_check
          %p516 = pneg %p282
        $region50: #{tpu_custom_call.1} parent=11 // pred_check_branch
          %518 = sbr.rel (%p516) target = $region52
        $region51: #{tpu_custom_call.1} parent=11 // pred_region
          %s520 = ssub.s32 16, 16
          %521 = vsyncadd [#allocation20], %s520
          %s523 = sshll.u32 [#allocation21], 4
          %s524 = int_to_ptr.vmem [resolvable:$true] %s523
          %526 = dma.hbm_to_vmem [thread:$0]  %s10, 16, %s524, [#allocation20]
        $region52: #{tpu_custom_call.1} parent=11 // pred_fallthru
          _
        // Predicated region
        $region53: #{tpu_custom_call.1} parent=11 // pred_check
          %p527 = pneg %p303
        $region54: #{tpu_custom_call.1} parent=11 // pred_check_branch
          %529 = sbr.rel (%p527) target = $region56
        $region55: #{tpu_custom_call.1} parent=11 // pred_region
          %s531 = ssub.s32 1024, 1024
          %532 = vsyncadd [#allocation23], %s531
          %s533 = sshll.u32 [#allocation22], 4
          %s534 = int_to_ptr.vmem [resolvable:$true] %s533
          %539 = dma.hbm_to_vmem [thread:$0]  %s11, 1024, %s534, [#allocation23], 64, 64, 4
        $region56: #{tpu_custom_call.1} parent=11 // pred_fallthru
          _
        // Predicated region
        $region57: #{tpu_custom_call.1} parent=11 // pred_check
          %p540 = pneg %p324
        $region58: #{tpu_custom_call.1} parent=11 // pred_check_branch
          %542 = sbr.rel (%p540) target = $region60
        $region59: #{tpu_custom_call.1} parent=11 // pred_region
          %s544 = ssub.s32 16, 16
          %545 = vsyncadd [#allocation23], %s544
          %s547 = sshll.u32 [#allocation24], 4
          %s548 = int_to_ptr.vmem [resolvable:$true] %s547
          %550 = dma.hbm_to_vmem [thread:$0]  %s12, 16, %s548, [#allocation23]
        $region60: #{tpu_custom_call.1} parent=11 // pred_fallthru
          _
        // Predicated region
        $region61: #{tpu_custom_call.1} parent=11 // pred_check
          %p551 = pneg %p345
        $region62: #{tpu_custom_call.1} parent=11 // pred_check_branch
          %553 = sbr.rel (%p551) target = $region64
        $region63: #{tpu_custom_call.1} parent=11 // pred_region
          %s555 = ssub.s32 16, 16
          %556 = vsyncadd [#allocation26], %s555
          %s558 = sshll.u32 [#allocation25], 4
          %s559 = int_to_ptr.vmem [resolvable:$true] %s558
          %561 = dma.hbm_to_vmem [thread:$0]  %s13, 16, %s559, [#allocation26]
        $region64: #{tpu_custom_call.1} parent=11 // pred_fallthru
          _
        // Predicated region
        $region65: #{tpu_custom_call.1} parent=11 // pred_check
          %p562 = pneg %p366
        $region66: #{tpu_custom_call.1} parent=11 // pred_check_branch
          %564 = sbr.rel (%p562) target = $region68
        $region67: #{tpu_custom_call.1} parent=11 // pred_region
          %s566 = ssub.s32 16, 16
          %567 = vsyncadd [#allocation26], %s566
          %s569 = sshll.u32 [#allocation27], 4
          %s570 = int_to_ptr.vmem [resolvable:$true] %s569
          %572 = dma.hbm_to_vmem [thread:$0]  %s14, 16, %s570, [#allocation26]
        $region68: #{tpu_custom_call.1} parent=11 // pred_fallthru
          _
      $region12: #{tpu_custom_call.1} parent=5 // pred_fallthru
        _
      %p573 = scmp.lt.s32.totalorder %s34, 2
      // Predicated region
      $region69: #{tpu_custom_call.1} parent=5 // pred_check
        %p574 = pneg %p573
      $region70: #{tpu_custom_call.1} parent=5 // pred_check_branch
        %576 = sbr.rel (%p574) target = $region72
      $region71: #{tpu_custom_call.1} parent=5 // pred_region
        // Predicated region
        $region73: #{tpu_custom_call.1} parent=71 // pred_check
          %p577 = pneg %p66
        $region74: #{tpu_custom_call.1} parent=71 // pred_check_branch
          %579 = sbr.rel (%p577) target = $region76
        $region75: #{tpu_custom_call.1} parent=71 // pred_region
          %s580 = sand.u32 %s56, 1
          %s581 = scalar_lea.sflag [#allocation5], %s580
          %s582 = sand.u32 %s56, 1
          %s583 = smul.addr %s582, 8
          %s584 = scalar_lea.vmem [#allocation4], %s583
          %s586 = ssub.s32 128, 128
          %587 = vsyncadd %s581, %s586
          %s588 = smul.addr %s41, 128
          %s589 = scalar_lea.hbm %s0, %s588
          %s591 = sshll.u32 %s584, 4
          %s592 = int_to_ptr.vmem [resolvable:$true] %s591
          %594 = dma.hbm_to_vmem [thread:$0]  %s589, 128, %s592, %s581
        $region76: #{tpu_custom_call.1} parent=71 // pred_fallthru
          _
      $region72: #{tpu_custom_call.1} parent=5 // pred_fallthru
        _
      %p595 = scmp.le.s32.totalorder 1, %s34
      %p596 = scmp.lt.s32.totalorder %s34, 3
      %p597 = pnand %p595, %p596
      %p598 = pneg %p597
      // Predicated region
      $region77: #{tpu_custom_call.1} parent=5 // pred_check
        _
      $region78: #{tpu_custom_call.1} parent=5 // pred_check_branch
        %600 = sbr.rel (%p597) target = $region80
      $region79: #{tpu_custom_call.1} parent=5 // pred_region
        %s601 = ssub.s32 %s34, 1
        %s602 = sand.u32 %s59, 1
        %s603 = scalar_lea.sflag [#allocation5], %s602
        %s604 = sand.u32 %s59, 1
        %s605 = smul.addr %s604, 8
        %s606 = scalar_lea.vmem [#allocation4], %s605
        // Predicated region
        $region81: #{tpu_custom_call.1} parent=79 // pred_check
          %p607 = pneg %p72
        $region82: #{tpu_custom_call.1} parent=79 // pred_check_branch
          %609 = sbr.rel (%p607) target = $region84
        $region83: #{tpu_custom_call.1} parent=79 // pred_region
          %610 = dma.done %s603, 128
        $region84: #{tpu_custom_call.1} parent=79 // pred_fallthru
          _
        // Predicated region
        $region85: #{tpu_custom_call.1} parent=79 // pred_check
          %p611 = pneg %p93
        $region86: #{tpu_custom_call.1} parent=79 // pred_check_branch
          %613 = sbr.rel (%p611) target = $region88
        $region87: #{tpu_custom_call.1} parent=79 // pred_region
          %614 = dma.done [#allocation8], 256
        $region88: #{tpu_custom_call.1} parent=79 // pred_fallthru
          _
        // Predicated region
        $region89: #{tpu_custom_call.1} parent=79 // pred_check
          %p615 = pneg %p114
        $region90: #{tpu_custom_call.1} parent=79 // pred_check_branch
          %617 = sbr.rel (%p615) target = $region92
        $region91: #{tpu_custom_call.1} parent=79 // pred_region
          %618 = dma.done [#allocation8], 16
        $region92: #{tpu_custom_call.1} parent=79 // pred_fallthru
          _
        // Predicated region
        $region93: #{tpu_custom_call.1} parent=79 // pred_check
          %p619 = pneg %p135
        $region94: #{tpu_custom_call.1} parent=79 // pred_check_branch
          %621 = sbr.rel (%p619) target = $region96
        $region95: #{tpu_custom_call.1} parent=79 // pred_region
          %622 = dma.done [#allocation11], 256
        $region96: #{tpu_custom_call.1} parent=79 // pred_fallthru
          _
        // Predicated region
        $region97: #{tpu_custom_call.1} parent=79 // pred_check
          %p623 = pneg %p156
        $region98: #{tpu_custom_call.1} parent=79 // pred_check_branch
          %625 = sbr.rel (%p623) target = $region100
        $region99: #{tpu_custom_call.1} parent=79 // pred_region
          %626 = dma.done [#allocation11], 16
        $region100: #{tpu_custom_call.1} parent=79 // pred_fallthru
          _
        // Predicated region
        $region101: #{tpu_custom_call.1} parent=79 // pred_check
          %p627 = pneg %p177
        $region102: #{tpu_custom_call.1} parent=79 // pred_check_branch
          %629 = sbr.rel (%p627) target = $region104
        $region103: #{tpu_custom_call.1} parent=79 // pred_region
          %630 = dma.done [#allocation14], 256
        $region104: #{tpu_custom_call.1} parent=79 // pred_fallthru
          _
        // Predicated region
        $region105: #{tpu_custom_call.1} parent=79 // pred_check
          %p631 = pneg %p198
        $region106: #{tpu_custom_call.1} parent=79 // pred_check_branch
          %633 = sbr.rel (%p631) target = $region108
        $region107: #{tpu_custom_call.1} parent=79 // pred_region
          %634 = dma.done [#allocation14], 16
        $region108: #{tpu_custom_call.1} parent=79 // pred_fallthru
          _
        // Predicated region
        $region109: #{tpu_custom_call.1} parent=79 // pred_check
          %p635 = pneg %p219
        $region110: #{tpu_custom_call.1} parent=79 // pred_check_branch
          %637 = sbr.rel (%p635) target = $region112
        $region111: #{tpu_custom_call.1} parent=79 // pred_region
          %638 = dma.done [#allocation17], 16
        $region112: #{tpu_custom_call.1} parent=79 // pred_fallthru
          _
        // Predicated region
        $region113: #{tpu_custom_call.1} parent=79 // pred_check
          %p639 = pneg %p240
        $region114: #{tpu_custom_call.1} parent=79 // pred_check_branch
          %641 = sbr.rel (%p639) target = $region116
        $region115: #{tpu_custom_call.1} parent=79 // pred_region
          %642 = dma.done [#allocation17], 16
        $region116: #{tpu_custom_call.1} parent=79 // pred_fallthru
          _
        // Predicated region
        $region117: #{tpu_custom_call.1} parent=79 // pred_check
          %p643 = pneg %p261
        $region118: #{tpu_custom_call.1} parent=79 // pred_check_branch
          %645 = sbr.rel (%p643) target = $region120
        $region119: #{tpu_custom_call.1} parent=79 // pred_region
          %646 = dma.done [#allocation20], 256
        $region120: #{tpu_custom_call.1} parent=79 // pred_fallthru
          _
        // Predicated region
        $region121: #{tpu_custom_call.1} parent=79 // pred_check
          %p647 = pneg %p282
        $region122: #{tpu_custom_call.1} parent=79 // pred_check_branch
          %649 = sbr.rel (%p647) target = $region124
        $region123: #{tpu_custom_call.1} parent=79 // pred_region
          %650 = dma.done [#allocation20], 16
        $region124: #{tpu_custom_call.1} parent=79 // pred_fallthru
          _
        // Predicated region
        $region125: #{tpu_custom_call.1} parent=79 // pred_check
          %p651 = pneg %p303
        $region126: #{tpu_custom_call.1} parent=79 // pred_check_branch
          %653 = sbr.rel (%p651) target = $region128
        $region127: #{tpu_custom_call.1} parent=79 // pred_region
          %654 = dma.done [#allocation23], 1024
        $region128: #{tpu_custom_call.1} parent=79 // pred_fallthru
          _
        // Predicated region
        $region129: #{tpu_custom_call.1} parent=79 // pred_check
          %p655 = pneg %p324
        $region130: #{tpu_custom_call.1} parent=79 // pred_check_branch
          %657 = sbr.rel (%p655) target = $region132
        $region131: #{tpu_custom_call.1} parent=79 // pred_region
          %658 = dma.done [#allocation23], 16
        $region132: #{tpu_custom_call.1} parent=79 // pred_fallthru
          _
        // Predicated region
        $region133: #{tpu_custom_call.1} parent=79 // pred_check
          %p659 = pneg %p345
        $region134: #{tpu_custom_call.1} parent=79 // pred_check_branch
          %661 = sbr.rel (%p659) target = $region136
        $region135: #{tpu_custom_call.1} parent=79 // pred_region
          %662 = dma.done [#allocation26], 16
        $region136: #{tpu_custom_call.1} parent=79 // pred_fallthru
          _
        // Predicated region
        $region137: #{tpu_custom_call.1} parent=79 // pred_check
          %p663 = pneg %p366
        $region138: #{tpu_custom_call.1} parent=79 // pred_check_branch
          %665 = sbr.rel (%p663) target = $region140
        $region139: #{tpu_custom_call.1} parent=79 // pred_region
          %666 = dma.done [#allocation26], 16
        $region140: #{tpu_custom_call.1} parent=79 // pred_fallthru
          _
        %s667 = sand.u32 %s59, 1
        %s668 = scalar_lea.sflag [#allocation5], %s667
        %s669 = sand.u32 %s59, 1
        %s670 = smul.addr %s669, 8
        %s671 = scalar_lea.vmem [#allocation4], %s670
        %p672 = pneg %p72
        %p673 = pneg %p69
        %p674 = pneg %p93
        %p675 = pneg %p90
        %p676 = pneg %p114
        %p677 = pneg %p111
        %p678 = pneg %p135
        %p679 = pneg %p132
        %p680 = pneg %p156
        %p681 = pneg %p153
        %p682 = pneg %p177
        %p683 = pneg %p174
        %p684 = pneg %p198
        %p685 = pneg %p195
        %p686 = pneg %p219
        %p687 = pneg %p216
        %p688 = pneg %p240
        %p689 = pneg %p237
        %p690 = pneg %p261
        %p691 = pneg %p258
        %p692 = pneg %p282
        %p693 = pneg %p279
        %p694 = pneg %p303
        %p695 = pneg %p300
        %p696 = pneg %p324
        %p697 = pneg %p321
        %p698 = pneg %p345
        %p699 = pneg %p342
        %p700 = pneg %p366
        %p701 = pneg %p363
        %p702 = pneg %p394
        %p703 = pneg %p391
        %s704 = sand.u32 %s381, 1
        %s705 = scalar_lea.sflag [#allocation6], %s704
        %s706 = sand.u32 %s381, 1
        %s707 = smul.addr %s706, 8
        %s708 = scalar_lea.vmem [#allocation28], %s707
        %p710 = scmp.eq.s32.totalorder %s44, 0
        // Predicated region
        $region141: #{tpu_custom_call.1} parent=79 // pred_check
          %p711 = pneg %p710
        $region142: #{tpu_custom_call.1} parent=79 // pred_check_branch
          %713 = sbr.rel (%p711) target = $region144
        $region143: #{tpu_custom_call.1} parent=79 // pred_region
          %v714 = vld [vmem:[%s606] sm:$0xff]
          %v715 = vpack.c.bf16 %v714, %v714
          %v716 = vld [vmem:[#allocation10] sm:$0xf]
          %v717 = vld [vmem:[#allocation10 + $0x4] sm:$0xf]
          %v718 = vld [vmem:[#allocation10 + $0x8] sm:$0xf]
          %v719 = vld [vmem:[#allocation10 + $0xc] sm:$0xf]
          %v720 = vld [vmem:[#allocation12] sm:$0x1]
          %v722 = vlaneseq
          %v723 = vshrl.u32 %v722, 7
          %v724 = vsub.s32 0, %v723
          %v725 = vrot.slane %v720, %v724
          %v731 = vunpack.c.l.b16 %v716
          %v732 = vunpack.c.l.b16 %v717
          %v733 = vunpack.c.l.b16 %v718
          %v734 = vunpack.c.l.b16 %v719
          %v735 = vpack.c.b16 %v732, %v731
          %v736 = vpack.c.b16 %v734, %v733
          %vm739 = vcmask 261120
          %v741 = vsel %vm739, %v715, 0
          %743 = vmatprep.subr.bf16.mxu0 0
          %744 = vmatpush1.bf16.msra.mxu0 %v735
          %745 = vmatprep.subr.bf16.mxu0 0
          %746 = vmatpush1.bf16.msra.mxu0 %v736
          %747 = vmatprep.subr.bf16.mxu0 0
          %748 = vmatpush1.bf16.msra.mxu0 0
          %749 = vmatprep.subr.bf16.mxu0 0
          %750 = vmatpush1.bf16.msra.mxu0 0
          %751 = vmatprep.subr.bf16.mxu0 0
          %752 = vmatpush1.bf16.msra.mxu0 0
          %753 = vmatprep.subr.bf16.mxu0 0
          %754 = vmatpush1.bf16.msra.mxu0 0
          %755 = vmatprep.subr.bf16.mxu0 0
          %756 = vmatpush1.bf16.msra.mxu0 0
          %757 = vmatprep.subr.bf16.mxu0 0
          %758 = vmatpush1.bf16.msra.mxu0 0
          %759 = vmatprep.subr.bf16.mxu0 0
          %760 = vmatpush1.bf16.msra.mxu0 0
          %761 = vmatprep.subr.bf16.mxu0 0
          %762 = vmatpush1.bf16.msra.mxu0 0
          %763 = vmatprep.subr.bf16.mxu0 0
          %764 = vmatpush1.bf16.msra.mxu0 0
          %765 = vmatprep.subr.bf16.mxu0 0
          %766 = vmatpush1.bf16.msra.mxu0 0
          %767 = vmatprep.subr.bf16.mxu0 0
          %768 = vmatpush1.bf16.msra.mxu0 0
          %769 = vmatprep.subr.bf16.mxu0 0
          %770 = vmatpush1.bf16.msra.mxu0 0
          %771 = vmatprep.subr.bf16.mxu0 0
          %772 = vmatpush1.bf16.msra.mxu0 0
          %773 = vmatprep.subr.bf16.mxu0 0
          %774 = vmatpush1.bf16.msra.mxu0 0
          %775 = vmatprep.mubr.bf16.mxu0 0
          %776 = vmatmul.mubr.bf16.gmra.mrb[0].mxu0 %v741
          %v777 = vpop.f32.mrb[0].mxu0
          %v778 = vadd.f32 %v725, %v777
          %v779 = vpop.f32.mrb[0].mxu0
          %v780 = vpop.f32.mrb[0].mxu0
          %v781 = vpop.f32.mrb[0].mxu0
          %782 = vdwg.mxu0
          %v783 = vpack.c.bf16 %v778, %v778
          %vm784 = vcmask 60416
          %785 = vst.msk [vmem:[#allocation2] sm:$0xf] %vm784, %v783
          %v787 = vunpack.c.l.b16 %v783
          %v788 = vpack.c.b16 %v787, %v787
          %789 = vrot.lane.b32.xlu0 %v788, 96
          %v790 = vpop.permute.xlu0 %789
          %792 = vst.msk [vmem:[#allocation3] sm:$0xf] %vm784, %v790
          %793 = vrot.lane.b32.xlu0 %v788, 120
          %v794 = vpop.permute.xlu0 %793
          %s796 = scalar_lea.vmem [#allocation2], 4
          %797 = vst.msk [vmem:[%s796] sm:$0xf] %vm784, %v794
          %798 = vrot.lane.b32.xlu0 %v788, 88
          %v799 = vpop.permute.xlu0 %798
          %s801 = scalar_lea.vmem [#allocation3], 4
          %802 = vst.msk [vmem:[%s801] sm:$0xf] %vm784, %v799
          %803 = vrot.lane.b32.xlu0 %v788, 112
          %v804 = vpop.permute.xlu0 %803
          %s806 = scalar_lea.vmem [#allocation2], 8
          %807 = vst.msk [vmem:[%s806] sm:$0xf] %vm784, %v804
          %808 = vrot.lane.b32.xlu0 %v788, 80
          %v809 = vpop.permute.xlu0 %808
          %s811 = scalar_lea.vmem [#allocation3], 8
          %812 = vst.msk [vmem:[%s811] sm:$0xf] %vm784, %v809
          %813 = vrot.lane.b32.xlu0 %v788, 104
          %v814 = vpop.permute.xlu0 %813
          %s816 = scalar_lea.vmem [#allocation2], 12
          %817 = vst.msk [vmem:[%s816] sm:$0xf] %vm784, %v814
          %818 = vrot.lane.b32.xlu0 %v788, 72
          %v819 = vpop.permute.xlu0 %818
          %s821 = scalar_lea.vmem [#allocation3], 12
          %822 = vst.msk [vmem:[%s821] sm:$0xf] %vm784, %v819
        $region144: #{tpu_custom_call.1} parent=79 // pred_fallthru
          _
        %s823 = smul.u32 %s44, 8
        %s824 = scalar_lea.vmem %s606, %s823 [#allocation4]
        %v825 = vld [vmem:[%s824] sm:$0xff]
        %v826 = vpack.c.bf16 %v825, %v825
        %v827 = vld [vmem:[#allocation7] sm:$0xf]
        %v828 = vld [vmem:[#allocation7 + $0x4] sm:$0xf]
        %v829 = vld [vmem:[#allocation7 + $0x8] sm:$0xf]
        %v830 = vld [vmem:[#allocation7 + $0xc] sm:$0xf]
        %v831 = vld [vmem:[#allocation9] sm:$0x1]
        %v833 = vlaneseq
        %v834 = vshrl.u32 %v833, 7
        %v835 = vsub.s32 0, %v834
        %v836 = vrot.slane %v831, %v835
        %v842 = vunpack.c.l.b16 %v827
        %v843 = vunpack.c.l.b16 %v828
        %v844 = vunpack.c.l.b16 %v829
        %v845 = vunpack.c.l.b16 %v830
        %v846 = vpack.c.b16 %v843, %v842
        %v847 = vpack.c.b16 %v845, %v844
        %vm850 = vcmask 261120
        %v852 = vsel %vm850, %v826, 0
        %854 = vmatprep.subr.bf16.mxu0 0
        %855 = vmatpush1.bf16.msra.mxu0 %v846
        %856 = vmatprep.subr.bf16.mxu0 0
        %857 = vmatpush1.bf16.msra.mxu0 %v847
        %858 = vmatprep.subr.bf16.mxu0 0
        %859 = vmatpush1.bf16.msra.mxu0 0
        %860 = vmatprep.subr.bf16.mxu0 0
        %861 = vmatpush1.bf16.msra.mxu0 0
        %862 = vmatprep.subr.bf16.mxu0 0
        %863 = vmatpush1.bf16.msra.mxu0 0
        %864 = vmatprep.subr.bf16.mxu0 0
        %865 = vmatpush1.bf16.msra.mxu0 0
        %866 = vmatprep.subr.bf16.mxu0 0
        %867 = vmatpush1.bf16.msra.mxu0 0
        %868 = vmatprep.subr.bf16.mxu0 0
        %869 = vmatpush1.bf16.msra.mxu0 0
        %870 = vmatprep.subr.bf16.mxu0 0
        %871 = vmatpush1.bf16.msra.mxu0 0
        %872 = vmatprep.subr.bf16.mxu0 0
        %873 = vmatpush1.bf16.msra.mxu0 0
        %874 = vmatprep.subr.bf16.mxu0 0
        %875 = vmatpush1.bf16.msra.mxu0 0
        %876 = vmatprep.subr.bf16.mxu0 0
        %877 = vmatpush1.bf16.msra.mxu0 0
        %878 = vmatprep.subr.bf16.mxu0 0
        %879 = vmatpush1.bf16.msra.mxu0 0
        %880 = vmatprep.subr.bf16.mxu0 0
        %881 = vmatpush1.bf16.msra.mxu0 0
        %882 = vmatprep.subr.bf16.mxu0 0
        %883 = vmatpush1.bf16.msra.mxu0 0
        %884 = vmatprep.subr.bf16.mxu0 0
        %885 = vmatpush1.bf16.msra.mxu0 0
        %886 = vmatprep.mubr.bf16.mxu0 0
        %887 = vmatmul.mubr.bf16.gmra.mrb[0].mxu0 %v852
        %v888 = vpop.f32.mrb[0].mxu0
        %v889 = vadd.f32 %v836, %v888
        %v890 = vpop.f32.mrb[0].mxu0
        %v891 = vpop.f32.mrb[0].mxu0
        %v892 = vpop.f32.mrb[0].mxu0
        %893 = vdwg.mxu0
        %v894 = vmul.f32 %v889, 0.35355338
        %v895 = vpack.c.bf16 %v894, %v894
        %897 = vrot.lane.b32.xlu0 %v895, 120
        %v898 = vpop.permute.xlu0 %897
        %899 = vrot.lane.b32.xlu0 %v895, 112
        %v900 = vpop.permute.xlu0 %899
        %901 = vrot.lane.b32.xlu0 %v895, 104
        %v902 = vpop.permute.xlu0 %901
        %v903 = vld [vmem:[#allocation2] sm:$0xf]
        %v904 = vld [vmem:[#allocation2 + $0x4] sm:$0xf]
        %v905 = vld [vmem:[#allocation2 + $0x8] sm:$0xf]
        %v906 = vld [vmem:[#allocation2 + $0xc] sm:$0xf]
        %v907 = vld [vmem:[#allocation3] sm:$0xf]
        %v908 = vld [vmem:[#allocation3 + $0x4] sm:$0xf]
        %v909 = vld [vmem:[#allocation3 + $0x8] sm:$0xf]
        %v910 = vld [vmem:[#allocation3 + $0xc] sm:$0xf]
        %vm911 = vcmask 64512
        %v913 = vsel %vm911, %v895, 0
        %v916 = vsel %vm911, %v903, 0
        %918 = vmatprep.subr.bf16.mxu0 0
        %919 = vmatpush1.bf16.xpose.msra.mxu0 %v916
        %920 = vmatprep.subr.bf16.mxu0 0
        %921 = vmatpush1.bf16.xpose.msra.mxu0 0
        %922 = vmatprep.subr.bf16.mxu0 0
        %923 = vmatpush1.bf16.xpose.msra.mxu0 0
        %924 = vmatprep.subr.bf16.mxu0 0
        %925 = vmatpush1.bf16.xpose.msra.mxu0 0
        %926 = vmatprep.subr.bf16.mxu0 0
        %927 = vmatpush1.bf16.xpose.msra.mxu0 0
        %928 = vmatprep.subr.bf16.mxu0 0
        %929 = vmatpush1.bf16.xpose.msra.mxu0 0
        %930 = vmatprep.subr.bf16.mxu0 0
        %931 = vmatpush1.bf16.xpose.msra.mxu0 0
        %932 = vmatprep.subr.bf16.mxu0 0
        %933 = vmatpush1.bf16.xpose.msra.mxu0 0
        %934 = vmatprep.subr.bf16.mxu0 0
        %935 = vmatpush1.bf16.xpose.msra.mxu0 0
        %936 = vmatprep.subr.bf16.mxu0 0
        %937 = vmatpush1.bf16.xpose.msra.mxu0 0
        %938 = vmatprep.subr.bf16.mxu0 0
        %939 = vmatpush1.bf16.xpose.msra.mxu0 0
        %940 = vmatprep.subr.bf16.mxu0 0
        %941 = vmatpush1.bf16.xpose.msra.mxu0 0
        %942 = vmatprep.subr.bf16.mxu0 0
        %943 = vmatpush1.bf16.xpose.msra.mxu0 0
        %944 = vmatprep.subr.bf16.mxu0 0
        %945 = vmatpush1.bf16.xpose.msra.mxu0 0
        %946 = vmatprep.subr.bf16.mxu0 0
        %947 = vmatpush1.bf16.xpose.msra.mxu0 0
        %948 = vmatprep.subr.bf16.mxu0 0
        %949 = vmatpush1.bf16.xpose.msra.mxu0 0
        %950 = vmatprep.mubr.bf16.mxu0 0
        %951 = vmatmul.mubr.bf16.gmra.mrb[0].mxu0 %v913
        %v952 = vpop.f32.mrb[0].mxu0
        %v953 = vadd.f32 0.0, %v952
        %v954 = vpop.f32.mrb[0].mxu0
        %v955 = vpop.f32.mrb[0].mxu0
        %v956 = vpop.f32.mrb[0].mxu0
        %957 = vdwg.mxu0
        %v959 = vsel %vm911, %v898, 0
        %v962 = vsel %vm911, %v904, 0
        %964 = vmatprep.subr.bf16.mxu0 0
        %965 = vmatpush1.bf16.xpose.msra.mxu0 %v962
        %966 = vmatprep.subr.bf16.mxu0 0
        %967 = vmatpush1.bf16.xpose.msra.mxu0 0
        %968 = vmatprep.subr.bf16.mxu0 0
        %969 = vmatpush1.bf16.xpose.msra.mxu0 0
        %970 = vmatprep.subr.bf16.mxu0 0
        %971 = vmatpush1.bf16.xpose.msra.mxu0 0
        %972 = vmatprep.subr.bf16.mxu0 0
        %973 = vmatpush1.bf16.xpose.msra.mxu0 0
        %974 = vmatprep.subr.bf16.mxu0 0
        %975 = vmatpush1.bf16.xpose.msra.mxu0 0
        %976 = vmatprep.subr.bf16.mxu0 0
        %977 = vmatpush1.bf16.xpose.msra.mxu0 0
        %978 = vmatprep.subr.bf16.mxu0 0
        %979 = vmatpush1.bf16.xpose.msra.mxu0 0
        %980 = vmatprep.subr.bf16.mxu0 0
        %981 = vmatpush1.bf16.xpose.msra.mxu0 0
        %982 = vmatprep.subr.bf16.mxu0 0
        %983 = vmatpush1.bf16.xpose.msra.mxu0 0
        %984 = vmatprep.subr.bf16.mxu0 0
        %985 = vmatpush1.bf16.xpose.msra.mxu0 0
        %986 = vmatprep.subr.bf16.mxu0 0
        %987 = vmatpush1.bf16.xpose.msra.mxu0 0
        %988 = vmatprep.subr.bf16.mxu0 0
        %989 = vmatpush1.bf16.xpose.msra.mxu0 0
        %990 = vmatprep.subr.bf16.mxu0 0
        %991 = vmatpush1.bf16.xpose.msra.mxu0 0
        %992 = vmatprep.subr.bf16.mxu0 0
        %993 = vmatpush1.bf16.xpose.msra.mxu0 0
        %994 = vmatprep.subr.bf16.mxu0 0
        %995 = vmatpush1.bf16.xpose.msra.mxu0 0
        %996 = vmatprep.mubr.bf16.mxu0 0
        %997 = vmatmul.mubr.bf16.gmra.mrb[0].mxu0 %v959
        %v998 = vpop.f32.mrb[0].mxu0
        %v999 = vadd.f32 0.0, %v998
        %v1000 = vpop.f32.mrb[0].mxu0
        %v1001 = vpop.f32.mrb[0].mxu0
        %v1002 = vpop.f32.mrb[0].mxu0
        %1003 = vdwg.mxu0
        %v1005 = vsel %vm911, %v900, 0
        %v1008 = vsel %vm911, %v905, 0
        %1010 = vmatprep.subr.bf16.mxu0 0
        %1011 = vmatpush1.bf16.xpose.msra.mxu0 %v1008
        %1012 = vmatprep.subr.bf16.mxu0 0
        %1013 = vmatpush1.bf16.xpose.msra.mxu0 0
        %1014 = vmatprep.subr.bf16.mxu0 0
        %1015 = vmatpush1.bf16.xpose.msra.mxu0 0
        %1016 = vmatprep.subr.bf16.mxu0 0
        %1017 = vmatpush1.bf16.xpose.msra.mxu0 0
        %1018 = vmatprep.subr.bf16.mxu0 0
        %1019 = vmatpush1.bf16.xpose.msra.mxu0 0
        %1020 = vmatprep.subr.bf16.mxu0 0
        %1021 = vmatpush1.bf16.xpose.msra.mxu0 0
        %1022 = vmatprep.subr.bf16.mxu0 0
        %1023 = vmatpush1.bf16.xpose.msra.mxu0 0
        %1024 = vmatprep.subr.bf16.mxu0 0
        %1025 = vmatpush1.bf16.xpose.msra.mxu0 0
        %1026 = vmatprep.subr.bf16.mxu0 0
        %1027 = vmatpush1.bf16.xpose.msra.mxu0 0
        %1028 = vmatprep.subr.bf16.mxu0 0
        %1029 = vmatpush1.bf16.xpose.msra.mxu0 0
        %1030 = vmatprep.subr.bf16.mxu0 0
        %1031 = vmatpush1.bf16.xpose.msra.mxu0 0
        %1032 = vmatprep.subr.bf16.mxu0 0
        %1033 = vmatpush1.bf16.xpose.msra.mxu0 0
        %1034 = vmatprep.subr.bf16.mxu0 0
        %1035 = vmatpush1.bf16.xpose.msra.mxu0 0
        %1036 = vmatprep.subr.bf16.mxu0 0
        %1037 = vmatpush1.bf16.xpose.msra.mxu0 0
        %1038 = vmatprep.subr.bf16.mxu0 0
        %1039 = vmatpush1.bf16.xpose.msra.mxu0 0
        %1040 = vmatprep.subr.bf16.mxu0 0
        %1041 = vmatpush1.bf16.xpose.msra.mxu0 0
        %1042 = vmatprep.mubr.bf16.mxu0 0
        %1043 = vmatmul.mubr.bf16.gmra.mrb[0].mxu0 %v1005
        %v1044 = vpop.f32.mrb[0].mxu0
        %v1045 = vadd.f32 0.0, %v1044
        %v1046 = vpop.f32.mrb[0].mxu0
        %v1047 = vpop.f32.mrb[0].mxu0
        %v1048 = vpop.f32.mrb[0].mxu0
        %1049 = vdwg.mxu0
        %v1051 = vsel %vm911, %v902, 0
        %v1054 = vsel %vm911, %v906, 0
        %1056 = vmatprep.subr.bf16.mxu0 0
        %1057 = vmatpush1.bf16.xpose.msra.mxu0 %v1054
        %1058 = vmatprep.subr.bf16.mxu0 0
        %1059 = vmatpush1.bf16.xpose.msra.mxu0 0
        %1060 = vmatprep.subr.bf16.mxu0 0
        %1061 = vmatpush1.bf16.xpose.msra.mxu0 0
        %1062 = vmatprep.subr.bf16.mxu0 0
        %1063 = vmatpush1.bf16.xpose.msra.mxu0 0
        %1064 = vmatprep.subr.bf16.mxu0 0
        %1065 = vmatpush1.bf16.xpose.msra.mxu0 0
        %1066 = vmatprep.subr.bf16.mxu0 0
        %1067 = vmatpush1.bf16.xpose.msra.mxu0 0
        %1068 = vmatprep.subr.bf16.mxu0 0
        %1069 = vmatpush1.bf16.xpose.msra.mxu0 0
        %1070 = vmatprep.subr.bf16.mxu0 0
        %1071 = vmatpush1.bf16.xpose.msra.mxu0 0
        %1072 = vmatprep.subr.bf16.mxu0 0
        %1073 = vmatpush1.bf16.xpose.msra.mxu0 0
        %1074 = vmatprep.subr.bf16.mxu0 0
        %1075 = vmatpush1.bf16.xpose.msra.mxu0 0
        %1076 = vmatprep.subr.bf16.mxu0 0
        %1077 = vmatpush1.bf16.xpose.msra.mxu0 0
        %1078 = vmatprep.subr.bf16.mxu0 0
        %1079 = vmatpush1.bf16.xpose.msra.mxu0 0
        %1080 = vmatprep.subr.bf16.mxu0 0
        %1081 = vmatpush1.bf16.xpose.msra.mxu0 0
        %1082 = vmatprep.subr.bf16.mxu0 0
        %1083 = vmatpush1.bf16.xpose.msra.mxu0 0
        %1084 = vmatprep.subr.bf16.mxu0 0
        %1085 = vmatpush1.bf16.xpose.msra.mxu0 0
        %1086 = vmatprep.subr.bf16.mxu0 0
        %1087 = vmatpush1.bf16.xpose.msra.mxu0 0
        %1088 = vmatprep.mubr.bf16.mxu0 0
        %1089 = vmatmul.mubr.bf16.gmra.mrb[0].mxu0 %v1051
        %v1090 = vpop.f32.mrb[0].mxu0
        %v1091 = vadd.f32 0.0, %v1090
        %v1092 = vpop.f32.mrb[0].mxu0
        %v1093 = vpop.f32.mrb[0].mxu0
        %v1094 = vpop.f32.mrb[0].mxu0
        %1095 = vdwg.mxu0
        %v1096 = vsel %vm911, %v953, -inf
        %1097 = vmax.xlane.f32.xlu0 %v1096
        %v1098 = vpop.xlane.xlu0 %1097
        %v1099 = vsel %vm911, %v999, -inf
        %1100 = vmax.xlane.f32.xlu0 %v1099
        %v1101 = vpop.xlane.xlu0 %1100
        %v1102 = vsel %vm911, %v1045, -inf
        %1103 = vmax.xlane.f32.xlu0 %v1102
        %v1104 = vpop.xlane.xlu0 %1103
        %v1105 = vsel %vm911, %v1091, -inf
        %1106 = vmax.xlane.f32.xlu0 %v1105
        %v1107 = vpop.xlane.xlu0 %1106
        %v1108 = vsub.f32 -inf, %v1098
        %v1109 = vsub.f32 -inf, %v1101
        %v1110 = vsub.f32 -inf, %v1104
        %v1111 = vsub.f32 -inf, %v1107
        %v1112 = vmul.f32 %v1108, 1.442695
        %v1113 = vpow.pop %v1112
        %v1114 = vmul.f32 %v1109, 1.442695
        %v1115 = vpow.pop %v1114
        %v1116 = vmul.f32 %v1110, 1.442695
        %v1117 = vpow.pop %v1116
        %v1118 = vmul.f32 %v1111, 1.442695
        %v1119 = vpow.pop %v1118
        %v1120 = vsub.f32 %v953, %v1098
        %v1121 = vsub.f32 %v999, %v1101
        %v1122 = vsub.f32 %v1045, %v1104
        %v1123 = vsub.f32 %v1091, %v1107
        %v1124 = vmul.f32 %v1120, 1.442695
        %v1125 = vpow.pop %v1124
        %v1126 = vmul.f32 %v1121, 1.442695
        %v1127 = vpow.pop %v1126
        %v1128 = vmul.f32 %v1122, 1.442695
        %v1129 = vpow.pop %v1128
        %v1130 = vmul.f32 %v1123, 1.442695
        %v1131 = vpow.pop %v1130
        %v1132 = vmul.f32 %v1113, 0.0
        %v1133 = vmul.f32 %v1115, 0.0
        %v1134 = vmul.f32 %v1117, 0.0
        %v1135 = vmul.f32 %v1119, 0.0
        %v1136 = vsel %vm911, %v1125, 0.0
        %1137 = vadd.xlane.f32.xlu0 %v1136
        %v1138 = vpop.xlane.xlu0 %1137
        %v1139 = vsel %vm911, %v1127, 0.0
        %1140 = vadd.xlane.f32.xlu0 %v1139
        %v1141 = vpop.xlane.xlu0 %1140
        %v1142 = vsel %vm911, %v1129, 0.0
        %1143 = vadd.xlane.f32.xlu0 %v1142
        %v1144 = vpop.xlane.xlu0 %1143
        %v1145 = vsel %vm911, %v1131, 0.0
        %1146 = vadd.xlane.f32.xlu0 %v1145
        %v1147 = vpop.xlane.xlu0 %1146
        %v1148 = vadd.f32 %v1132, %v1138
        %v1149 = vadd.f32 %v1133, %v1141
        %v1150 = vadd.f32 %v1134, %v1144
        %v1151 = vadd.f32 %v1135, %v1147
        %v1152 = vpack.c.bf16 %v1125, %v1125
        %v1153 = vpack.c.bf16 %v1127, %v1127
        %v1154 = vpack.c.bf16 %v1129, %v1129
        %v1155 = vpack.c.bf16 %v1131, %v1131
        %v1157 = vsel %vm911, %v1152, 0
        %vm1159 = vcmask 1043456
        %v1161 = vsel %vm1159, %v907, 0
        %1163 = vmatprep.subr.bf16.mxu0 0
        %1164 = vmatpush1.bf16.msra.mxu0 %v1161
        %1165 = vmatprep.subr.bf16.mxu0 0
        %1166 = vmatpush1.bf16.msra.mxu0 0
        %1167 = vmatprep.subr.bf16.mxu0 0
        %1168 = vmatpush1.bf16.msra.mxu0 0
        %1169 = vmatprep.subr.bf16.mxu0 0
        %1170 = vmatpush1.bf16.msra.mxu0 0
        %1171 = vmatprep.subr.bf16.mxu0 0
        %1172 = vmatpush1.bf16.msra.mxu0 0
        %1173 = vmatprep.subr.bf16.mxu0 0
        %1174 = vmatpush1.bf16.msra.mxu0 0
        %1175 = vmatprep.subr.bf16.mxu0 0
        %1176 = vmatpush1.bf16.msra.mxu0 0
        %1177 = vmatprep.subr.bf16.mxu0 0
        %1178 = vmatpush1.bf16.msra.mxu0 0
        %1179 = vmatprep.subr.bf16.mxu0 0
        %1180 = vmatpush1.bf16.msra.mxu0 0
        %1181 = vmatprep.subr.bf16.mxu0 0
        %1182 = vmatpush1.bf16.msra.mxu0 0
        %1183 = vmatprep.subr.bf16.mxu0 0
        %1184 = vmatpush1.bf16.msra.mxu0 0
        %1185 = vmatprep.subr.bf16.mxu0 0
        %1186 = vmatpush1.bf16.msra.mxu0 0
        %1187 = vmatprep.subr.bf16.mxu0 0
        %1188 = vmatpush1.bf16.msra.mxu0 0
        %1189 = vmatprep.subr.bf16.mxu0 0
        %1190 = vmatpush1.bf16.msra.mxu0 0
        %1191 = vmatprep.subr.bf16.mxu0 0
        %1192 = vmatpush1.bf16.msra.mxu0 0
        %1193 = vmatprep.subr.bf16.mxu0 0
        %1194 = vmatpush1.bf16.msra.mxu0 0
        %1195 = vmatprep.mubr.bf16.mxu0 0
        %1196 = vmatmul.mubr.bf16.gmra.mrb[0].mxu0 %v1157
        %v1197 = vpop.f32.mrb[0].mxu0
        %v1198 = vadd.f32 0.0, %v1197
        %v1199 = vpop.f32.mrb[0].mxu0
        %v1200 = vpop.f32.mrb[0].mxu0
        %v1201 = vpop.f32.mrb[0].mxu0
        %1202 = vdwg.mxu0
        %v1204 = vsel %vm911, %v1153, 0
        %v1207 = vsel %vm1159, %v908, 0
        %1209 = vmatprep.subr.bf16.mxu0 0
        %1210 = vmatpush1.bf16.msra.mxu0 %v1207
        %1211 = vmatprep.subr.bf16.mxu0 0
        %1212 = vmatpush1.bf16.msra.mxu0 0
        %1213 = vmatprep.subr.bf16.mxu0 0
        %1214 = vmatpush1.bf16.msra.mxu0 0
        %1215 = vmatprep.subr.bf16.mxu0 0
        %1216 = vmatpush1.bf16.msra.mxu0 0
        %1217 = vmatprep.subr.bf16.mxu0 0
        %1218 = vmatpush1.bf16.msra.mxu0 0
        %1219 = vmatprep.subr.bf16.mxu0 0
        %1220 = vmatpush1.bf16.msra.mxu0 0
        %1221 = vmatprep.subr.bf16.mxu0 0
        %1222 = vmatpush1.bf16.msra.mxu0 0
        %1223 = vmatprep.subr.bf16.mxu0 0
        %1224 = vmatpush1.bf16.msra.mxu0 0
        %1225 = vmatprep.subr.bf16.mxu0 0
        %1226 = vmatpush1.bf16.msra.mxu0 0
        %1227 = vmatprep.subr.bf16.mxu0 0
        %1228 = vmatpush1.bf16.msra.mxu0 0
        %1229 = vmatprep.subr.bf16.mxu0 0
        %1230 = vmatpush1.bf16.msra.mxu0 0
        %1231 = vmatprep.subr.bf16.mxu0 0
        %1232 = vmatpush1.bf16.msra.mxu0 0
        %1233 = vmatprep.subr.bf16.mxu0 0
        %1234 = vmatpush1.bf16.msra.mxu0 0
        %1235 = vmatprep.subr.bf16.mxu0 0
        %1236 = vmatpush1.bf16.msra.mxu0 0
        %1237 = vmatprep.subr.bf16.mxu0 0
        %1238 = vmatpush1.bf16.msra.mxu0 0
        %1239 = vmatprep.subr.bf16.mxu0 0
        %1240 = vmatpush1.bf16.msra.mxu0 0
        %1241 = vmatprep.mubr.bf16.mxu0 0
        %1242 = vmatmul.mubr.bf16.gmra.mrb[0].mxu0 %v1204
        %v1243 = vpop.f32.mrb[0].mxu0
        %v1244 = vadd.f32 0.0, %v1243
        %v1245 = vpop.f32.mrb[0].mxu0
        %v1246 = vpop.f32.mrb[0].mxu0
        %v1247 = vpop.f32.mrb[0].mxu0
        %1248 = vdwg.mxu0
        %v1250 = vsel %vm911, %v1154, 0
        %v1253 = vsel %vm1159, %v909, 0
        %1255 = vmatprep.subr.bf16.mxu0 0
        %1256 = vmatpush1.bf16.msra.mxu0 %v1253
        %1257 = vmatprep.subr.bf16.mxu0 0
        %1258 = vmatpush1.bf16.msra.mxu0 0
        %1259 = vmatprep.subr.bf16.mxu0 0
        %1260 = vmatpush1.bf16.msra.mxu0 0
        %1261 = vmatprep.subr.bf16.mxu0 0
        %1262 = vmatpush1.bf16.msra.mxu0 0
        %1263 = vmatprep.subr.bf16.mxu0 0
        %1264 = vmatpush1.bf16.msra.mxu0 0
        %1265 = vmatprep.subr.bf16.mxu0 0
        %1266 = vmatpush1.bf16.msra.mxu0 0
        %1267 = vmatprep.subr.bf16.mxu0 0
        %1268 = vmatpush1.bf16.msra.mxu0 0
        %1269 = vmatprep.subr.bf16.mxu0 0
        %1270 = vmatpush1.bf16.msra.mxu0 0
        %1271 = vmatprep.subr.bf16.mxu0 0
        %1272 = vmatpush1.bf16.msra.mxu0 0
        %1273 = vmatprep.subr.bf16.mxu0 0
        %1274 = vmatpush1.bf16.msra.mxu0 0
        %1275 = vmatprep.subr.bf16.mxu0 0
        %1276 = vmatpush1.bf16.msra.mxu0 0
        %1277 = vmatprep.subr.bf16.mxu0 0
        %1278 = vmatpush1.bf16.msra.mxu0 0
        %1279 = vmatprep.subr.bf16.mxu0 0
        %1280 = vmatpush1.bf16.msra.mxu0 0
        %1281 = vmatprep.subr.bf16.mxu0 0
        %1282 = vmatpush1.bf16.msra.mxu0 0
        %1283 = vmatprep.subr.bf16.mxu0 0
        %1284 = vmatpush1.bf16.msra.mxu0 0
        %1285 = vmatprep.subr.bf16.mxu0 0
        %1286 = vmatpush1.bf16.msra.mxu0 0
        %1287 = vmatprep.mubr.bf16.mxu0 0
        %1288 = vmatmul.mubr.bf16.gmra.mrb[0].mxu0 %v1250
        %v1289 = vpop.f32.mrb[0].mxu0
        %v1290 = vadd.f32 0.0, %v1289
        %v1291 = vpop.f32.mrb[0].mxu0
        %v1292 = vpop.f32.mrb[0].mxu0
        %v1293 = vpop.f32.mrb[0].mxu0
        %1294 = vdwg.mxu0
        %v1296 = vsel %vm911, %v1155, 0
        %v1299 = vsel %vm1159, %v910, 0
        %1301 = vmatprep.subr.bf16.mxu0 0
        %1302 = vmatpush1.bf16.msra.mxu0 %v1299
        %1303 = vmatprep.subr.bf16.mxu0 0
        %1304 = vmatpush1.bf16.msra.mxu0 0
        %1305 = vmatprep.subr.bf16.mxu0 0
        %1306 = vmatpush1.bf16.msra.mxu0 0
        %1307 = vmatprep.subr.bf16.mxu0 0
        %1308 = vmatpush1.bf16.msra.mxu0 0
        %1309 = vmatprep.subr.bf16.mxu0 0
        %1310 = vmatpush1.bf16.msra.mxu0 0
        %1311 = vmatprep.subr.bf16.mxu0 0
        %1312 = vmatpush1.bf16.msra.mxu0 0
        %1313 = vmatprep.subr.bf16.mxu0 0
        %1314 = vmatpush1.bf16.msra.mxu0 0
        %1315 = vmatprep.subr.bf16.mxu0 0
        %1316 = vmatpush1.bf16.msra.mxu0 0
        %1317 = vmatprep.subr.bf16.mxu0 0
        %1318 = vmatpush1.bf16.msra.mxu0 0
        %1319 = vmatprep.subr.bf16.mxu0 0
        %1320 = vmatpush1.bf16.msra.mxu0 0
        %1321 = vmatprep.subr.bf16.mxu0 0
        %1322 = vmatpush1.bf16.msra.mxu0 0
        %1323 = vmatprep.subr.bf16.mxu0 0
        %1324 = vmatpush1.bf16.msra.mxu0 0
        %1325 = vmatprep.subr.bf16.mxu0 0
        %1326 = vmatpush1.bf16.msra.mxu0 0
        %1327 = vmatprep.subr.bf16.mxu0 0
        %1328 = vmatpush1.bf16.msra.mxu0 0
        %1329 = vmatprep.subr.bf16.mxu0 0
        %1330 = vmatpush1.bf16.msra.mxu0 0
        %1331 = vmatprep.subr.bf16.mxu0 0
        %1332 = vmatpush1.bf16.msra.mxu0 0
        %1333 = vmatprep.mubr.bf16.mxu0 0
        %1334 = vmatmul.mubr.bf16.gmra.mrb[0].mxu0 %v1296
        %v1335 = vpop.f32.mrb[0].mxu0
        %v1336 = vadd.f32 0.0, %v1335
        %v1337 = vpop.f32.mrb[0].mxu0
        %v1338 = vpop.f32.mrb[0].mxu0
        %v1339 = vpop.f32.mrb[0].mxu0
        %1340 = vdwg.mxu0
        %v1341 = vadd.f32 %v1132, %v1198
        %v1342 = vadd.f32 %v1133, %v1244
        %v1343 = vadd.f32 %v1134, %v1290
        %v1344 = vadd.f32 %v1135, %v1336
        %v1345 = vrcp.pop %v1148
        %v1346 = vrcp.pop %v1149
        %v1347 = vrcp.pop %v1150
        %v1348 = vrcp.pop %v1151
        %v1349 = vmul.f32 %v1341, %v1345
        %v1350 = vmul.f32 %v1342, %v1346
        %v1351 = vmul.f32 %v1343, %v1347
        %v1352 = vmul.f32 %v1344, %v1348
        %v1353 = vpack.c.bf16 %v1349, %v1349
        %v1354 = vpack.c.bf16 %v1350, %v1350
        %v1355 = vpack.c.bf16 %v1351, %v1351
        %v1356 = vpack.c.bf16 %v1352, %v1352
        %1358 = vrot.lane.b32.xlu0 %v1354, 8
        %v1359 = vpop.permute.xlu0 %1358
        %1361 = vrot.lane.b32.xlu0 %v1355, 16
        %v1362 = vpop.permute.xlu0 %1361
        %1364 = vrot.lane.b32.xlu0 %v1356, 24
        %v1365 = vpop.permute.xlu0 %1364
        %v1368 = vsel %vm911, %v1353, %v1359
        %vm1369 = vcmask 130048
        %v1371 = vsel %vm1369, %v1368, %v1362
        %vm1372 = vcmask 195584
        %v1374 = vsel %vm1372, %v1371, %v1365
        %v1375 = vld [vmem:[#allocation13] sm:$0xf]
        %v1376 = vld [vmem:[#allocation13 + $0x4] sm:$0xf]
        %v1377 = vld [vmem:[#allocation13 + $0x8] sm:$0xf]
        %v1378 = vld [vmem:[#allocation13 + $0xc] sm:$0xf]
        %v1379 = vld [vmem:[#allocation15] sm:$0x1]
        %v1381 = vlaneseq
        %v1382 = vshrl.u32 %v1381, 7
        %v1383 = vsub.s32 0, %v1382
        %v1384 = vrot.slane %v1379, %v1383
        %v1390 = vunpack.c.l.b16 %v1375
        %v1391 = vunpack.c.l.b16 %v1376
        %v1392 = vunpack.c.l.b16 %v1377
        %v1393 = vunpack.c.l.b16 %v1378
        %v1394 = vpack.c.b16 %v1391, %v1390
        %v1395 = vpack.c.b16 %v1393, %v1392
        %v1398 = vsel %vm850, %v1374, 0
        %1400 = vmatprep.subr.bf16.mxu0 0
        %1401 = vmatpush1.bf16.msra.mxu0 %v1394
        %1402 = vmatprep.subr.bf16.mxu0 0
        %1403 = vmatpush1.bf16.msra.mxu0 %v1395
        %1404 = vmatprep.subr.bf16.mxu0 0
        %1405 = vmatpush1.bf16.msra.mxu0 0
        %1406 = vmatprep.subr.bf16.mxu0 0
        %1407 = vmatpush1.bf16.msra.mxu0 0
        %1408 = vmatprep.subr.bf16.mxu0 0
        %1409 = vmatpush1.bf16.msra.mxu0 0
        %1410 = vmatprep.subr.bf16.mxu0 0
        %1411 = vmatpush1.bf16.msra.mxu0 0
        %1412 = vmatprep.subr.bf16.mxu0 0
        %1413 = vmatpush1.bf16.msra.mxu0 0
        %1414 = vmatprep.subr.bf16.mxu0 0
        %1415 = vmatpush1.bf16.msra.mxu0 0
        %1416 = vmatprep.subr.bf16.mxu0 0
        %1417 = vmatpush1.bf16.msra.mxu0 0
        %1418 = vmatprep.subr.bf16.mxu0 0
        %1419 = vmatpush1.bf16.msra.mxu0 0
        %1420 = vmatprep.subr.bf16.mxu0 0
        %1421 = vmatpush1.bf16.msra.mxu0 0
        %1422 = vmatprep.subr.bf16.mxu0 0
        %1423 = vmatpush1.bf16.msra.mxu0 0
        %1424 = vmatprep.subr.bf16.mxu0 0
        %1425 = vmatpush1.bf16.msra.mxu0 0
        %1426 = vmatprep.subr.bf16.mxu0 0
        %1427 = vmatpush1.bf16.msra.mxu0 0
        %1428 = vmatprep.subr.bf16.mxu0 0
        %1429 = vmatpush1.bf16.msra.mxu0 0
        %1430 = vmatprep.subr.bf16.mxu0 0
        %1431 = vmatpush1.bf16.msra.mxu0 0
        %1432 = vmatprep.mubr.bf16.mxu0 0
        %1433 = vmatmul.mubr.bf16.gmra.mrb[0].mxu0 %v1398
        %v1434 = vpop.f32.mrb[0].mxu0
        %v1435 = vadd.f32 %v1384, %v1434
        %v1436 = vpop.f32.mrb[0].mxu0
        %v1437 = vpop.f32.mrb[0].mxu0
        %v1438 = vpop.f32.mrb[0].mxu0
        %1439 = vdwg.mxu0
        %v1440 = vadd.f32 %v825, %v1435
        %v1441 = vld [vmem:[#allocation16] sm:$0x1]
        %v1442 = vld [vmem:[#allocation18] sm:$0x1]
        %v1443 = vsel %vm850, %v1440, 0.0
        %1444 = vadd.xlane.f32.xlu0 %v1443
        %v1445 = vpop.xlane.xlu0 %1444
        %v1446 = vrcp.pop 32.0
        %v1447 = vmul.f32 %v1445, %v1446
        %v1448 = vsub.f32 %v1440, %v1447
        %v1449 = vmul.f32 %v1448, %v1448
        %v1450 = vsel %vm850, %v1449, 0.0
        %1451 = vadd.xlane.f32.xlu0 %v1450
        %v1452 = vpop.xlane.xlu0 %1451
        %v1453 = vmul.f32 %v1452, %v1446
        %v1454 = vadd.f32 %v1453, 1e-05
        %v1455 = vrsqrt.pop %v1454
        %v1456 = vmul.f32 %v1448, %v1455
        %v1458 = vlaneseq
        %v1459 = vshrl.u32 %v1458, 7
        %v1460 = vsub.s32 0, %v1459
        %v1461 = vrot.slane %v1441, %v1460
        %v1463 = vmul.f32 %v1456, %v1461
        %v1465 = vlaneseq
        %v1466 = vshrl.u32 %v1465, 7
        %v1467 = vsub.s32 0, %v1466
        %v1468 = vrot.slane %v1442, %v1467
        %v1470 = vadd.f32 %v1463, %v1468
        %v1471 = vpack.c.bf16 %v1470, %v1470
        %v1472 = vld [vmem:[#allocation19] sm:$0xf]
        %v1473 = vld [vmem:[#allocation19 + $0x4] sm:$0xf]
        %v1474 = vld [vmem:[#allocation19 + $0x8] sm:$0xf]
        %v1475 = vld [vmem:[#allocation19 + $0xc] sm:$0xf]
        %v1476 = vld [vmem:[#allocation21] sm:$0x1]
        %v1478 = vlaneseq
        %v1479 = vshrl.u32 %v1478, 7
        %v1480 = vsub.s32 0, %v1479
        %v1481 = vrot.slane %v1476, %v1480
        %v1487 = vunpack.c.l.b16 %v1472
        %v1488 = vunpack.c.l.b16 %v1473
        %v1489 = vunpack.c.l.b16 %v1474
        %v1490 = vunpack.c.l.b16 %v1475
        %v1491 = vpack.c.b16 %v1488, %v1487
        %v1492 = vpack.c.b16 %v1490, %v1489
        %v1496 = vsel %vm850, %v1471, 0
        %1498 = vmatprep.subr.bf16.mxu0 0
        %1499 = vmatpush1.bf16.msra.mxu0 %v1491
        %1500 = vmatprep.subr.bf16.mxu0 0
        %1501 = vmatpush1.bf16.msra.mxu0 %v1492
        %1502 = vmatprep.subr.bf16.mxu0 0
        %1503 = vmatpush1.bf16.msra.mxu0 0
        %1504 = vmatprep.subr.bf16.mxu0 0
        %1505 = vmatpush1.bf16.msra.mxu0 0
        %1506 = vmatprep.subr.bf16.mxu0 0
        %1507 = vmatpush1.bf16.msra.mxu0 0
        %1508 = vmatprep.subr.bf16.mxu0 0
        %1509 = vmatpush1.bf16.msra.mxu0 0
        %1510 = vmatprep.subr.bf16.mxu0 0
        %1511 = vmatpush1.bf16.msra.mxu0 0
        %1512 = vmatprep.subr.bf16.mxu0 0
        %1513 = vmatpush1.bf16.msra.mxu0 0
        %1514 = vmatprep.subr.bf16.mxu0 0
        %1515 = vmatpush1.bf16.msra.mxu0 0
        %1516 = vmatprep.subr.bf16.mxu0 0
        %1517 = vmatpush1.bf16.msra.mxu0 0
        %1518 = vmatprep.subr.bf16.mxu0 0
        %1519 = vmatpush1.bf16.msra.mxu0 0
        %1520 = vmatprep.subr.bf16.mxu0 0
        %1521 = vmatpush1.bf16.msra.mxu0 0
        %1522 = vmatprep.subr.bf16.mxu0 0
        %1523 = vmatpush1.bf16.msra.mxu0 0
        %1524 = vmatprep.subr.bf16.mxu0 0
        %1525 = vmatpush1.bf16.msra.mxu0 0
        %1526 = vmatprep.subr.bf16.mxu0 0
        %1527 = vmatpush1.bf16.msra.mxu0 0
        %1528 = vmatprep.subr.bf16.mxu0 0
        %1529 = vmatpush1.bf16.msra.mxu0 0
        %1530 = vmatprep.mubr.bf16.mxu0 0
        %1531 = vmatmul.mubr.bf16.gmra.mrb[0].mxu0 %v1496
        %v1532 = vpop.f32.mrb[0].mxu0
        %v1533 = vadd.f32 %v1481, %v1532
        %v1534 = vpop.f32.mrb[0].mxu0
        %v1535 = vpop.f32.mrb[0].mxu0
        %v1536 = vpop.f32.mrb[0].mxu0
        %1537 = vdwg.mxu0
        %v1538 = vmul.f32 %v1533, 0.5
        %v1539 = vmul.f32 %v1533, 0.70710677
        %v1540 = vand.u32 2147483647, %v1539
        %v1541 = vmul.f32 %v1540, 0.3275911
        %v1542 = vadd.f32 %v1541, 1.0
        %v1543 = vrcp.pop %v1542
        %v1544 = vmul.f32 1.0, %v1543
        %v1545 = vmul.f32 %v1544, 1.0614054
        %v1546 = vadd.f32 %v1545, -1.4531521
        %v1547 = vmul.f32 %v1546, %v1544
        %v1548 = vadd.f32 %v1547, 1.4214138
        %v1549 = vmul.f32 %v1548, %v1544
        %v1550 = vadd.f32 %v1549, -0.28449672
        %v1551 = vmul.f32 %v1550, %v1544
        %v1552 = vadd.f32 %v1551, 0.2548296
        %v1553 = vmul.f32 %v1552, %v1544
        %v1554 = vmul.f32 %v1540, %v1540
        %v1555 = vsub.f32 0.0, %v1554
        %v1556 = vmul.f32 %v1555, 1.442695
        %v1557 = vpow.pop %v1556
        %v1558 = vmul.f32 %v1553, %v1557
        %v1559 = vsub.f32 1.0, %v1558
        %vm1560 = vcmp.ge.f32.partialorder %v1539, 0.0
        %v1561 = vsub.f32 0.0, %v1559
        %v1562 = vsel %vm1560, %v1559, %v1561
        %v1563 = vadd.f32 %v1562, 1.0
        %v1564 = vmul.f32 %v1538, %v1563
        %v1565 = vpack.c.bf16 %v1564, %v1564
        %v1566 = vld [vmem:[#allocation22] sm:$0xf]
        %v1567 = vld [vmem:[#allocation22 + $0x4] sm:$0xf]
        %v1568 = vld [vmem:[#allocation22 + $0x8] sm:$0xf]
        %v1569 = vld [vmem:[#allocation22 + $0xc] sm:$0xf]
        %v1570 = vld [vmem:[#allocation22 + $0x10] sm:$0xf]
        %v1571 = vld [vmem:[#allocation22 + $0x14] sm:$0xf]
        %v1572 = vld [vmem:[#allocation22 + $0x18] sm:$0xf]
        %v1573 = vld [vmem:[#allocation22 + $0x1c] sm:$0xf]
        %v1574 = vld [vmem:[#allocation22 + $0x20] sm:$0xf]
        %v1575 = vld [vmem:[#allocation22 + $0x24] sm:$0xf]
        %v1576 = vld [vmem:[#allocation22 + $0x28] sm:$0xf]
        %v1577 = vld [vmem:[#allocation22 + $0x2c] sm:$0xf]
        %v1578 = vld [vmem:[#allocation22 + $0x30] sm:$0xf]
        %v1579 = vld [vmem:[#allocation22 + $0x34] sm:$0xf]
        %v1580 = vld [vmem:[#allocation22 + $0x38] sm:$0xf]
        %v1581 = vld [vmem:[#allocation22 + $0x3c] sm:$0xf]
        %v1582 = vld [vmem:[#allocation24] sm:$0x1]
        %v1584 = vlaneseq
        %v1585 = vshrl.u32 %v1584, 7
        %v1586 = vsub.s32 0, %v1585
        %v1587 = vrot.slane %v1582, %v1586
        %v1605 = vunpack.c.l.b16 %v1566
        %v1606 = vunpack.c.l.b16 %v1567
        %v1607 = vunpack.c.l.b16 %v1568
        %v1608 = vunpack.c.l.b16 %v1569
        %v1609 = vunpack.c.l.b16 %v1570
        %v1610 = vunpack.c.l.b16 %v1571
        %v1611 = vunpack.c.l.b16 %v1572
        %v1612 = vunpack.c.l.b16 %v1573
        %v1613 = vunpack.c.l.b16 %v1574
        %v1614 = vunpack.c.l.b16 %v1575
        %v1615 = vunpack.c.l.b16 %v1576
        %v1616 = vunpack.c.l.b16 %v1577
        %v1617 = vunpack.c.l.b16 %v1578
        %v1618 = vunpack.c.l.b16 %v1579
        %v1619 = vunpack.c.l.b16 %v1580
        %v1620 = vunpack.c.l.b16 %v1581
        %v1621 = vpack.c.b16 %v1606, %v1605
        %v1622 = vpack.c.b16 %v1608, %v1607
        %v1623 = vpack.c.b16 %v1610, %v1609
        %v1624 = vpack.c.b16 %v1612, %v1611
        %v1625 = vpack.c.b16 %v1614, %v1613
        %v1626 = vpack.c.b16 %v1616, %v1615
        %v1627 = vpack.c.b16 %v1618, %v1617
        %v1628 = vpack.c.b16 %v1620, %v1619
        %1637 = vmatprep.subr.bf16.mxu0 0
        %1638 = vmatpush1.bf16.msra.mxu0 %v1621
        %1639 = vmatprep.subr.bf16.mxu0 0
        %1640 = vmatpush1.bf16.msra.mxu0 %v1622
        %1641 = vmatprep.subr.bf16.mxu0 0
        %1642 = vmatpush1.bf16.msra.mxu0 %v1623
        %1643 = vmatprep.subr.bf16.mxu0 0
        %1644 = vmatpush1.bf16.msra.mxu0 %v1624
        %1645 = vmatprep.subr.bf16.mxu0 0
        %1646 = vmatpush1.bf16.msra.mxu0 %v1625
        %1647 = vmatprep.subr.bf16.mxu0 0
        %1648 = vmatpush1.bf16.msra.mxu0 %v1626
        %1649 = vmatprep.subr.bf16.mxu0 0
        %1650 = vmatpush1.bf16.msra.mxu0 %v1627
        %1651 = vmatprep.subr.bf16.mxu0 0
        %1652 = vmatpush1.bf16.msra.mxu0 %v1628
        %1653 = vmatprep.subr.bf16.mxu0 0
        %1654 = vmatpush1.bf16.msra.mxu0 0
        %1655 = vmatprep.subr.bf16.mxu0 0
        %1656 = vmatpush1.bf16.msra.mxu0 0
        %1657 = vmatprep.subr.bf16.mxu0 0
        %1658 = vmatpush1.bf16.msra.mxu0 0
        %1659 = vmatprep.subr.bf16.mxu0 0
        %1660 = vmatpush1.bf16.msra.mxu0 0
        %1661 = vmatprep.subr.bf16.mxu0 0
        %1662 = vmatpush1.bf16.msra.mxu0 0
        %1663 = vmatprep.subr.bf16.mxu0 0
        %1664 = vmatpush1.bf16.msra.mxu0 0
        %1665 = vmatprep.subr.bf16.mxu0 0
        %1666 = vmatpush1.bf16.msra.mxu0 0
        %1667 = vmatprep.subr.bf16.mxu0 0
        %1668 = vmatpush1.bf16.msra.mxu0 0
        %1669 = vmatprep.mubr.bf16.mxu0 0
        %1670 = vmatmul.mubr.bf16.gmra.mrb[0].mxu0 %v1565
        %v1671 = vpop.f32.mrb[0].mxu0
        %v1672 = vadd.f32 %v1587, %v1671
        %v1673 = vpop.f32.mrb[0].mxu0
        %v1674 = vpop.f32.mrb[0].mxu0
        %v1675 = vpop.f32.mrb[0].mxu0
        %1676 = vdwg.mxu0
        %v1677 = vadd.f32 %v1470, %v1672
        %v1678 = vld [vmem:[#allocation25] sm:$0x1]
        %v1679 = vld [vmem:[#allocation27] sm:$0x1]
        %v1680 = vsel %vm850, %v1677, 0.0
        %1681 = vadd.xlane.f32.xlu0 %v1680
        %v1682 = vpop.xlane.xlu0 %1681
        %v1683 = vmul.f32 %v1682, %v1446
        %v1684 = vsub.f32 %v1677, %v1683
        %v1685 = vmul.f32 %v1684, %v1684
        %v1686 = vsel %vm850, %v1685, 0.0
        %1687 = vadd.xlane.f32.xlu0 %v1686
        %v1688 = vpop.xlane.xlu0 %1687
        %v1689 = vmul.f32 %v1688, %v1446
        %v1690 = vadd.f32 %v1689, 1e-05
        %v1691 = vrsqrt.pop %v1690
        %v1692 = vmul.f32 %v1684, %v1691
        %v1694 = vlaneseq
        %v1695 = vshrl.u32 %v1694, 7
        %v1696 = vsub.s32 0, %v1695
        %v1697 = vrot.slane %v1678, %v1696
        %v1699 = vmul.f32 %v1692, %v1697
        %v1701 = vlaneseq
        %v1702 = vshrl.u32 %v1701, 7
        %v1703 = vsub.s32 0, %v1702
        %v1704 = vrot.slane %v1679, %v1703
        %v1706 = vadd.f32 %v1699, %v1704
        %1707 = vst.msk [vmem:[%s708] sm:$0xff] %vm850, %v1706
        %s1708 = sand.u32 %s381, 1
        %s1709 = scalar_lea.sflag [#allocation6], %s1708
        %s1710 = sand.u32 %s381, 1
        %s1711 = smul.addr %s1710, 8
        %s1712 = scalar_lea.vmem [#allocation28], %s1711
        // Predicated region
        $region145: #{tpu_custom_call.1} parent=79 // pred_check
          %p1713 = pneg %p391
        $region146: #{tpu_custom_call.1} parent=79 // pred_check_branch
          %1715 = sbr.rel (%p1713) target = $region148
        $region147: #{tpu_custom_call.1} parent=79 // pred_region
          %s1717 = ssub.s32 128, 128
          %1718 = vsyncadd %s1709, %s1717
          %s1719 = sadd.s32 %s44, %s43
          %s1720 = smul.addr %s1719, 128
          %s1721 = scalar_lea.hbm %s15, %s1720
          %s1723 = sshll.u32 %s1712, 4
          %s1724 = int_to_ptr.vmem [resolvable:$true] %s1723
          %1726 = dma.vmem_to_hbm [thread:$0]  %s1724, 128, %s1721, %s1709
        $region148: #{tpu_custom_call.1} parent=79 // pred_fallthru
          _
      $region80: #{tpu_custom_call.1} parent=5 // pred_fallthru
        _
      %p1727 = scmp.le.s32.totalorder 2, %s34
      // Predicated region
      $region149: #{tpu_custom_call.1} parent=5 // pred_check
        %p1728 = pneg %p1727
      $region150: #{tpu_custom_call.1} parent=5 // pred_check_branch
        %1730 = sbr.rel (%p1728) target = $region152
      $region151: #{tpu_custom_call.1} parent=5 // pred_region
        %s1731 = ssub.s32 %s34, 2
        // Predicated region
        $region153: #{tpu_custom_call.1} parent=151 // pred_check
          %p1732 = pneg %p397
        $region154: #{tpu_custom_call.1} parent=151 // pred_check_branch
          %1734 = sbr.rel (%p1732) target = $region156
        $region155: #{tpu_custom_call.1} parent=151 // pred_region
          %s1735 = sand.u32 %s382, 1
          %s1736 = scalar_lea.sflag [#allocation6], %s1735
          %s1737 = sand.u32 %s382, 1
          %s1738 = smul.addr %s1737, 8
          %s1739 = scalar_lea.vmem [#allocation28], %s1738
          %1740 = dma.done %s1736, 128
        $region156: #{tpu_custom_call.1} parent=151 // pred_fallthru
          _
      $region152: #{tpu_custom_call.1} parent=5 // pred_fallthru
        _
    $region6: #{tpu_custom_call.1} parent=1 // loop_footer
      %s38 = sadd.s32 1, %s34
    $region7: #{tpu_custom_call.1} parent=1 // loop_footer_branch
      %33 = sbr.rel target = $region3
    $region8: #{tpu_custom_call.1} parent=1 // loop_exit
      _
    %1741 = vsyncpa [#allocation5], 1
    %s1742 = scalar_lea.sflag [#allocation5], 1
    %1743 = vsyncpa %s1742, 1
    %1744 = vsyncpa [#allocation8], 1
    %1745 = vsyncpa [#allocation11], 1
    %1746 = vsyncpa [#allocation14], 1
    %1747 = vsyncpa [#allocation17], 1
    %1748 = vsyncpa [#allocation20], 1
    %1749 = vsyncpa [#allocation23], 1
    %1750 = vsyncpa [#allocation26], 1
    %1751 = vsyncpa [#allocation6], 1
    %s1752 = scalar_lea.sflag [#allocation6], 1
    %1753 = vsyncpa %s1752, 1

</llo_original>
